<compile_context>
chip_gen: v7x
topology: tpu7x:2x2x1
jax: 0.10.0
libtpu: 0.0.40
codegen_flags: <defaults>
</compile_context>

<pallas_src>
import jax
import jax.numpy as jnp
from jax import lax
from jax.experimental import pallas as pl
from jax.experimental.pallas import tpu as pltpu


def _round_up(x, m):
    return ((x + m - 1) // m) * m


def _pick_k_tile(k_pad, max_tile):
    """Largest multiple-of-256 divisor of k_pad that is <= max_tile."""
    best, t = 256, 256
    while t <= min(k_pad, max_tile):
        if k_pad % t == 0:
            best = t
        t += 256
    return best


# ----------------------------------------------------------------------------
# Kernel A: fused per-view pathway feature extractor.
#   grid = (n_views, n_k); scalar-prefetched (view order, pathway map) route the
#   activation block and the weight block.  f32 accumulator over K, f32
#   bias+ReLU epilogue, bf16 lane-dense store into the (b_pad, v*z_pad) slab.
# ----------------------------------------------------------------------------
def _pathway_kernel(order_ref, pmap_ref, x_ref, w_ref, b_ref, o_ref, acc_ref):
    del order_ref, pmap_ref            # consumed by the index_maps only
    k = pl.program_id(1)

    @pl.when(k == 0)
    def _():
        acc_ref[...] = jnp.zeros_like(acc_ref)

    acc_ref[...] += jnp.dot(x_ref[...], w_ref[...],
                            preferred_element_type=jnp.float32)

    @pl.when(k == pl.num_programs(1) - 1)
    def _():
        out = jnp.maximum(acc_ref[...] + b_ref[...], 0.0)   # f32 epilogue
        o_ref[...] = out.astype(o_ref.dtype)


def pathway_features(order, pmap, x_views, w3, b3, *, k_tile):
    """order/pmap: (v,) int32 routing (grid step -> source view / pathway).
       x_views: (v, b_pad, K_pad) bf16 in ORIGINAL view order.
       w3: (3, K_pad, z_pad) bf16.  b3: (3, 1, z_pad) f32.
       Returns (b_pad, v*z_pad) bf16 features already in classifier concat order."""
    v, b_pad, k_pad = x_views.shape
    _, _, z_pad = w3.shape
    n_k = k_pad // k_tile

    return pl.pallas_call(
        _pathway_kernel,
        out_shape=jax.ShapeDtypeStruct((b_pad, v * z_pad), jnp.bfloat16),
        grid_spec=pltpu.PrefetchScalarGridSpec(
            num_scalar_prefetch=2,
            grid=(v, n_k),
            in_specs=[
                # activations: pick the source view for this grid step
                pl.BlockSpec((None, b_pad, k_tile),
                             lambda vi, k, order, pmap: (order[vi], 0, k)),
                # weights: pick the pathway; views are iterated pathway-sorted so
                # consecutive steps reuse the same resident weight block
                pl.BlockSpec((None, k_tile, z_pad),
                             lambda vi, k, order, pmap: (pmap[vi], k, 0)),
                pl.BlockSpec((None, 1, z_pad),
                             lambda vi, k, order, pmap: (pmap[vi], 0, 0)),
            ],
            out_specs=pl.BlockSpec((b_pad, z_pad),
                                   lambda vi, k, order, pmap: (0, vi)),
            scratch_shapes=[pltpu.VMEM((b_pad, z_pad), jnp.float32)],
        ),
        compiler_params=pltpu.CompilerParams(
            # 6 views split evenly across v7x's two TensorCores.
            dimension_semantics=("parallel", "arbitrary"),
        ),
    )(order, pmap, x_views, w3, b3)


# ----------------------------------------------------------------------------
# Kernel B: fused head.
#   hgt_z  = relu(hgt1 @ h_w2 + h_b2)
#   hidden = relu(feats @ c_w1_feats + hgt_z @ c_w1_hgt + c_b1)
#   logits = hidden @ c_w2 + c_b2      (lane-padded logits, sliced by wrapper)
# ----------------------------------------------------------------------------
def _head_kernel(feats_ref, hgt1_ref, hw2_ref, hb2_ref,
                 cw1f_ref, cw1h_ref, cb1_ref, cw2_ref, cb2_ref, o_ref):
    hz = jnp.dot(hgt1_ref[...], hw2_ref[...], preferred_element_type=jnp.float32)
    hz = jnp.maximum(hz + hb2_ref[...], 0.0)

    hidden = jnp.dot(feats_ref[...], cw1f_ref[...],
                     preferred_element_type=jnp.float32)
    hidden = hidden + jnp.dot(hz.astype(jnp.bfloat16), cw1h_ref[...],
                              preferred_element_type=jnp.float32)
    hidden = jnp.maximum(hidden + cb1_ref[...], 0.0)

    logits = jnp.dot(hidden.astype(jnp.bfloat16), cw2_ref[...],
                     preferred_element_type=jnp.float32)
    o_ref[...] = (logits + cb2_ref[...]).astype(o_ref.dtype)


def classifier_head(feats, hgt1, hw2, hb2, cw1f, cw1h, cb1, cw2, cb2,
                    *, buffering=1):
    B = feats.shape[0]
    NP = cw2.shape[1]

    def spec(shape):
        idx = lambda i: (0,) * len(shape)
        if buffering is None:
            return pl.BlockSpec(shape, idx)
        # grid=(1,): nothing to pipeline, so single-buffer the resident operands
        # (halves VMEM for the head weights — matters on v7x / v5e).
        return pl.BlockSpec(shape, idx, pipeline_mode=pl.Buffered(buffering))

    return pl.pallas_call(
        _head_kernel,
        out_shape=jax.ShapeDtypeStruct((B, NP), jnp.float32),
        grid_spec=pltpu.PrefetchScalarGridSpec(
            num_scalar_prefetch=0,
            grid=(1,),
            in_specs=[spec(feats.shape), spec(hgt1.shape), spec(hw2.shape),
                      spec(hb2.shape), spec(cw1f.shape), spec(cw1h.shape),
                      spec(cb1.shape), spec(cw2.shape), spec(cb2.shape)],
            out_specs=pl.BlockSpec((B, NP), lambda i: (0, 0)),
        ),
        compiler_params=pltpu.CompilerParams(
            dimension_semantics=("arbitrary",)),
    )(feats, hgt1, hw2, hb2, cw1f, cw1h, cb1, cw2, cb2)


# ----------------------------------------------------------------------------
# Parameter construction (deterministic, synthetic) — raw f32 params.
# ----------------------------------------------------------------------------
def init_params(key, *, c, h, w, z_dim, n_views, n_classes, hidden_h=128,
                hidden_c=256):
    feat_in = c * h * w
    keys = jax.random.split(key, 14)

    def dense(kk, fan_in, fan_out):
        scale = 1.0 / jnp.sqrt(jnp.float32(fan_in))
        wgt = jax.random.normal(kk[0], (fan_in, fan_out), jnp.float32) * scale
        bias = jax.random.normal(kk[1], (fan_out,), jnp.float32) * 0.01
        return wgt, bias

    p = {}
    # Stand-in per-pathway feature extractors (flatten -> Linear -> ReLU).
    p["sides_w"], p["sides_b"] = dense(keys[0:2], feat_in, z_dim)
    p["tops_w"], p["tops_b"] = dense(keys[2:4], feat_in, z_dim)
    p["details_w"], p["details_b"] = dense(keys[4:6], feat_in, z_dim)
    # Height pathway: Linear(1,128) ReLU Linear(128,z_dim) ReLU.
    p["h_w1"], p["h_b1"] = dense(keys[6:8], 1, hidden_h)
    p["h_w2"], p["h_b2"] = dense(keys[8:10], hidden_h, z_dim)
    # Classifier: Linear(z*(n_views+1),256) ReLU Linear(256,n_classes).
    p["c_w1"], p["c_b1"] = dense(keys[10:12], z_dim * (n_views + 1), hidden_c)
    p["c_w2"], p["c_b2"] = dense(keys[12:14], hidden_c, n_classes)
    return p


# ----------------------------------------------------------------------------
# One-time weight packing (pad + bf16 cast).  Do NOT call per forward step.
# ----------------------------------------------------------------------------
def pack_params(params, *, c, h, w, n_views):
    feat_in = c * h * w
    z_dim = params["sides_w"].shape[1]
    hidden_c = params["c_w1"].shape[1]
    n_cls = params["c_w2"].shape[1]
    v = n_views

    feat_in_pad = _round_up(feat_in, 256)   # MXU-aligned contraction (Kernel A)
    z_pad = _round_up(z_dim, 256)           # lane-dense + 256-aligned head K
    n_pad = _round_up(n_cls, 128)           # lane-dense logits

    def pad_w(wgt):
        return jnp.pad(wgt, ((0, feat_in_pad - feat_in), (0, z_pad - z_dim)))

    def pad_z(vec):
        return jnp.pad(vec, (0, z_pad - z_dim))

    w3 = jnp.stack([pad_w(params["sides_w"]), pad_w(params["tops_w"]),
                    pad_w(params["details_w"])]).astype(jnp.bfloat16)
    b3 = jnp.stack([pad_z(params["sides_b"]), pad_z(params["tops_b"]),
                    pad_z(params["details_b"])]
                   ).reshape(3, 1, z_pad).astype(jnp.float32)

    # Grid-step -> (source view, pathway) routing, pathway-sorted = PyTorch
    # concat order: sides = views 1..v-3, tops = views {0, v-2}, details = v-1.
    order = list(range(1, v - 2)) + [0, v - 2, v - 1]
    pmap = [0] * (v - 3) + [1, 1, 2]

    # Height pathway layer 2.
    hw2 = jnp.pad(params["h_w2"], ((0, 0), (0, z_pad - z_dim))).astype(jnp.bfloat16)
    hb2 = pad_z(params["h_b2"]).reshape(1, z_pad).astype(jnp.float32)

    # Classifier layer 1: view-feature rows re-laid-out with zero rows at the
    # per-view z pads so Kernel A's (b_pad, v*z_pad) slab feeds it directly.
    cw1_views = params["c_w1"][: v * z_dim].reshape(v, z_dim, hidden_c)
    cw1f = jnp.pad(cw1_views, ((0, 0), (0, z_pad - z_dim), (0, 0)))
    cw1f = cw1f.reshape(v * z_pad, hidden_c).astype(jnp.bfloat16)
    cw1h = jnp.pad(params["c_w1"][v * z_dim:],
                   ((0, z_pad - z_dim), (0, 0))).astype(jnp.bfloat16)
    cb1 = params["c_b1"].reshape(1, hidden_c).astype(jnp.float32)

    cw2 = jnp.pad(params["c_w2"], ((0, 0), (0, n_pad - n_cls))).astype(jnp.bfloat16)
    cb2 = jnp.pad(params["c_b2"], (0, n_pad - n_cls)).reshape(1, n_pad).astype(jnp.float32)

    return {
        "order": jnp.asarray(order, jnp.int32),
        "pmap": jnp.asarray(pmap, jnp.int32),
        "w3": w3, "b3": b3,
        "h_w1": params["h_w1"].astype(jnp.float32),
        "h_b1": params["h_b1"].astype(jnp.float32),
        "hw2": hw2, "hb2": hb2,
        "cw1f": cw1f, "cw1h": cw1h, "cb1": cb1,
        "cw2": cw2, "cb2": cb2,
    }


# ----------------------------------------------------------------------------
# SimpleView forward (jit with packed weights as arguments).
# ----------------------------------------------------------------------------
def simple_view_forward(packed, inputs, heights, *, n_classes,
                        head_buffering=1, max_k_tile=1024):
    b, v, c, h, w = inputs.shape
    feat_in = c * h * w
    feat_in_pad = packed["w3"].shape[1]
    b_pad = _round_up(max(b, 8), 8)          # unmasked 8-sublane stores

    # Activations: (b, v, c, h, w) -> (v, b_pad, feat_in_pad) bf16 (one fused
    # XLA relayout of the small activation tensor; weights are untouched).
    x = inputs.reshape(b, v, feat_in).transpose(1, 0, 2)
    x = jnp.pad(x, ((0, 0), (0, b_pad - b), (0, feat_in_pad - feat_in)))
    x = x.astype(jnp.bfloat16)

    # Kernel A — K-tile bounds VMEM at real sizes (use ~512 on v5e, ~2048 on v6e).
    k_tile = _pick_k_tile(feat_in_pad, max_k_tile)
    feats = pathway_features(packed["order"], packed["pmap"], x,
                             packed["w3"], packed["b3"], k_tile=k_tile)
    # feats is (b_pad, v*z_pad), already in classifier concat order: consumed
    # by Kernel B as-is (no unpad / reshape / concat / HBM relayout).

    # Height pathway layer 1: K=1 outer product — plain jnp (a launch would be
    # pure overhead).
    hts = jnp.pad(heights.reshape(-1, 1).astype(jnp.float32),
                  ((0, b_pad - b), (0, 0)))
    hgt1 = jnp.maximum(
        jnp.dot(hts, packed["h_w1"], precision=lax.Precision.HIGHEST)
        + packed["h_b1"], 0.0)                              # (b_pad, 128) f32

    logits_pad = classifier_head(
        feats, hgt1.astype(jnp.bfloat16),
        packed["hw2"], packed["hb2"], packed["cw1f"], packed["cw1h"],
        packed["cb1"], packed["cw2"], packed["cb2"],
        buffering=head_buffering)
    return logits_pad[:b, :n_classes]


# ----------------------------------------------------------------------------
# Pure-JAX references for correctness checks.
# ----------------------------------------------------------------------------
def _dot32(a, b):
    return jnp.dot(a, b, precision=lax.Precision.HIGHEST)


def reference_forward_f32(params, inputs, heights):
    b, v, c, h, w = inputs.shape
    feat_in = c * h * w

    def path(x, wgt, bias):
        return jnp.maximum(_dot32(x, wgt) + bias, 0.0)

    sides = path(inputs[:, 1:-2].reshape(b * (v - 3), feat_in),
                 params["sides_w"], params["sides_b"]).reshape(b, -1)
    tops = path(inputs[:, jnp.array([0, v - 2])].reshape(b * 2, feat_in),
                params["tops_w"], params["tops_b"]).reshape(b, -1)
    details = path(inputs[:, v - 1].reshape(b, feat_in),
                   params["details_w"], params["details_b"]).reshape(b, -1)
    hgt = jnp.maximum(_dot32(heights.reshape(-1, 1), params["h_w1"]) + params["h_b1"], 0.0)
    hgt = jnp.maximum(_dot32(hgt, params["h_w2"]) + params["h_b2"], 0.0)
    feats = jnp.concatenate([sides, tops, details, hgt], axis=1)
    hidden = jnp.maximum(_dot32(feats, params["c_w1"]) + params["c_b1"], 0.0)
    return _dot32(hidden, params["c_w2"]) + params["c_b2"]


def reference_forward_bf16_mimic(params, inputs, heights):
    """Mirrors the kernel numerics (bf16 operands, f32 accumulation/epilogue)."""
    q = lambda a: a.astype(jnp.bfloat16).astype(jnp.float32)
    b, v, c, h, w = inputs.shape
    feat_in = c * h * w
    z_dim = params["sides_w"].shape[1]

    def path(x, wgt, bias):
        return jnp.maximum(_dot32(q(x), q(wgt)) + bias, 0.0)

    sides = path(inputs[:, 1:-2].reshape(b * (v - 3), feat_in),
                 params["sides_w"], params["sides_b"]).reshape(b, -1)
    tops = path(inputs[:, jnp.array([0, v - 2])].reshape(b * 2, feat_in),
                params["tops_w"], params["tops_b"]).reshape(b, -1)
    details = path(inputs[:, v - 1].reshape(b, feat_in),
                   params["details_w"], params["details_b"]).reshape(b, -1)
    feats = q(jnp.concatenate([sides, tops, details], axis=1))
    hgt1 = jnp.maximum(_dot32(heights.reshape(-1, 1), params["h_w1"]) + params["h_b1"], 0.0)
    hz = jnp.maximum(_dot32(q(hgt1), q(params["h_w2"])) + params["h_b2"], 0.0)
    cw1_v = params["c_w1"][: v * z_dim]
    cw1_h = params["c_w1"][v * z_dim:]
    hidden = jnp.maximum(_dot32(feats, q(cw1_v)) + _dot32(q(hz), q(cw1_h))
                         + params["c_b1"], 0.0)
    return _dot32(q(hidden), q(params["c_w2"])) + params["c_b2"]


# ----------------------------------------------------------------------------
if __name__ == "__main__":
    B, V, C, H, W = 2, 6, 1, 16, 16      # v=6 views -> 3 sides, 2 tops, 1 detail
    Z_DIM = 192                          # stand-in latent size (DenseNet201 uses 1920)
    N_CLASSES = 5

    key = jax.random.PRNGKey(0)
    k_in, k_h, k_p = jax.random.split(key, 3)

    inputs = jax.random.normal(k_in, (B, V, C, H, W), jnp.float32)
    heights = jax.random.normal(k_h, (B,), jnp.float32)

    params = init_params(k_p, c=C, h=H, w=W, z_dim=Z_DIM,
                         n_views=V, n_classes=N_CLASSES)
    packed = pack_params(params, c=C, h=H, w=W, n_views=V)   # one-time packing

    fwd = jax.jit(simple_view_forward,
                  static_argnames=("n_classes", "head_buffering", "max_k_tile"))
    try:
        logits = jax.block_until_ready(
            fwd(packed, inputs, heights, n_classes=N_CLASSES, head_buffering=1))
    except Exception:
        # Fallback for JAX builds that reject single-buffered BlockSpecs.
        logits = jax.block_until_ready(
            fwd(packed, inputs, heights, n_classes=N_CLASSES, head_buffering=None))

    assert logits.shape == (B, N_CLASSES), logits.shape
    assert bool(jnp.all(jnp.isfinite(logits)))

    # Wiring check against a reference that mirrors the kernel's bf16/f32 numerics.
    ref_mimic = reference_forward_bf16_mimic(params, inputs, heights)
    assert float(jnp.max(jnp.abs(logits - ref_mimic))) < 5e-2

    # Documented bf16 quantization drift vs. the pure-f32 reference.
    ref_f32 = reference_forward_f32(params, inputs, heights)
    assert float(jnp.max(jnp.abs(logits - ref_f32))) < 0.5

    print("KERNEL_OK")
</pallas_src>

<mosaic_0001>
module attributes {stable_mosaic.version = 11 : i64} {
  func.func @_pathway_kernel(%arg0: i32, %arg1: i32, %arg2: memref<6xi32, #tpu.memory_space<smem>>, %arg3: memref<6xi32, #tpu.memory_space<smem>>, %arg4: memref<1x8x256xbf16, #tpu.memory_space<vmem>>, %arg5: memref<1x256x256xbf16, #tpu.memory_space<vmem>>, %arg6: memref<1x1x256xf32, #tpu.memory_space<vmem>>, %arg7: memref<8x256xbf16, #tpu.memory_space<vmem>>, %arg8: memref<8x256xf32, #tpu.memory_space<vmem>>) attributes {dimension_semantics = [#tpu.dimension_semantics<parallel>, #tpu.dimension_semantics<arbitrary>], iteration_bounds = array<i64: 6, 1>, scalar_prefetch = 2 : i64, scratch_operands = 1 : i64, tpu.core_type = #tpu.core_type<tc>, window_params = [{transform_indices = @transform_0, window_bounds = array<i64: 1, 8, 256>}, {transform_indices = @transform_1, window_bounds = array<i64: 1, 256, 256>}, {transform_indices = @transform_2, window_bounds = array<i64: 1, 1, 256>}, {transform_indices = @transform_3, window_bounds = array<i64: 8, 256>}]} {
    %c0_i32 = arith.constant 0 : i32
    %0 = arith.cmpi eq, %arg1, %c0_i32 : i32
    %1 = arith.extui %0 : i1 to i32
    %c0_i32_0 = arith.constant 0 : i32
    %2 = arith.cmpi ne, %1, %c0_i32_0 : i32
    scf.if %2 {
      %cst_12 = arith.constant 0.000000e+00 : f32
      %14 = vector.broadcast %cst_12 : f32 to vector<8x256xf32>
      %c0_13 = arith.constant 0 : index
      %c0_14 = arith.constant 0 : index
      %15 = vector.load %arg8[%c0_13, %c0_14] : memref<8x256xf32, #tpu.memory_space<vmem>>, vector<8x256xf32>
      tpu.vector_store %arg8[%c0_13, %c0_14], %14 {strides = array<i32>} : memref<8x256xf32, #tpu.memory_space<vmem>>, vector<8x256xf32>,
    } else {
    }
    %c0 = arith.constant 0 : index
    %c0_1 = arith.constant 0 : index
    %3 = vector.load %arg8[%c0, %c0_1] : memref<8x256xf32, #tpu.memory_space<vmem>>, vector<8x256xf32>
    %c0_2 = arith.constant 0 : index
    %c0_3 = arith.constant 0 : index
    %c0_4 = arith.constant 0 : index
    %4 = vector.load %arg4[%c0_2, %c0_3, %c0_4] : memref<1x8x256xbf16, #tpu.memory_space<vmem>>, vector<1x8x256xbf16>
    %5 = vector.shape_cast %4 : vector<1x8x256xbf16> to vector<8x256xbf16>
    %c0_5 = arith.constant 0 : index
    %c0_6 = arith.constant 0 : index
    %c0_7 = arith.constant 0 : index
    %6 = vector.load %arg5[%c0_5, %c0_6, %c0_7] : memref<1x256x256xbf16, #tpu.memory_space<vmem>>, vector<1x256x256xbf16>
    %7 = vector.shape_cast %6 : vector<1x256x256xbf16> to vector<256x256xbf16>
    %cst = arith.constant dense<0.000000e+00> : vector<8x256xf32>
    %8 = tpu.matmul %5, %7, %cst {dimension_numbers = #tpu.dot_dimension_numbers<[1], [0], [0], [1], [0, 0, 1, 1], [], []>} : vector<8x256xbf16>, vector<256x256xbf16>, vector<8x256xf32> -> vector<8x256xf32>
    %9 = arith.addf %3, %8 : vector<8x256xf32>
    %c0_8 = arith.constant 0 : index
    %c0_9 = arith.constant 0 : index
    %10 = vector.load %arg8[%c0_8, %c0_9] : memref<8x256xf32, #tpu.memory_space<vmem>>, vector<8x256xf32>
    tpu.vector_store %arg8[%c0_8, %c0_9], %9 {strides = array<i32>} : memref<8x256xf32, #tpu.memory_space<vmem>>, vector<8x256xf32>,
    %c0_i32_10 = arith.constant 0 : i32
    %11 = arith.cmpi eq, %arg1, %c0_i32_10 : i32
    %12 = arith.extui %11 : i1 to i32
    %c0_i32_11 = arith.constant 0 : i32
    %13 = arith.cmpi ne, %12, %c0_i32_11 : i32
    scf.if %13 {
      %c0_12 = arith.constant 0 : index
      %c0_13 = arith.constant 0 : index
      %14 = vector.load %arg8[%c0_12, %c0_13] : memref<8x256xf32, #tpu.memory_space<vmem>>, vector<8x256xf32>
      %c0_14 = arith.constant 0 : index
      %c0_15 = arith.constant 0 : index
      %c0_16 = arith.constant 0 : index
      %15 = vector.load %arg6[%c0_14, %c0_15, %c0_16] : memref<1x1x256xf32, #tpu.memory_space<vmem>>, vector<1x1x256xf32>
      %16 = vector.shape_cast %15 : vector<1x1x256xf32> to vector<1x256xf32>
      %17 = vector.broadcast %16 : vector<1x256xf32> to vector<8x256xf32>
      %18 = arith.addf %14, %17 : vector<8x256xf32>
      %cst_17 = arith.constant 0.000000e+00 : f32
      %19 = vector.broadcast %cst_17 : f32 to vector<8x256xf32>
      %20 = arith.maximumf %18, %19 : vector<8x256xf32>
      %21 = arith.truncf %20 : vector<8x256xf32> to vector<8x256xbf16>
      %c0_18 = arith.constant 0 : index
      %c0_19 = arith.constant 0 : index
      %22 = vector.load %arg7[%c0_18, %c0_19] : memref<8x256xbf16, #tpu.memory_space<vmem>>, vector<8x256xbf16>
      tpu.vector_store %arg7[%c0_18, %c0_19], %21 {strides = array<i32>} : memref<8x256xbf16, #tpu.memory_space<vmem>>, vector<8x256xbf16>,
    } else {
    }
    return
  }
  func.func @transform_0(%arg0: i32, %arg1: i32, %arg2: memref<6xi32, #tpu.memory_space<smem>>, %arg3: memref<6xi32, #tpu.memory_space<smem>>) -> (i32, i32, i32) {
    %0 = arith.index_cast %arg0 : i32 to index
    %1 = memref.load %arg2[%0] : memref<6xi32, #tpu.memory_space<smem>>
    %c0_i32 = arith.constant 0 : i32
    %c0_i32_0 = arith.constant 0 : i32
    return %1, %c0_i32, %arg1 : i32, i32, i32
  }
  func.func @transform_1(%arg0: i32, %arg1: i32, %arg2: memref<6xi32, #tpu.memory_space<smem>>, %arg3: memref<6xi32, #tpu.memory_space<smem>>) -> (i32, i32, i32) {
    %0 = arith.index_cast %arg0 : i32 to index
    %1 = memref.load %arg3[%0] : memref<6xi32, #tpu.memory_space<smem>>
    %c0_i32 = arith.constant 0 : i32
    %c0_i32_0 = arith.constant 0 : i32
    return %1, %arg1, %c0_i32 : i32, i32, i32
  }
  func.func @transform_2(%arg0: i32, %arg1: i32, %arg2: memref<6xi32, #tpu.memory_space<smem>>, %arg3: memref<6xi32, #tpu.memory_space<smem>>) -> (i32, i32, i32) {
    %0 = arith.index_cast %arg0 : i32 to index
    %1 = memref.load %arg3[%0] : memref<6xi32, #tpu.memory_space<smem>>
    %c0_i32 = arith.constant 0 : i32
    %c0_i32_0 = arith.constant 0 : i32
    %c0_i32_1 = arith.constant 0 : i32
    return %1, %c0_i32, %c0_i32_0 : i32, i32, i32
  }
  func.func @transform_3(%arg0: i32, %arg1: i32, %arg2: memref<6xi32, #tpu.memory_space<smem>>, %arg3: memref<6xi32, #tpu.memory_space<smem>>) -> (i32, i32) {
    %c0_i32 = arith.constant 0 : i32
    %c0_i32_0 = arith.constant 0 : i32
    return %c0_i32, %arg0 : i32, i32
  }
}

module attributes {stable_mosaic.version = 11 : i64} {
  func.func @_head_kernel(%arg0: i32, %arg1: memref<8x1536xbf16, #tpu.memory_space<vmem>>, %arg2: memref<8x128xbf16, #tpu.memory_space<vmem>>, %arg3: memref<128x256xbf16, #tpu.memory_space<vmem>>, %arg4: memref<1x256xf32, #tpu.memory_space<vmem>>, %arg5: memref<1536x256xbf16, #tpu.memory_space<vmem>>, %arg6: memref<256x256xbf16, #tpu.memory_space<vmem>>, %arg7: memref<1x256xf32, #tpu.memory_space<vmem>>, %arg8: memref<256x128xbf16, #tpu.memory_space<vmem>>, %arg9: memref<1x128xf32, #tpu.memory_space<vmem>>, %arg10: memref<8x128xf32, #tpu.memory_space<vmem>>) attributes {dimension_semantics = [#tpu.dimension_semantics<arbitrary>], iteration_bounds = array<i64: 1>, scalar_prefetch = 0 : i64, scratch_operands = 0 : i64, tpu.core_type = #tpu.core_type<tc>, window_params = [{pipeline_mode = #tpu.pipeline_mode<synchronous>, transform_indices = @transform_0, window_bounds = array<i64: 8, 1536>}, {pipeline_mode = #tpu.pipeline_mode<synchronous>, transform_indices = @transform_1, window_bounds = array<i64: 8, 128>}, {pipeline_mode = #tpu.pipeline_mode<synchronous>, transform_indices = @transform_2, window_bounds = array<i64: 128, 256>}, {pipeline_mode = #tpu.pipeline_mode<synchronous>, transform_indices = @transform_3, window_bounds = array<i64: 1, 256>}, {pipeline_mode = #tpu.pipeline_mode<synchronous>, transform_indices = @transform_4, window_bounds = array<i64: 1536, 256>}, {pipeline_mode = #tpu.pipeline_mode<synchronous>, transform_indices = @transform_5, window_bounds = array<i64: 256, 256>}, {pipeline_mode = #tpu.pipeline_mode<synchronous>, transform_indices = @transform_6, window_bounds = array<i64: 1, 256>}, {pipeline_mode = #tpu.pipeline_mode<synchronous>, transform_indices = @transform_7, window_bounds = array<i64: 256, 128>}, {pipeline_mode = #tpu.pipeline_mode<synchronous>, transform_indices = @transform_8, window_bounds = array<i64: 1, 128>}, {pipeline_mode = #tpu.pipeline_mode<synchronous>, transform_indices = @transform_9, window_bounds = array<i64: 8, 128>}]} {
    %c0 = arith.constant 0 : index
    %c0_0 = arith.constant 0 : index
    %0 = vector.load %arg2[%c0, %c0_0] : memref<8x128xbf16, #tpu.memory_space<vmem>>, vector<8x128xbf16>
    %c0_1 = arith.constant 0 : index
    %c0_2 = arith.constant 0 : index
    %1 = vector.load %arg3[%c0_1, %c0_2] : memref<128x256xbf16, #tpu.memory_space<vmem>>, vector<128x256xbf16>
    %cst = arith.constant dense<0.000000e+00> : vector<8x256xf32>
    %2 = tpu.matmul %0, %1, %cst {dimension_numbers = #tpu.dot_dimension_numbers<[1], [0], [0], [1], [0, 0, 1, 1], [], []>} : vector<8x128xbf16>, vector<128x256xbf16>, vector<8x256xf32> -> vector<8x256xf32>
    %c0_3 = arith.constant 0 : index
    %c0_4 = arith.constant 0 : index
    %3 = vector.load %arg4[%c0_3, %c0_4] : memref<1x256xf32, #tpu.memory_space<vmem>>, vector<1x256xf32>
    %4 = vector.broadcast %3 : vector<1x256xf32> to vector<8x256xf32>
    %5 = arith.addf %2, %4 : vector<8x256xf32>
    %cst_5 = arith.constant 0.000000e+00 : f32
    %6 = vector.broadcast %cst_5 : f32 to vector<8x256xf32>
    %7 = arith.maximumf %5, %6 : vector<8x256xf32>
    %c0_6 = arith.constant 0 : index
    %c0_7 = arith.constant 0 : index
    %8 = vector.load %arg1[%c0_6, %c0_7] : memref<8x1536xbf16, #tpu.memory_space<vmem>>, vector<8x1536xbf16>
    %c0_8 = arith.constant 0 : index
    %c0_9 = arith.constant 0 : index
    %9 = vector.load %arg5[%c0_8, %c0_9] : memref<1536x256xbf16, #tpu.memory_space<vmem>>, vector<1536x256xbf16>
    %cst_10 = arith.constant dense<0.000000e+00> : vector<8x256xf32>
    %10 = tpu.matmul %8, %9, %cst_10 {dimension_numbers = #tpu.dot_dimension_numbers<[1], [0], [0], [1], [0, 0, 1, 1], [], []>} : vector<8x1536xbf16>, vector<1536x256xbf16>, vector<8x256xf32> -> vector<8x256xf32>
    %11 = arith.truncf %7 : vector<8x256xf32> to vector<8x256xbf16>
    %c0_11 = arith.constant 0 : index
    %c0_12 = arith.constant 0 : index
    %12 = vector.load %arg6[%c0_11, %c0_12] : memref<256x256xbf16, #tpu.memory_space<vmem>>, vector<256x256xbf16>
    %cst_13 = arith.constant dense<0.000000e+00> : vector<8x256xf32>
    %13 = tpu.matmul %11, %12, %cst_13 {dimension_numbers = #tpu.dot_dimension_numbers<[1], [0], [0], [1], [0, 0, 1, 1], [], []>} : vector<8x256xbf16>, vector<256x256xbf16>, vector<8x256xf32> -> vector<8x256xf32>
    %14 = arith.addf %10, %13 : vector<8x256xf32>
    %c0_14 = arith.constant 0 : index
    %c0_15 = arith.constant 0 : index
    %15 = vector.load %arg7[%c0_14, %c0_15] : memref<1x256xf32, #tpu.memory_space<vmem>>, vector<1x256xf32>
    %16 = vector.broadcast %15 : vector<1x256xf32> to vector<8x256xf32>
    %17 = arith.addf %14, %16 : vector<8x256xf32>
    %cst_16 = arith.constant 0.000000e+00 : f32
    %18 = vector.broadcast %cst_16 : f32 to vector<8x256xf32>
    %19 = arith.maximumf %17, %18 : vector<8x256xf32>
    %20 = arith.truncf %19 : vector<8x256xf32> to vector<8x256xbf16>
    %c0_17 = arith.constant 0 : index
    %c0_18 = arith.constant 0 : index
    %21 = vector.load %arg8[%c0_17, %c0_18] : memref<256x128xbf16, #tpu.memory_space<vmem>>, vector<256x128xbf16>
    %cst_19 = arith.constant dense<0.000000e+00> : vector<8x128xf32>
    %22 = tpu.matmul %20, %21, %cst_19 {dimension_numbers = #tpu.dot_dimension_numbers<[1], [0], [0], [1], [0, 0, 1, 1], [], []>} : vector<8x256xbf16>, vector<256x128xbf16>, vector<8x128xf32> -> vector<8x128xf32>
    %c0_20 = arith.constant 0 : index
    %c0_21 = arith.constant 0 : index
    %23 = vector.load %arg9[%c0_20, %c0_21] : memref<1x128xf32, #tpu.memory_space<vmem>>, vector<1x128xf32>
    %24 = vector.broadcast %23 : vector<1x128xf32> to vector<8x128xf32>
    %25 = arith.addf %22, %24 : vector<8x128xf32>
    %c0_22 = arith.constant 0 : index
    %c0_23 = arith.constant 0 : index
    %26 = vector.load %arg10[%c0_22, %c0_23] : memref<8x128xf32, #tpu.memory_space<vmem>>, vector<8x128xf32>
    tpu.vector_store %arg10[%c0_22, %c0_23], %25 {strides = array<i32>} : memref<8x128xf32, #tpu.memory_space<vmem>>, vector<8x128xf32>,
    return
  }
  func.func @transform_0(%arg0: i32) -> (i32, i32) {
    %c0_i32 = arith.constant 0 : i32
    %c0_i32_0 = arith.constant 0 : i32
    %c0_i32_1 = arith.constant 0 : i32
    return %c0_i32, %c0_i32_0 : i32, i32
  }
  func.func @transform_1(%arg0: i32) -> (i32, i32) {
    %c0_i32 = arith.constant 0 : i32
    %c0_i32_0 = arith.constant 0 : i32
    %c0_i32_1 = arith.constant 0 : i32
    return %c0_i32, %c0_i32_0 : i32, i32
  }
  func.func @transform_2(%arg0: i32) -> (i32, i32) {
    %c0_i32 = arith.constant 0 : i32
    %c0_i32_0 = arith.constant 0 : i32
    %c0_i32_1 = arith.constant 0 : i32
    return %c0_i32, %c0_i32_0 : i32, i32
  }
  func.func @transform_3(%arg0: i32) -> (i32, i32) {
    %c0_i32 = arith.constant 0 : i32
    %c0_i32_0 = arith.constant 0 : i32
    %c0_i32_1 = arith.constant 0 : i32
    return %c0_i32, %c0_i32_0 : i32, i32
  }
  func.func @transform_4(%arg0: i32) -> (i32, i32) {
    %c0_i32 = arith.constant 0 : i32
    %c0_i32_0 = arith.constant 0 : i32
    %c0_i32_1 = arith.constant 0 : i32
    return %c0_i32, %c0_i32_0 : i32, i32
  }
  func.func @transform_5(%arg0: i32) -> (i32, i32) {
    %c0_i32 = arith.constant 0 : i32
    %c0_i32_0 = arith.constant 0 : i32
    %c0_i32_1 = arith.constant 0 : i32
    return %c0_i32, %c0_i32_0 : i32, i32
  }
  func.func @transform_6(%arg0: i32) -> (i32, i32) {
    %c0_i32 = arith.constant 0 : i32
    %c0_i32_0 = arith.constant 0 : i32
    %c0_i32_1 = arith.constant 0 : i32
    return %c0_i32, %c0_i32_0 : i32, i32
  }
  func.func @transform_7(%arg0: i32) -> (i32, i32) {
    %c0_i32 = arith.constant 0 : i32
    %c0_i32_0 = arith.constant 0 : i32
    %c0_i32_1 = arith.constant 0 : i32
    return %c0_i32, %c0_i32_0 : i32, i32
  }
  func.func @transform_8(%arg0: i32) -> (i32, i32) {
    %c0_i32 = arith.constant 0 : i32
    %c0_i32_0 = arith.constant 0 : i32
    %c0_i32_1 = arith.constant 0 : i32
    return %c0_i32, %c0_i32_0 : i32, i32
  }
  func.func @transform_9(%arg0: i32) -> (i32, i32) {
    %c0_i32 = arith.constant 0 : i32
    %c0_i32_0 = arith.constant 0 : i32
    %c0_i32_1 = arith.constant 0 : i32
    return %c0_i32, %c0_i32_0 : i32, i32
  }
}

module attributes {stable_mosaic.version = 11 : i64} {
  func.func @_pathway_kernel(%arg0: i32, %arg1: i32, %arg2: memref<6xi32, #tpu.memory_space<smem>>, %arg3: memref<6xi32, #tpu.memory_space<smem>>, %arg4: memref<1x8x256xbf16, #tpu.memory_space<vmem>>, %arg5: memref<1x256x256xbf16, #tpu.memory_space<vmem>>, %arg6: memref<1x1x256xf32, #tpu.memory_space<vmem>>, %arg7: memref<8x256xbf16, #tpu.memory_space<vmem>>, %arg8: memref<8x256xf32, #tpu.memory_space<vmem>>) attributes {dimension_semantics = [#tpu.dimension_semantics<parallel>, #tpu.dimension_semantics<arbitrary>], iteration_bounds = array<i64: 6, 1>, scalar_prefetch = 2 : i64, scratch_operands = 1 : i64, tpu.core_type = #tpu.core_type<tc>, window_params = [{transform_indices = @transform_0, window_bounds = array<i64: 1, 8, 256>}, {transform_indices = @transform_1, window_bounds = array<i64: 1, 256, 256>}, {transform_indices = @transform_2, window_bounds = array<i64: 1, 1, 256>}, {transform_indices = @transform_3, window_bounds = array<i64: 8, 256>}]} {
    %c0_i32 = arith.constant 0 : i32
    %0 = arith.cmpi eq, %arg1, %c0_i32 : i32
    %1 = arith.extui %0 : i1 to i32
    %c0_i32_0 = arith.constant 0 : i32
    %2 = arith.cmpi ne, %1, %c0_i32_0 : i32
    scf.if %2 {
      %cst_12 = arith.constant 0.000000e+00 : f32
      %14 = vector.broadcast %cst_12 : f32 to vector<8x256xf32>
      %c0_13 = arith.constant 0 : index
      %c0_14 = arith.constant 0 : index
      %15 = vector.load %arg8[%c0_13, %c0_14] : memref<8x256xf32, #tpu.memory_space<vmem>>, vector<8x256xf32>
      tpu.vector_store %arg8[%c0_13, %c0_14], %14 {strides = array<i32>} : memref<8x256xf32, #tpu.memory_space<vmem>>, vector<8x256xf32>,
    } else {
    }
    %c0 = arith.constant 0 : index
    %c0_1 = arith.constant 0 : index
    %3 = vector.load %arg8[%c0, %c0_1] : memref<8x256xf32, #tpu.memory_space<vmem>>, vector<8x256xf32>
    %c0_2 = arith.constant 0 : index
    %c0_3 = arith.constant 0 : index
    %c0_4 = arith.constant 0 : index
    %4 = vector.load %arg4[%c0_2, %c0_3, %c0_4] : memref<1x8x256xbf16, #tpu.memory_space<vmem>>, vector<1x8x256xbf16>
    %5 = vector.shape_cast %4 : vector<1x8x256xbf16> to vector<8x256xbf16>
    %c0_5 = arith.constant 0 : index
    %c0_6 = arith.constant 0 : index
    %c0_7 = arith.constant 0 : index
    %6 = vector.load %arg5[%c0_5, %c0_6, %c0_7] : memref<1x256x256xbf16, #tpu.memory_space<vmem>>, vector<1x256x256xbf16>
    %7 = vector.shape_cast %6 : vector<1x256x256xbf16> to vector<256x256xbf16>
    %cst = arith.constant dense<0.000000e+00> : vector<8x256xf32>
    %8 = tpu.matmul %5, %7, %cst {dimension_numbers = #tpu.dot_dimension_numbers<[1], [0], [0], [1], [0, 0, 1, 1], [], []>} : vector<8x256xbf16>, vector<256x256xbf16>, vector<8x256xf32> -> vector<8x256xf32>
    %9 = arith.addf %3, %8 : vector<8x256xf32>
    %c0_8 = arith.constant 0 : index
    %c0_9 = arith.constant 0 : index
    %10 = vector.load %arg8[%c0_8, %c0_9] : memref<8x256xf32, #tpu.memory_space<vmem>>, vector<8x256xf32>
    tpu.vector_store %arg8[%c0_8, %c0_9], %9 {strides = array<i32>} : memref<8x256xf32, #tpu.memory_space<vmem>>, vector<8x256xf32>,
    %c0_i32_10 = arith.constant 0 : i32
    %11 = arith.cmpi eq, %arg1, %c0_i32_10 : i32
    %12 = arith.extui %11 : i1 to i32
    %c0_i32_11 = arith.constant 0 : i32
    %13 = arith.cmpi ne, %12, %c0_i32_11 : i32
    scf.if %13 {
      %c0_12 = arith.constant 0 : index
      %c0_13 = arith.constant 0 : index
      %14 = vector.load %arg8[%c0_12, %c0_13] : memref<8x256xf32, #tpu.memory_space<vmem>>, vector<8x256xf32>
      %c0_14 = arith.constant 0 : index
      %c0_15 = arith.constant 0 : index
      %c0_16 = arith.constant 0 : index
      %15 = vector.load %arg6[%c0_14, %c0_15, %c0_16] : memref<1x1x256xf32, #tpu.memory_space<vmem>>, vector<1x1x256xf32>
      %16 = vector.shape_cast %15 : vector<1x1x256xf32> to vector<1x256xf32>
      %17 = vector.broadcast %16 : vector<1x256xf32> to vector<8x256xf32>
      %18 = arith.addf %14, %17 : vector<8x256xf32>
      %cst_17 = arith.constant 0.000000e+00 : f32
      %19 = vector.broadcast %cst_17 : f32 to vector<8x256xf32>
      %20 = arith.maximumf %18, %19 : vector<8x256xf32>
      %21 = arith.truncf %20 : vector<8x256xf32> to vector<8x256xbf16>
      %c0_18 = arith.constant 0 : index
      %c0_19 = arith.constant 0 : index
      %22 = vector.load %arg7[%c0_18, %c0_19] : memref<8x256xbf16, #tpu.memory_space<vmem>>, vector<8x256xbf16>
      tpu.vector_store %arg7[%c0_18, %c0_19], %21 {strides = array<i32>} : memref<8x256xbf16, #tpu.memory_space<vmem>>, vector<8x256xbf16>,
    } else {
    }
    return
  }
  func.func @transform_0(%arg0: i32, %arg1: i32, %arg2: memref<6xi32, #tpu.memory_space<smem>>, %arg3: memref<6xi32, #tpu.memory_space<smem>>) -> (i32, i32, i32) {
    %0 = arith.index_cast %arg0 : i32 to index
    %1 = memref.load %arg2[%0] : memref<6xi32, #tpu.memory_space<smem>>
    %c0_i32 = arith.constant 0 : i32
    %c0_i32_0 = arith.constant 0 : i32
    return %1, %c0_i32, %arg1 : i32, i32, i32
  }
  func.func @transform_1(%arg0: i32, %arg1: i32, %arg2: memref<6xi32, #tpu.memory_space<smem>>, %arg3: memref<6xi32, #tpu.memory_space<smem>>) -> (i32, i32, i32) {
    %0 = arith.index_cast %arg0 : i32 to index
    %1 = memref.load %arg3[%0] : memref<6xi32, #tpu.memory_space<smem>>
    %c0_i32 = arith.constant 0 : i32
    %c0_i32_0 = arith.constant 0 : i32
    return %1, %arg1, %c0_i32 : i32, i32, i32
  }
  func.func @transform_2(%arg0: i32, %arg1: i32, %arg2: memref<6xi32, #tpu.memory_space<smem>>, %arg3: memref<6xi32, #tpu.memory_space<smem>>) -> (i32, i32, i32) {
    %0 = arith.index_cast %arg0 : i32 to index
    %1 = memref.load %arg3[%0] : memref<6xi32, #tpu.memory_space<smem>>
    %c0_i32 = arith.constant 0 : i32
    %c0_i32_0 = arith.constant 0 : i32
    %c0_i32_1 = arith.constant 0 : i32
    return %1, %c0_i32, %c0_i32_0 : i32, i32, i32
  }
  func.func @transform_3(%arg0: i32, %arg1: i32, %arg2: memref<6xi32, #tpu.memory_space<smem>>, %arg3: memref<6xi32, #tpu.memory_space<smem>>) -> (i32, i32) {
    %c0_i32 = arith.constant 0 : i32
    %c0_i32_0 = arith.constant 0 : i32
    return %c0_i32, %arg0 : i32, i32
  }
}

module attributes {stable_mosaic.version = 11 : i64} {
  func.func @_head_kernel(%arg0: i32, %arg1: memref<8x1536xbf16, #tpu.memory_space<vmem>>, %arg2: memref<8x128xbf16, #tpu.memory_space<vmem>>, %arg3: memref<128x256xbf16, #tpu.memory_space<vmem>>, %arg4: memref<1x256xf32, #tpu.memory_space<vmem>>, %arg5: memref<1536x256xbf16, #tpu.memory_space<vmem>>, %arg6: memref<256x256xbf16, #tpu.memory_space<vmem>>, %arg7: memref<1x256xf32, #tpu.memory_space<vmem>>, %arg8: memref<256x128xbf16, #tpu.memory_space<vmem>>, %arg9: memref<1x128xf32, #tpu.memory_space<vmem>>, %arg10: memref<8x128xf32, #tpu.memory_space<vmem>>) attributes {dimension_semantics = [#tpu.dimension_semantics<arbitrary>], iteration_bounds = array<i64: 1>, scalar_prefetch = 0 : i64, scratch_operands = 0 : i64, tpu.core_type = #tpu.core_type<tc>, window_params = [{pipeline_mode = #tpu.pipeline_mode<synchronous>, transform_indices = @transform_0, window_bounds = array<i64: 8, 1536>}, {pipeline_mode = #tpu.pipeline_mode<synchronous>, transform_indices = @transform_1, window_bounds = array<i64: 8, 128>}, {pipeline_mode = #tpu.pipeline_mode<synchronous>, transform_indices = @transform_2, window_bounds = array<i64: 128, 256>}, {pipeline_mode = #tpu.pipeline_mode<synchronous>, transform_indices = @transform_3, window_bounds = array<i64: 1, 256>}, {pipeline_mode = #tpu.pipeline_mode<synchronous>, transform_indices = @transform_4, window_bounds = array<i64: 1536, 256>}, {pipeline_mode = #tpu.pipeline_mode<synchronous>, transform_indices = @transform_5, window_bounds = array<i64: 256, 256>}, {pipeline_mode = #tpu.pipeline_mode<synchronous>, transform_indices = @transform_6, window_bounds = array<i64: 1, 256>}, {pipeline_mode = #tpu.pipeline_mode<synchronous>, transform_indices = @transform_7, window_bounds = array<i64: 256, 128>}, {pipeline_mode = #tpu.pipeline_mode<synchronous>, transform_indices = @transform_8, window_bounds = array<i64: 1, 128>}, {pipeline_mode = #tpu.pipeline_mode<synchronous>, transform_indices = @transform_9, window_bounds = array<i64: 8, 128>}]} {
    %c0 = arith.constant 0 : index
    %c0_0 = arith.constant 0 : index
    %0 = vector.load %arg2[%c0, %c0_0] : memref<8x128xbf16, #tpu.memory_space<vmem>>, vector<8x128xbf16>
    %c0_1 = arith.constant 0 : index
    %c0_2 = arith.constant 0 : index
    %1 = vector.load %arg3[%c0_1, %c0_2] : memref<128x256xbf16, #tpu.memory_space<vmem>>, vector<128x256xbf16>
    %cst = arith.constant dense<0.000000e+00> : vector<8x256xf32>
    %2 = tpu.matmul %0, %1, %cst {dimension_numbers = #tpu.dot_dimension_numbers<[1], [0], [0], [1], [0, 0, 1, 1], [], []>} : vector<8x128xbf16>, vector<128x256xbf16>, vector<8x256xf32> -> vector<8x256xf32>
    %c0_3 = arith.constant 0 : index
    %c0_4 = arith.constant 0 : index
    %3 = vector.load %arg4[%c0_3, %c0_4] : memref<1x256xf32, #tpu.memory_space<vmem>>, vector<1x256xf32>
    %4 = vector.broadcast %3 : vector<1x256xf32> to vector<8x256xf32>
    %5 = arith.addf %2, %4 : vector<8x256xf32>
    %cst_5 = arith.constant 0.000000e+00 : f32
    %6 = vector.broadcast %cst_5 : f32 to vector<8x256xf32>
    %7 = arith.maximumf %5, %6 : vector<8x256xf32>
    %c0_6 = arith.constant 0 : index
    %c0_7 = arith.constant 0 : index
    %8 = vector.load %arg1[%c0_6, %c0_7] : memref<8x1536xbf16, #tpu.memory_space<vmem>>, vector<8x1536xbf16>
    %c0_8 = arith.constant 0 : index
    %c0_9 = arith.constant 0 : index
    %9 = vector.load %arg5[%c0_8, %c0_9] : memref<1536x256xbf16, #tpu.memory_space<vmem>>, vector<1536x256xbf16>
    %cst_10 = arith.constant dense<0.000000e+00> : vector<8x256xf32>
    %10 = tpu.matmul %8, %9, %cst_10 {dimension_numbers = #tpu.dot_dimension_numbers<[1], [0], [0], [1], [0, 0, 1, 1], [], []>} : vector<8x1536xbf16>, vector<1536x256xbf16>, vector<8x256xf32> -> vector<8x256xf32>
    %11 = arith.truncf %7 : vector<8x256xf32> to vector<8x256xbf16>
    %c0_11 = arith.constant 0 : index
    %c0_12 = arith.constant 0 : index
    %12 = vector.load %arg6[%c0_11, %c0_12] : memref<256x256xbf16, #tpu.memory_space<vmem>>, vector<256x256xbf16>
    %cst_13 = arith.constant dense<0.000000e+00> : vector<8x256xf32>
    %13 = tpu.matmul %11, %12, %cst_13 {dimension_numbers = #tpu.dot_dimension_numbers<[1], [0], [0], [1], [0, 0, 1, 1], [], []>} : vector<8x256xbf16>, vector<256x256xbf16>, vector<8x256xf32> -> vector<8x256xf32>
    %14 = arith.addf %10, %13 : vector<8x256xf32>
    %c0_14 = arith.constant 0 : index
    %c0_15 = arith.constant 0 : index
    %15 = vector.load %arg7[%c0_14, %c0_15] : memref<1x256xf32, #tpu.memory_space<vmem>>, vector<1x256xf32>
    %16 = vector.broadcast %15 : vector<1x256xf32> to vector<8x256xf32>
    %17 = arith.addf %14, %16 : vector<8x256xf32>
    %cst_16 = arith.constant 0.000000e+00 : f32
    %18 = vector.broadcast %cst_16 : f32 to vector<8x256xf32>
    %19 = arith.maximumf %17, %18 : vector<8x256xf32>
    %20 = arith.truncf %19 : vector<8x256xf32> to vector<8x256xbf16>
    %c0_17 = arith.constant 0 : index
    %c0_18 = arith.constant 0 : index
    %21 = vector.load %arg8[%c0_17, %c0_18] : memref<256x128xbf16, #tpu.memory_space<vmem>>, vector<256x128xbf16>
    %cst_19 = arith.constant dense<0.000000e+00> : vector<8x128xf32>
    %22 = tpu.matmul %20, %21, %cst_19 {dimension_numbers = #tpu.dot_dimension_numbers<[1], [0], [0], [1], [0, 0, 1, 1], [], []>} : vector<8x256xbf16>, vector<256x128xbf16>, vector<8x128xf32> -> vector<8x128xf32>
    %c0_20 = arith.constant 0 : index
    %c0_21 = arith.constant 0 : index
    %23 = vector.load %arg9[%c0_20, %c0_21] : memref<1x128xf32, #tpu.memory_space<vmem>>, vector<1x128xf32>
    %24 = vector.broadcast %23 : vector<1x128xf32> to vector<8x128xf32>
    %25 = arith.addf %22, %24 : vector<8x128xf32>
    %c0_22 = arith.constant 0 : index
    %c0_23 = arith.constant 0 : index
    %26 = vector.load %arg10[%c0_22, %c0_23] : memref<8x128xf32, #tpu.memory_space<vmem>>, vector<8x128xf32>
    tpu.vector_store %arg10[%c0_22, %c0_23], %25 {strides = array<i32>} : memref<8x128xf32, #tpu.memory_space<vmem>>, vector<8x128xf32>,
    return
  }
  func.func @transform_0(%arg0: i32) -> (i32, i32) {
    %c0_i32 = arith.constant 0 : i32
    %c0_i32_0 = arith.constant 0 : i32
    %c0_i32_1 = arith.constant 0 : i32
    return %c0_i32, %c0_i32_0 : i32, i32
  }
  func.func @transform_1(%arg0: i32) -> (i32, i32) {
    %c0_i32 = arith.constant 0 : i32
    %c0_i32_0 = arith.constant 0 : i32
    %c0_i32_1 = arith.constant 0 : i32
    return %c0_i32, %c0_i32_0 : i32, i32
  }
  func.func @transform_2(%arg0: i32) -> (i32, i32) {
    %c0_i32 = arith.constant 0 : i32
    %c0_i32_0 = arith.constant 0 : i32
    %c0_i32_1 = arith.constant 0 : i32
    return %c0_i32, %c0_i32_0 : i32, i32
  }
  func.func @transform_3(%arg0: i32) -> (i32, i32) {
    %c0_i32 = arith.constant 0 : i32
    %c0_i32_0 = arith.constant 0 : i32
    %c0_i32_1 = arith.constant 0 : i32
    return %c0_i32, %c0_i32_0 : i32, i32
  }
  func.func @transform_4(%arg0: i32) -> (i32, i32) {
    %c0_i32 = arith.constant 0 : i32
    %c0_i32_0 = arith.constant 0 : i32
    %c0_i32_1 = arith.constant 0 : i32
    return %c0_i32, %c0_i32_0 : i32, i32
  }
  func.func @transform_5(%arg0: i32) -> (i32, i32) {
    %c0_i32 = arith.constant 0 : i32
    %c0_i32_0 = arith.constant 0 : i32
    %c0_i32_1 = arith.constant 0 : i32
    return %c0_i32, %c0_i32_0 : i32, i32
  }
  func.func @transform_6(%arg0: i32) -> (i32, i32) {
    %c0_i32 = arith.constant 0 : i32
    %c0_i32_0 = arith.constant 0 : i32
    %c0_i32_1 = arith.constant 0 : i32
    return %c0_i32, %c0_i32_0 : i32, i32
  }
  func.func @transform_7(%arg0: i32) -> (i32, i32) {
    %c0_i32 = arith.constant 0 : i32
    %c0_i32_0 = arith.constant 0 : i32
    %c0_i32_1 = arith.constant 0 : i32
    return %c0_i32, %c0_i32_0 : i32, i32
  }
  func.func @transform_8(%arg0: i32) -> (i32, i32) {
    %c0_i32 = arith.constant 0 : i32
    %c0_i32_0 = arith.constant 0 : i32
    %c0_i32_1 = arith.constant 0 : i32
    return %c0_i32, %c0_i32_0 : i32, i32
  }
  func.func @transform_9(%arg0: i32) -> (i32, i32) {
    %c0_i32 = arith.constant 0 : i32
    %c0_i32_0 = arith.constant 0 : i32
    %c0_i32_1 = arith.constant 0 : i32
    return %c0_i32, %c0_i32_0 : i32, i32
  }
}

</mosaic_0001>

<llo_original>
// kernel: simple_view_forward.2
$region0: #{simple_view_forward.2}
  #allocation0 [shape = 'u32[]', space=smem, size = 0x4, offset = 0x4, fixed_abs, tag = 'smem constant byte address 0x4 - core index']
  #allocation1 [shape = 'u32[144,128]{1,0:T(1,128)}', space=vmem, size = 0x12000, scoped, tag = 'internal scratch']
  #allocation2 [shape = 'f32[8,256]{1,0:T(8,128)}', space=vmem, size = 0x2000, scoped, tag = 'scratch operand']
  #allocation3 [shape = 's32[1]{0}', space=sflag, size = 0x4, scoped, tag = 'scoped memory for simple_view_forward.2']
  #allocation4 [shape = 'u8[512]{0}', space=smem, size = 0x200, scoped, tag = 'prefetched SMEM operand 0']
  #allocation5 [shape = 'u8[512]{0}', space=smem, size = 0x200, scoped, tag = 'prefetched SMEM operand 1']
  %s0 = inlined_call_operand.vmem [shape: s32[6], index: 0, kind: input, shape index: {}]
  %s1 = inlined_call_operand.vmem [shape: s32[6], index: 1, kind: input, shape index: {}]
  %s2 = inlined_call_operand.vmem [shape: bf16[6,8,256], index: 2, kind: input, shape index: {}]
  %s3 = inlined_call_operand.hbm [shape: bf16[3,256,256], index: 3, kind: input, shape index: {}]
  %s4 = inlined_call_operand.vmem [shape: f32[3,1,256], index: 4, kind: input, shape index: {}]
  %s5 = inlined_call_operand.vmem [shape: bf16[8,1536], index: 5, kind: output, shape index: {}]
  %s6 = sld [smem:[#allocation0]]
  $region57: #{simple_view_forward.2} parent=0
    _
  %s8 = ssub.s32 1, %s6
  %s9 = scalar_select 0, %s8, %s6
  %s10 = sshll.u32 %s0, 4
  %s11 = int_to_ptr.vmem [resolvable:$true] %s10
  %13 = dma.vmem_to_smem %s11, 16, [#allocation4], [#allocation3]
  %s14 = sshll.u32 %s1, 4
  %s15 = int_to_ptr.vmem [resolvable:$true] %s14
  %17 = dma.vmem_to_smem %s15, 16, [#allocation5], [#allocation3]
  %18 = dma.done [#allocation3], 32
  %19 = sfence
  $region1: #{simple_view_forward.2} parent=0
    #allocation6 [shape = 'u8[262144]{0}', space=vmem, size = 0x40000, scoped, tag = 'input window, operand 3']
    #allocation7 [shape = 's32[2]{0}', space=sflag, size = 0x8, scoped, tag = 'scoped memory for simple_view_forward.2']
    %20 = vsyncpa [#allocation7], 0
    %s21 = scalar_lea.sflag [#allocation7], 1
    %22 = vsyncpa %s21, 0
    loop: start=0, step=1, limit=8
    $region2: #{simple_view_forward.2} parent=1 // loop_pre_header
      _
    $region3: #{simple_view_forward.2} parent=1 // loop_header
      %s24 = sphi 0, %s28
      %p25 = scmp.ge.s32.totalorder %s24, 8
      %s31 = sphi 0, %s43
      %s32 = sphi 0, %s39
      %s33 = sphi 0, %s31
      %s34 = sphi 0, %s32
      %s35 = sphi 0, %s33
      %s36 = sphi 0, %s34
      %s50 = sphi 0, %s52
      %s53 = sphi 0, %s50
      %s54 = sphi 0, %s53
      %s70 = sphi 0, %s54
      %s80 = sphi 0, %s82
      %s83 = sphi 0, %s80
      %s84 = sphi 0, %s83
      %s100 = sphi 0, %s84
      %s108 = sphi 0, %s110
      %s111 = sphi 0, %s108
      %s112 = sphi 0, %s111
      %s128 = sphi 0, %s112
      %s134 = sphi 0, %s136
      %s137 = sphi 0, %s134
      %s138 = sphi 0, %s137
      %s154 = sphi 0, %s138
    $region4: #{simple_view_forward.2} parent=1 // loop_header_branch
      %27 = sbr.rel (%p25) target = $region8
    $region5: #{simple_view_forward.2} parent=1 // loop_body
      %s29 = ssub.s32 %s24, 1
      %s30 = ssub.s32 %s24, 2
      %s37 = sadd.s32 1, %s32
      %p38 = scmp.ge.s32.totalorder %s37, 1
      %s39 = scalar_select %p38, 0, %s37
      %s40 = sadd.s32 1, %s31
      %s41 = scalar_select %p38, %s40, %s31
      %p42 = scmp.ge.s32.totalorder %s41, 6
      %s43 = scalar_select %p42, 0, %s41
      %s44 = sld [smem:[#allocation4 + %s31]]
      %s45 = sld [smem:[#allocation4 + %s43]]
      %s46 = ssub.s32 %s44, %s45
      %s47 = ssub.s32 %s32, %s39
      %s48 = sor.u32 %s46, %s47
      %p49 = scmp.eq.s32.totalorder %s48, 0
      %s51 = sadd.s32 %s50, 1
      %s52 = scalar_select %p49, %s50, %s51
      %p55 = pneg %p49
      %p56 = scmp.eq.s32.totalorder %s24, 5
      %p57 = por %p55, %p56
      %p58 = scmp.ne.s32.totalorder %s50, %s53
      %p59 = scmp.eq.s32.totalorder %s24, 0
      %p60 = por %p58, %p59
      %p61 = scmp.ne.s32.totalorder %s50, %s53
      %p62 = scmp.eq.s32.totalorder %s29, 5
      %p63 = por %p61, %p62
      %p64 = scmp.ne.s32.totalorder %s53, %s54
      %p65 = scmp.eq.s32.totalorder %s29, 0
      %p66 = por %p64, %p65
      %p67 = scmp.ne.s32.totalorder %s53, %s54
      %p68 = scmp.eq.s32.totalorder %s30, 5
      %p69 = por %p67, %p68
      %p71 = scmp.ne.s32.totalorder %s54, %s70
      %p72 = scmp.eq.s32.totalorder %s30, 0
      %p73 = por %p71, %p72
      %s74 = sld [smem:[#allocation5 + %s31]]
      %s75 = sld [smem:[#allocation5 + %s43]]
      %s76 = ssub.s32 %s74, %s75
      %s77 = ssub.s32 %s32, %s39
      %s78 = sor.u32 %s76, %s77
      %p79 = scmp.eq.s32.totalorder %s78, 0
      %s81 = sadd.s32 %s80, 1
      %s82 = scalar_select %p79, %s80, %s81
      %p85 = pneg %p79
      %p86 = scmp.eq.s32.totalorder %s24, 5
      %p87 = por %p85, %p86
      %p88 = scmp.ne.s32.totalorder %s80, %s83
      %p89 = scmp.eq.s32.totalorder %s24, 0
      %p90 = por %p88, %p89
      %p91 = scmp.ne.s32.totalorder %s80, %s83
      %p92 = scmp.eq.s32.totalorder %s29, 5
      %p93 = por %p91, %p92
      %p94 = scmp.ne.s32.totalorder %s83, %s84
      %p95 = scmp.eq.s32.totalorder %s29, 0
      %p96 = por %p94, %p95
      %p97 = scmp.ne.s32.totalorder %s83, %s84
      %p98 = scmp.eq.s32.totalorder %s30, 5
      %p99 = por %p97, %p98
      %p101 = scmp.ne.s32.totalorder %s84, %s100
      %p102 = scmp.eq.s32.totalorder %s30, 0
      %p103 = por %p101, %p102
      %s104 = sld [smem:[#allocation5 + %s31]]
      %s105 = sld [smem:[#allocation5 + %s43]]
      %s106 = ssub.s32 %s104, %s105
      %p107 = scmp.eq.s32.totalorder %s106, 0
      %s109 = sadd.s32 %s108, 1
      %s110 = scalar_select %p107, %s108, %s109
      %p113 = pneg %p107
      %p114 = scmp.eq.s32.totalorder %s24, 5
      %p115 = por %p113, %p114
      %p116 = scmp.ne.s32.totalorder %s108, %s111
      %p117 = scmp.eq.s32.totalorder %s24, 0
      %p118 = por %p116, %p117
      %p119 = scmp.ne.s32.totalorder %s108, %s111
      %p120 = scmp.eq.s32.totalorder %s29, 5
      %p121 = por %p119, %p120
      %p122 = scmp.ne.s32.totalorder %s111, %s112
      %p123 = scmp.eq.s32.totalorder %s29, 0
      %p124 = por %p122, %p123
      %p125 = scmp.ne.s32.totalorder %s111, %s112
      %p126 = scmp.eq.s32.totalorder %s30, 5
      %p127 = por %p125, %p126
      %p129 = scmp.ne.s32.totalorder %s112, %s128
      %p130 = scmp.eq.s32.totalorder %s30, 0
      %p131 = por %p129, %p130
      %s132 = ssub.s32 %s31, %s43
      %p133 = scmp.eq.s32.totalorder %s132, 0
      %s135 = sadd.s32 %s134, 1
      %s136 = scalar_select %p133, %s134, %s135
      %p139 = pneg %p133
      %p140 = scmp.eq.s32.totalorder %s24, 5
      %p141 = por %p139, %p140
      %p142 = scmp.ne.s32.totalorder %s134, %s137
      %p143 = scmp.eq.s32.totalorder %s24, 0
      %p144 = por %p142, %p143
      %p145 = scmp.ne.s32.totalorder %s134, %s137
      %p146 = scmp.eq.s32.totalorder %s29, 5
      %p147 = por %p145, %p146
      %p148 = scmp.ne.s32.totalorder %s137, %s138
      %p149 = scmp.eq.s32.totalorder %s29, 0
      %p150 = por %p148, %p149
      %p151 = scmp.ne.s32.totalorder %s137, %s138
      %p152 = scmp.eq.s32.totalorder %s30, 5
      %p153 = por %p151, %p152
      %p155 = scmp.ne.s32.totalorder %s138, %s154
      %p156 = scmp.eq.s32.totalorder %s30, 0
      %p157 = por %p155, %p156
      %p158 = scmp.le.s32.totalorder 1, %s24
      %p159 = scmp.lt.s32.totalorder %s24, 7
      %p160 = pnand %p158, %p159
      %p161 = pneg %p160
      // Predicated region
      $region9: #{simple_view_forward.2} parent=5 // pred_check
        _
      $region10: #{simple_view_forward.2} parent=5 // pred_check_branch
        %163 = sbr.rel (%p160) target = $region12
      $region11: #{simple_view_forward.2} parent=5 // pred_region
        %s164 = ssub.s32 %s24, 1
      $region12: #{simple_view_forward.2} parent=5 // pred_fallthru
        _
      %p165 = scmp.lt.s32.totalorder %s24, 6
      // Predicated region
      $region13: #{simple_view_forward.2} parent=5 // pred_check
        %p166 = pneg %p165
      $region14: #{simple_view_forward.2} parent=5 // pred_check_branch
        %168 = sbr.rel (%p166) target = $region16
      $region15: #{simple_view_forward.2} parent=5 // pred_region
        // Predicated region
        $region17: #{simple_view_forward.2} parent=15 // pred_check
          %p169 = pneg %p60
        $region18: #{simple_view_forward.2} parent=15 // pred_check_branch
          %171 = sbr.rel (%p169) target = $region20
        $region19: #{simple_view_forward.2} parent=15 // pred_region
          %s172 = sld [smem:[#allocation4 + %s31]]
          %s173 = smul.u32 2, %s32
          %p174 = scmp.lt.s32.totalorder %s172, 5
          %s175 = scalar_select %p174, %s172, 5
          %p176 = scmp.lt.s32.totalorder %s173, 1
          %s177 = scalar_select %p176, %s173, 1
          %s178 = smul.addr %s175, 2
          %s179 = sadd.s32 %s177, %s178
          %s180 = smul.addr %s179, 4
          %s181 = scalar_lea.vmem %s2, %s180
          %s182 = sld [smem:[#allocation4 + %s31]]
          %s183 = smul.u32 2, %s32
        $region20: #{simple_view_forward.2} parent=15 // pred_fallthru
          _
        // Predicated region
        $region21: #{simple_view_forward.2} parent=15 // pred_check
          %p184 = pneg %p90
        $region22: #{simple_view_forward.2} parent=15 // pred_check_branch
          %186 = sbr.rel (%p184) target = $region24
        $region23: #{simple_view_forward.2} parent=15 // pred_region
          %s187 = sand.u32 %s80, 1
          %s188 = scalar_lea.sflag [#allocation7], %s187
          %s189 = sand.u32 %s80, 1
          %s190 = smul.addr %s189, 256
          %s191 = scalar_lea.vmem [#allocation6], %s190
          %s192 = sld [smem:[#allocation5 + %s31]]
          %s193 = smul.u32 32, %s32
          %s195 = ssub.s32 4096, 4096
          %196 = vsyncadd %s188, %s195
          %s197 = smul.addr %s193, 2
          %s198 = smul.addr %s192, 64
          %s199 = sadd.s32 %s197, %s198
          %s200 = smul.addr %s199, 64
          %s201 = scalar_lea.hbm %s3, %s200
          %s202 = sshll.u32 %s191, 4
          %s203 = int_to_ptr.vmem [resolvable:$true] %s202
          %208 = dma.hbm_to_vmem [thread:$0]  %s201, 4096, %s203, %s188, 128, 128, 8
        $region24: #{simple_view_forward.2} parent=15 // pred_fallthru
          _
        // Predicated region
        $region25: #{simple_view_forward.2} parent=15 // pred_check
          %p209 = pneg %p118
        $region26: #{simple_view_forward.2} parent=15 // pred_check_branch
          %211 = sbr.rel (%p209) target = $region28
        $region27: #{simple_view_forward.2} parent=15 // pred_region
          %s212 = sld [smem:[#allocation5 + %s31]]
          %p213 = scmp.lt.s32.totalorder %s212, 2
          %s214 = scalar_select %p213, %s212, 2
          %s215 = smul.addr %s214, 2
          %s216 = scalar_lea.vmem %s4, %s215
          %s217 = sld [smem:[#allocation5 + %s31]]
        $region28: #{simple_view_forward.2} parent=15 // pred_fallthru
          _
      $region16: #{simple_view_forward.2} parent=5 // pred_fallthru
        _
      %p218 = scmp.le.s32.totalorder 1, %s24
      %p219 = scmp.lt.s32.totalorder %s24, 7
      %p220 = pnand %p218, %p219
      %p221 = pneg %p220
      // Predicated region
      $region29: #{simple_view_forward.2} parent=5 // pred_check
        _
      $region30: #{simple_view_forward.2} parent=5 // pred_check_branch
        %223 = sbr.rel (%p220) target = $region32
      $region31: #{simple_view_forward.2} parent=5 // pred_region
        %s224 = ssub.s32 %s24, 1
        %s225 = sand.u32 %s83, 1
        %s226 = scalar_lea.sflag [#allocation7], %s225
        %s227 = sand.u32 %s83, 1
        %s228 = smul.addr %s227, 256
        %s229 = scalar_lea.vmem [#allocation6], %s228
        // Predicated region
        $region33: #{simple_view_forward.2} parent=31 // pred_check
          %p230 = pneg %p96
        $region34: #{simple_view_forward.2} parent=31 // pred_check_branch
          %232 = sbr.rel (%p230) target = $region36
        $region35: #{simple_view_forward.2} parent=31 // pred_region
          %233 = dma.done %s226, 4096
        $region36: #{simple_view_forward.2} parent=31 // pred_fallthru
          _
        %s234 = sld [smem:[#allocation4 + %s33]]
        %s235 = smul.u32 2, %s34
        %p236 = scmp.lt.s32.totalorder %s234, 5
        %s237 = scalar_select %p236, %s234, 5
        %p238 = scmp.lt.s32.totalorder %s235, 1
        %s239 = scalar_select %p238, %s235, 1
        %s240 = smul.addr %s237, 2
        %s241 = sadd.s32 %s239, %s240
        %s242 = smul.addr %s241, 4
        %s243 = scalar_lea.vmem %s2, %s242
        %p244 = pneg %p66
        %p245 = pneg %p63
        %s246 = sand.u32 %s83, 1
        %s247 = scalar_lea.sflag [#allocation7], %s246
        %s248 = sand.u32 %s83, 1
        %s249 = smul.addr %s248, 256
        %s250 = scalar_lea.vmem [#allocation6], %s249
        %p251 = pneg %p96
        %p252 = pneg %p93
        %s253 = sld [smem:[#allocation5 + %s33]]
        %p254 = scmp.lt.s32.totalorder %s253, 2
        %s255 = scalar_select %p254, %s253, 2
        %s256 = smul.addr %s255, 2
        %s257 = scalar_lea.vmem %s4, %s256
        %p258 = pneg %p124
        %p259 = pneg %p121
        %p260 = pneg %p150
        %p261 = pneg %p147
        %s262 = smul.u32 2, %s33
        %p263 = scmp.lt.s32.totalorder %s262, 11
        %s264 = scalar_select %p263, %s262, 11
        %s265 = smul.addr %s264, 4
        %s266 = scalar_lea.vmem %s5, %s265
        %s267 = sld [smem:[#allocation4 + %s33]]
        %s268 = smul.u32 2, %s34
        %p269 = scmp.lt.s32.totalorder %s267, 5
        %s270 = scalar_select %p269, %s267, 5
        %p271 = scmp.lt.s32.totalorder %s268, 1
        %s272 = scalar_select %p271, %s268, 1
        %s273 = smul.addr %s270, 2
        %s274 = sadd.s32 %s272, %s273
        %s275 = smul.addr %s274, 4
        %s276 = scalar_lea.vmem %s2, %s275
        %s277 = sld [smem:[#allocation4 + %s33]]
        %s278 = smul.u32 2, %s34
        %s279 = sld [smem:[#allocation5 + %s33]]
        %s280 = smul.u32 32, %s34
        %s281 = sld [smem:[#allocation5 + %s33]]
        %p282 = scmp.lt.s32.totalorder %s281, 2
        %s283 = scalar_select %p282, %s281, 2
        %s284 = smul.addr %s283, 2
        %s285 = scalar_lea.vmem %s4, %s284
        %s286 = sld [smem:[#allocation5 + %s33]]
        %s287 = smul.u32 2, %s33
        %p288 = scmp.lt.s32.totalorder %s287, 11
        %s289 = scalar_select %p288, %s287, 11
        %s290 = smul.addr %s289, 4
        %s291 = scalar_lea.vmem %s5, %s290
        %s292 = smul.u32 2, %s33
        %p293 = scmp.eq.s32.totalorder %s34, 0
        // Predicated region
        $region37: #{simple_view_forward.2} parent=31 // pred_check
          %p294 = pneg %p293
        $region38: #{simple_view_forward.2} parent=31 // pred_check_branch
          %296 = sbr.rel (%p294) target = $region40
        $region39: #{simple_view_forward.2} parent=31 // pred_region
          %297 = vst [vmem:[#allocation2] sm:$0xff] 0.0
          %298 = vst [vmem:[#allocation2 + $0x8] sm:$0xff] 0.0
        $region40: #{simple_view_forward.2} parent=31 // pred_fallthru
          _
        %v299 = vld [vmem:[#allocation2] sm:$0xff]
        %v300 = vld [vmem:[#allocation2 + $0x8] sm:$0xff]
        %v301 = vld [vmem:[%s276] sm:$0xff]
        %v302 = vld [vmem:[%s229] sm:$0xff]
        %v303 = vld [vmem:[%s229 + $0x8] sm:$0xff]
        %v304 = vld [vmem:[%s229 + $0x10] sm:$0xff]
        %v305 = vld [vmem:[%s229 + $0x18] sm:$0xff]
        %v306 = vld [vmem:[%s229 + $0x20] sm:$0xff]
        %v307 = vld [vmem:[%s229 + $0x28] sm:$0xff]
        %v308 = vld [vmem:[%s229 + $0x30] sm:$0xff]
        %v309 = vld [vmem:[%s229 + $0x38] sm:$0xff]
        %v310 = vld [vmem:[%s229 + $0x40] sm:$0xff]
        %v311 = vld [vmem:[%s229 + $0x48] sm:$0xff]
        %v312 = vld [vmem:[%s229 + $0x50] sm:$0xff]
        %v313 = vld [vmem:[%s229 + $0x58] sm:$0xff]
        %v314 = vld [vmem:[%s229 + $0x60] sm:$0xff]
        %v315 = vld [vmem:[%s229 + $0x68] sm:$0xff]
        %v316 = vld [vmem:[%s229 + $0x70] sm:$0xff]
        %v317 = vld [vmem:[%s229 + $0x78] sm:$0xff]
        %v318 = vld [vmem:[%s229 + $0x80] sm:$0xff]
        %v319 = vld [vmem:[%s229 + $0x88] sm:$0xff]
        %v320 = vld [vmem:[%s229 + $0x90] sm:$0xff]
        %v321 = vld [vmem:[%s229 + $0x98] sm:$0xff]
        %v322 = vld [vmem:[%s229 + $0xa0] sm:$0xff]
        %v323 = vld [vmem:[%s229 + $0xa8] sm:$0xff]
        %v324 = vld [vmem:[%s229 + $0xb0] sm:$0xff]
        %v325 = vld [vmem:[%s229 + $0xb8] sm:$0xff]
        %v326 = vld [vmem:[%s229 + $0xc0] sm:$0xff]
        %v327 = vld [vmem:[%s229 + $0xc8] sm:$0xff]
        %v328 = vld [vmem:[%s229 + $0xd0] sm:$0xff]
        %v329 = vld [vmem:[%s229 + $0xd8] sm:$0xff]
        %v330 = vld [vmem:[%s229 + $0xe0] sm:$0xff]
        %v331 = vld [vmem:[%s229 + $0xe8] sm:$0xff]
        %v332 = vld [vmem:[%s229 + $0xf0] sm:$0xff]
        %v333 = vld [vmem:[%s229 + $0xf8] sm:$0xff]
        %v335 = vunpack.c.l.b16 %v301
        %v336 = vunpack.c.h.b16 %v301
        %v337 = vpack.c.b16 %v335, %v335
        %v338 = vpack.c.b16 %v336, %v336
        %v373 = vunpack.c.l.b16 %v302
        %v374 = vunpack.c.h.b16 %v302
        %v375 = vunpack.c.l.b16 %v303
        %v376 = vunpack.c.h.b16 %v303
        %v377 = vunpack.c.l.b16 %v304
        %v378 = vunpack.c.h.b16 %v304
        %v379 = vunpack.c.l.b16 %v305
        %v380 = vunpack.c.h.b16 %v305
        %v381 = vunpack.c.l.b16 %v306
        %v382 = vunpack.c.h.b16 %v306
        %v383 = vunpack.c.l.b16 %v307
        %v384 = vunpack.c.h.b16 %v307
        %v385 = vunpack.c.l.b16 %v308
        %v386 = vunpack.c.h.b16 %v308
        %v387 = vunpack.c.l.b16 %v309
        %v388 = vunpack.c.h.b16 %v309
        %v389 = vunpack.c.l.b16 %v310
        %v390 = vunpack.c.h.b16 %v310
        %v391 = vunpack.c.l.b16 %v311
        %v392 = vunpack.c.h.b16 %v311
        %v393 = vunpack.c.l.b16 %v312
        %v394 = vunpack.c.h.b16 %v312
        %v395 = vunpack.c.l.b16 %v313
        %v396 = vunpack.c.h.b16 %v313
        %v397 = vunpack.c.l.b16 %v314
        %v398 = vunpack.c.h.b16 %v314
        %v399 = vunpack.c.l.b16 %v315
        %v400 = vunpack.c.h.b16 %v315
        %v401 = vunpack.c.l.b16 %v316
        %v402 = vunpack.c.h.b16 %v316
        %v403 = vunpack.c.l.b16 %v317
        %v404 = vunpack.c.h.b16 %v317
        %v405 = vunpack.c.l.b16 %v318
        %v406 = vunpack.c.h.b16 %v318
        %v407 = vunpack.c.l.b16 %v319
        %v408 = vunpack.c.h.b16 %v319
        %v409 = vunpack.c.l.b16 %v320
        %v410 = vunpack.c.h.b16 %v320
        %v411 = vunpack.c.l.b16 %v321
        %v412 = vunpack.c.h.b16 %v321
        %v413 = vunpack.c.l.b16 %v322
        %v414 = vunpack.c.h.b16 %v322
        %v415 = vunpack.c.l.b16 %v323
        %v416 = vunpack.c.h.b16 %v323
        %v417 = vunpack.c.l.b16 %v324
        %v418 = vunpack.c.h.b16 %v324
        %v419 = vunpack.c.l.b16 %v325
        %v420 = vunpack.c.h.b16 %v325
        %v421 = vunpack.c.l.b16 %v326
        %v422 = vunpack.c.h.b16 %v326
        %v423 = vunpack.c.l.b16 %v327
        %v424 = vunpack.c.h.b16 %v327
        %v425 = vunpack.c.l.b16 %v328
        %v426 = vunpack.c.h.b16 %v328
        %v427 = vunpack.c.l.b16 %v329
        %v428 = vunpack.c.h.b16 %v329
        %v429 = vunpack.c.l.b16 %v330
        %v430 = vunpack.c.h.b16 %v330
        %v431 = vunpack.c.l.b16 %v331
        %v432 = vunpack.c.h.b16 %v331
        %v433 = vunpack.c.l.b16 %v332
        %v434 = vunpack.c.h.b16 %v332
        %v435 = vunpack.c.l.b16 %v333
        %v436 = vunpack.c.h.b16 %v333
        %v437 = vpack.c.b16 %v375, %v373
        %v438 = vpack.c.b16 %v376, %v374
        %v439 = vpack.c.b16 %v379, %v377
        %v440 = vpack.c.b16 %v380, %v378
        %v441 = vpack.c.b16 %v383, %v381
        %v442 = vpack.c.b16 %v384, %v382
        %v443 = vpack.c.b16 %v387, %v385
        %v444 = vpack.c.b16 %v388, %v386
        %v445 = vpack.c.b16 %v391, %v389
        %v446 = vpack.c.b16 %v392, %v390
        %v447 = vpack.c.b16 %v395, %v393
        %v448 = vpack.c.b16 %v396, %v394
        %v449 = vpack.c.b16 %v399, %v397
        %v450 = vpack.c.b16 %v400, %v398
        %v451 = vpack.c.b16 %v403, %v401
        %v452 = vpack.c.b16 %v404, %v402
        %v453 = vpack.c.b16 %v407, %v405
        %v454 = vpack.c.b16 %v408, %v406
        %v455 = vpack.c.b16 %v411, %v409
        %v456 = vpack.c.b16 %v412, %v410
        %v457 = vpack.c.b16 %v415, %v413
        %v458 = vpack.c.b16 %v416, %v414
        %v459 = vpack.c.b16 %v419, %v417
        %v460 = vpack.c.b16 %v420, %v418
        %v461 = vpack.c.b16 %v423, %v421
        %v462 = vpack.c.b16 %v424, %v422
        %v463 = vpack.c.b16 %v427, %v425
        %v464 = vpack.c.b16 %v428, %v426
        %v465 = vpack.c.b16 %v431, %v429
        %v466 = vpack.c.b16 %v432, %v430
        %v467 = vpack.c.b16 %v435, %v433
        %v468 = vpack.c.b16 %v436, %v434
        %501 = vmatprep.subr.bf16.mxu0 %v438
        %502 = vmatpush1.bf16.msra.mxu0 %v437
        %503 = vmatprep.subr.bf16.mxu0 %v440
        %504 = vmatpush1.bf16.msra.mxu0 %v439
        %505 = vmatprep.subr.bf16.mxu0 %v442
        %506 = vmatpush1.bf16.msra.mxu0 %v441
        %507 = vmatprep.subr.bf16.mxu0 %v444
        %508 = vmatpush1.bf16.msra.mxu0 %v443
        %509 = vmatprep.subr.bf16.mxu0 %v446
        %510 = vmatpush1.bf16.msra.mxu0 %v445
        %511 = vmatprep.subr.bf16.mxu0 %v448
        %512 = vmatpush1.bf16.msra.mxu0 %v447
        %513 = vmatprep.subr.bf16.mxu0 %v450
        %514 = vmatpush1.bf16.msra.mxu0 %v449
        %515 = vmatprep.subr.bf16.mxu0 %v452
        %516 = vmatpush1.bf16.msra.mxu0 %v451
        %517 = vmatprep.subr.bf16.mxu0 %v454
        %518 = vmatpush1.bf16.msra.mxu0 %v453
        %519 = vmatprep.subr.bf16.mxu0 %v456
        %520 = vmatpush1.bf16.msra.mxu0 %v455
        %521 = vmatprep.subr.bf16.mxu0 %v458
        %522 = vmatpush1.bf16.msra.mxu0 %v457
        %523 = vmatprep.subr.bf16.mxu0 %v460
        %524 = vmatpush1.bf16.msra.mxu0 %v459
        %525 = vmatprep.subr.bf16.mxu0 %v462
        %526 = vmatpush1.bf16.msra.mxu0 %v461
        %527 = vmatprep.subr.bf16.mxu0 %v464
        %528 = vmatpush1.bf16.msra.mxu0 %v463
        %529 = vmatprep.subr.bf16.mxu0 %v466
        %530 = vmatpush1.bf16.msra.mxu0 %v465
        %531 = vmatprep.subr.bf16.mxu0 %v468
        %532 = vmatpush1.bf16.msra.mxu0 %v467
        %533 = vmatprep.mubr.bf16.mxu0 %v338
        %534 = vmatmul.mubr.bf16.gmra.mrb[0].mxu0 %v337
        %v535 = vpop.f32.mrb[0].mxu0
        %v536 = vadd.f32 0.0, %v535
        %v537 = vpop.f32.mrb[0].mxu0
        %v538 = vadd.f32 0.0, %v537
        %v539 = vpop.f32.mrb[0].mxu0
        %v540 = vpop.f32.mrb[0].mxu0
        %541 = vdwg.mxu0
        %v542 = vadd.f32 %v299, %v536
        %v543 = vadd.f32 %v300, %v538
        %544 = vst [vmem:[#allocation2] sm:$0xff] %v542
        %545 = vst [vmem:[#allocation2 + $0x8] sm:$0xff] %v543
        // Predicated region
        $region41: #{simple_view_forward.2} parent=31 // pred_check
          %p546 = pneg %p293
        $region42: #{simple_view_forward.2} parent=31 // pred_check_branch
          %548 = sbr.rel (%p546) target = $region44
        $region43: #{simple_view_forward.2} parent=31 // pred_region
          %v549 = vld [vmem:[#allocation2] sm:$0xff]
          %v550 = vld [vmem:[#allocation2 + $0x8] sm:$0xff]
          %v551 = vld [vmem:[%s285] sm:$0x3]
          %v553 = vlaneseq
          %v554 = vshrl.u32 %v553, 7
          %v555 = vsub.s32 0, %v554
          %v556 = vrot.slane %v551, %v555
          %v557 = vlaneseq
          %v558 = vshrl.u32 %v557, 7
          %v559 = vsub.s32 1, %v558
          %v560 = vrot.slane %v551, %v559
          %v563 = vadd.f32 %v549, %v556
          %v564 = vadd.f32 %v550, %v560
          %v565 = vmax.f32 %v563, 0.0
          %v566 = vmax.f32 %v564, 0.0
          %v567 = vpack.c.bf16 %v565, %v565
          %v568 = vpack.c.bf16 %v566, %v566
          %v571 = vunpack.c.l.b16 %v567
          %v572 = vunpack.c.l.b16 %v568
          %v573 = vpack.c.b16 %v572, %v571
          %575 = vst [vmem:[%s291] sm:$0xff] %v573
        $region44: #{simple_view_forward.2} parent=31 // pred_fallthru
          _
        %s576 = smul.u32 2, %s33
        %p577 = scmp.lt.s32.totalorder %s576, 11
        %s578 = scalar_select %p577, %s576, 11
        %s579 = smul.addr %s578, 4
        %s580 = scalar_lea.vmem %s5, %s579
        // Predicated region
        $region45: #{simple_view_forward.2} parent=31 // pred_check
          %p581 = pneg %p147
        $region46: #{simple_view_forward.2} parent=31 // pred_check_branch
          %583 = sbr.rel (%p581) target = $region48
        $region47: #{simple_view_forward.2} parent=31 // pred_region
          %s584 = smul.u32 2, %s33
        $region48: #{simple_view_forward.2} parent=31 // pred_fallthru
          _
      $region32: #{simple_view_forward.2} parent=5 // pred_fallthru
        _
      %p585 = scmp.le.s32.totalorder 2, %s24
      // Predicated region
      $region49: #{simple_view_forward.2} parent=5 // pred_check
        %p586 = pneg %p585
      $region50: #{simple_view_forward.2} parent=5 // pred_check_branch
        %588 = sbr.rel (%p586) target = $region52
      $region51: #{simple_view_forward.2} parent=5 // pred_region
        %s589 = ssub.s32 %s24, 2
        // Predicated region
        $region53: #{simple_view_forward.2} parent=51 // pred_check
          %p590 = pneg %p153
        $region54: #{simple_view_forward.2} parent=51 // pred_check_branch
          %592 = sbr.rel (%p590) target = $region56
        $region55: #{simple_view_forward.2} parent=51 // pred_region
          %s593 = smul.u32 2, %s35
          %p594 = scmp.lt.s32.totalorder %s593, 11
          %s595 = scalar_select %p594, %s593, 11
          %s596 = smul.addr %s595, 4
          %s597 = scalar_lea.vmem %s5, %s596
        $region56: #{simple_view_forward.2} parent=51 // pred_fallthru
          _
      $region52: #{simple_view_forward.2} parent=5 // pred_fallthru
        _
    $region6: #{simple_view_forward.2} parent=1 // loop_footer
      %s28 = sadd.s32 1, %s24
    $region7: #{simple_view_forward.2} parent=1 // loop_footer_branch
      %23 = sbr.rel target = $region3
    $region8: #{simple_view_forward.2} parent=1 // loop_exit
      _
    %598 = vsyncpa [#allocation7], 1
    %s599 = scalar_lea.sflag [#allocation7], 1
    %600 = vsyncpa %s599, 1

// kernel: simple_view_forward.3
$region0: #{simple_view_forward.3}
  #allocation0 [shape = 'u32[]', space=smem, size = 0x4, offset = 0x4, fixed_abs, tag = 'smem constant byte address 0x4 - core index']
  #allocation1 [shape = 'u32[144,128]{1,0:T(1,128)}', space=vmem, size = 0x12000, scoped, tag = 'internal scratch']
  %s0 = inlined_call_operand.vmem [shape: bf16[8,1536], index: 0, kind: input, shape index: {}]
  %s1 = inlined_call_operand.vmem [shape: bf16[8,128], index: 1, kind: input, shape index: {}]
  %s2 = inlined_call_operand.vmem [shape: bf16[128,256], index: 2, kind: input, shape index: {}]
  %s3 = inlined_call_operand.vmem [shape: f32[1,256], index: 3, kind: input, shape index: {}]
  %s4 = inlined_call_operand.hbm [shape: bf16[1536,256], index: 4, kind: input, shape index: {}]
  %s5 = inlined_call_operand.vmem [shape: bf16[256,256], index: 5, kind: input, shape index: {}]
  %s6 = inlined_call_operand.vmem [shape: f32[1,256], index: 6, kind: input, shape index: {}]
  %s7 = inlined_call_operand.vmem [shape: bf16[256,128], index: 7, kind: input, shape index: {}]
  %s8 = inlined_call_operand.vmem [shape: f32[1,128], index: 8, kind: input, shape index: {}]
  %s9 = inlined_call_operand.vmem [shape: f32[8,128], index: 9, kind: output, shape index: {}]
  %s10 = sld [smem:[#allocation0]]
  $region50: #{simple_view_forward.3} parent=0
    _
  %s12 = ssub.s32 1, %s10
  %s13 = scalar_select 0, %s12, %s10
  $region1: #{simple_view_forward.3} parent=0
    #allocation2 [shape = 'u8[786432]{0}', space=vmem, size = 0xc0000, scoped, tag = 'input window, operand 4, single buffered']
    #allocation3 [shape = 's32[1]{0}', space=sflag, size = 0x4, scoped, tag = 'scoped memory for simple_view_forward.3']
    %14 = vsyncpa [#allocation3], 0
    // Predicated region
    $region2: #{simple_view_forward.3} parent=1 // pred_check
      _
    $region3: #{simple_view_forward.3} parent=1 // pred_check_branch
      %16 = sbr.rel (0) target = $region5
    $region4: #{simple_view_forward.3} parent=1 // pred_region
      _
    $region5: #{simple_view_forward.3} parent=1 // pred_fallthru
      _
    // Predicated region
    $region6: #{simple_view_forward.3} parent=1 // pred_check
      _
    $region7: #{simple_view_forward.3} parent=1 // pred_check_branch
      %18 = sbr.rel (0) target = $region9
    $region8: #{simple_view_forward.3} parent=1 // pred_region
      _
    $region9: #{simple_view_forward.3} parent=1 // pred_fallthru
      _
    // Predicated region
    $region10: #{simple_view_forward.3} parent=1 // pred_check
      _
    $region11: #{simple_view_forward.3} parent=1 // pred_check_branch
      %20 = sbr.rel (0) target = $region13
    $region12: #{simple_view_forward.3} parent=1 // pred_region
      _
    $region13: #{simple_view_forward.3} parent=1 // pred_fallthru
      _
    // Predicated region
    $region14: #{simple_view_forward.3} parent=1 // pred_check
      _
    $region15: #{simple_view_forward.3} parent=1 // pred_check_branch
      %22 = sbr.rel (0) target = $region17
    $region16: #{simple_view_forward.3} parent=1 // pred_region
      _
    $region17: #{simple_view_forward.3} parent=1 // pred_fallthru
      _
    // Predicated region
    $region18: #{simple_view_forward.3} parent=1 // pred_check
      _
    $region19: #{simple_view_forward.3} parent=1 // pred_check_branch
      %24 = sbr.rel (0) target = $region21
    $region20: #{simple_view_forward.3} parent=1 // pred_region
      %s26 = ssub.s32 24576, 24576
      %27 = vsyncadd [#allocation3], %s26
      %s28 = sshll.u32 [#allocation2], 4
      %s29 = int_to_ptr.vmem [resolvable:$true] %s28
      %34 = dma.hbm_to_vmem [thread:$0]  %s4, 24576, %s29, [#allocation3], 128, 128, 8
    $region21: #{simple_view_forward.3} parent=1 // pred_fallthru
      _
    // Predicated region
    $region22: #{simple_view_forward.3} parent=1 // pred_check
      _
    $region23: #{simple_view_forward.3} parent=1 // pred_check_branch
      %36 = sbr.rel (0) target = $region25
    $region24: #{simple_view_forward.3} parent=1 // pred_region
      _
    $region25: #{simple_view_forward.3} parent=1 // pred_fallthru
      _
    // Predicated region
    $region26: #{simple_view_forward.3} parent=1 // pred_check
      _
    $region27: #{simple_view_forward.3} parent=1 // pred_check_branch
      %38 = sbr.rel (0) target = $region29
    $region28: #{simple_view_forward.3} parent=1 // pred_region
      _
    $region29: #{simple_view_forward.3} parent=1 // pred_fallthru
      _
    // Predicated region
    $region30: #{simple_view_forward.3} parent=1 // pred_check
      _
    $region31: #{simple_view_forward.3} parent=1 // pred_check_branch
      %40 = sbr.rel (0) target = $region33
    $region32: #{simple_view_forward.3} parent=1 // pred_region
      _
    $region33: #{simple_view_forward.3} parent=1 // pred_fallthru
      _
    // Predicated region
    $region34: #{simple_view_forward.3} parent=1 // pred_check
      _
    $region35: #{simple_view_forward.3} parent=1 // pred_check_branch
      %42 = sbr.rel (0) target = $region37
    $region36: #{simple_view_forward.3} parent=1 // pred_region
      _
    $region37: #{simple_view_forward.3} parent=1 // pred_fallthru
      _
    // Predicated region
    $region38: #{simple_view_forward.3} parent=1 // pred_check
      _
    $region39: #{simple_view_forward.3} parent=1 // pred_check_branch
      %44 = sbr.rel (0) target = $region41
    $region40: #{simple_view_forward.3} parent=1 // pred_region
      %45 = dma.done [#allocation3], 24576
    $region41: #{simple_view_forward.3} parent=1 // pred_fallthru
      _
    %v47 = vld [vmem:[%s1] sm:$0xf]
    %v48 = vld [vmem:[%s2] sm:$0xff]
    %v49 = vld [vmem:[%s2 + $0x8] sm:$0xff]
    %v50 = vld [vmem:[%s2 + $0x10] sm:$0xff]
    %v51 = vld [vmem:[%s2 + $0x18] sm:$0xff]
    %v52 = vld [vmem:[%s2 + $0x20] sm:$0xff]
    %v53 = vld [vmem:[%s2 + $0x28] sm:$0xff]
    %v54 = vld [vmem:[%s2 + $0x30] sm:$0xff]
    %v55 = vld [vmem:[%s2 + $0x38] sm:$0xff]
    %v56 = vld [vmem:[%s2 + $0x40] sm:$0xff]
    %v57 = vld [vmem:[%s2 + $0x48] sm:$0xff]
    %v58 = vld [vmem:[%s2 + $0x50] sm:$0xff]
    %v59 = vld [vmem:[%s2 + $0x58] sm:$0xff]
    %v60 = vld [vmem:[%s2 + $0x60] sm:$0xff]
    %v61 = vld [vmem:[%s2 + $0x68] sm:$0xff]
    %v62 = vld [vmem:[%s2 + $0x70] sm:$0xff]
    %v63 = vld [vmem:[%s2 + $0x78] sm:$0xff]
    %v64 = vld [vmem:[%s3] sm:$0x3]
    %v66 = vlaneseq
    %v67 = vshrl.u32 %v66, 7
    %v68 = vsub.s32 0, %v67
    %v69 = vrot.slane %v64, %v68
    %v70 = vlaneseq
    %v71 = vshrl.u32 %v70, 7
    %v72 = vsub.s32 1, %v71
    %v73 = vrot.slane %v64, %v72
    %v92 = vunpack.c.l.b16 %v48
    %v93 = vunpack.c.h.b16 %v48
    %v94 = vunpack.c.l.b16 %v49
    %v95 = vunpack.c.h.b16 %v49
    %v96 = vunpack.c.l.b16 %v50
    %v97 = vunpack.c.h.b16 %v50
    %v98 = vunpack.c.l.b16 %v51
    %v99 = vunpack.c.h.b16 %v51
    %v100 = vunpack.c.l.b16 %v52
    %v101 = vunpack.c.h.b16 %v52
    %v102 = vunpack.c.l.b16 %v53
    %v103 = vunpack.c.h.b16 %v53
    %v104 = vunpack.c.l.b16 %v54
    %v105 = vunpack.c.h.b16 %v54
    %v106 = vunpack.c.l.b16 %v55
    %v107 = vunpack.c.h.b16 %v55
    %v108 = vunpack.c.l.b16 %v56
    %v109 = vunpack.c.h.b16 %v56
    %v110 = vunpack.c.l.b16 %v57
    %v111 = vunpack.c.h.b16 %v57
    %v112 = vunpack.c.l.b16 %v58
    %v113 = vunpack.c.h.b16 %v58
    %v114 = vunpack.c.l.b16 %v59
    %v115 = vunpack.c.h.b16 %v59
    %v116 = vunpack.c.l.b16 %v60
    %v117 = vunpack.c.h.b16 %v60
    %v118 = vunpack.c.l.b16 %v61
    %v119 = vunpack.c.h.b16 %v61
    %v120 = vunpack.c.l.b16 %v62
    %v121 = vunpack.c.h.b16 %v62
    %v122 = vunpack.c.l.b16 %v63
    %v123 = vunpack.c.h.b16 %v63
    %v124 = vpack.c.b16 %v94, %v92
    %v125 = vpack.c.b16 %v95, %v93
    %v126 = vpack.c.b16 %v98, %v96
    %v127 = vpack.c.b16 %v99, %v97
    %v128 = vpack.c.b16 %v102, %v100
    %v129 = vpack.c.b16 %v103, %v101
    %v130 = vpack.c.b16 %v106, %v104
    %v131 = vpack.c.b16 %v107, %v105
    %v132 = vpack.c.b16 %v110, %v108
    %v133 = vpack.c.b16 %v111, %v109
    %v134 = vpack.c.b16 %v114, %v112
    %v135 = vpack.c.b16 %v115, %v113
    %v136 = vpack.c.b16 %v118, %v116
    %v137 = vpack.c.b16 %v119, %v117
    %v138 = vpack.c.b16 %v122, %v120
    %v139 = vpack.c.b16 %v123, %v121
    %156 = vmatprep.subr.bf16.mxu0 %v125
    %157 = vmatpush1.bf16.msra.mxu0 %v124
    %158 = vmatprep.subr.bf16.mxu0 %v127
    %159 = vmatpush1.bf16.msra.mxu0 %v126
    %160 = vmatprep.subr.bf16.mxu0 %v129
    %161 = vmatpush1.bf16.msra.mxu0 %v128
    %162 = vmatprep.subr.bf16.mxu0 %v131
    %163 = vmatpush1.bf16.msra.mxu0 %v130
    %164 = vmatprep.subr.bf16.mxu0 %v133
    %165 = vmatpush1.bf16.msra.mxu0 %v132
    %166 = vmatprep.subr.bf16.mxu0 %v135
    %167 = vmatpush1.bf16.msra.mxu0 %v134
    %168 = vmatprep.subr.bf16.mxu0 %v137
    %169 = vmatpush1.bf16.msra.mxu0 %v136
    %170 = vmatprep.subr.bf16.mxu0 %v139
    %171 = vmatpush1.bf16.msra.mxu0 %v138
    %172 = vmatprep.subr.bf16.mxu0 0
    %173 = vmatpush1.bf16.msra.mxu0 0
    %174 = vmatprep.subr.bf16.mxu0 0
    %175 = vmatpush1.bf16.msra.mxu0 0
    %176 = vmatprep.subr.bf16.mxu0 0
    %177 = vmatpush1.bf16.msra.mxu0 0
    %178 = vmatprep.subr.bf16.mxu0 0
    %179 = vmatpush1.bf16.msra.mxu0 0
    %180 = vmatprep.subr.bf16.mxu0 0
    %181 = vmatpush1.bf16.msra.mxu0 0
    %182 = vmatprep.subr.bf16.mxu0 0
    %183 = vmatpush1.bf16.msra.mxu0 0
    %184 = vmatprep.subr.bf16.mxu0 0
    %185 = vmatpush1.bf16.msra.mxu0 0
    %186 = vmatprep.subr.bf16.mxu0 0
    %187 = vmatpush1.bf16.msra.mxu0 0
    %188 = vmatprep.mubr.bf16.mxu0 0
    %189 = vmatmul.mubr.bf16.gmra.mrb[0].mxu0 %v47
    %v190 = vpop.f32.mrb[0].mxu0
    %v191 = vadd.f32 %v69, %v190
    %v192 = vpop.f32.mrb[0].mxu0
    %v193 = vadd.f32 %v73, %v192
    %v194 = vpop.f32.mrb[0].mxu0
    %v195 = vpop.f32.mrb[0].mxu0
    %196 = vdwg.mxu0
    %v197 = vmax.f32 %v191, 0.0
    %v198 = vmax.f32 %v193, 0.0
    %v199 = vld [vmem:[%s0] sm:$0xff]
    %v200 = vld [vmem:[%s0 + $0x8] sm:$0xff]
    %v201 = vld [vmem:[%s0 + $0x10] sm:$0xff]
    %v202 = vld [vmem:[%s0 + $0x18] sm:$0xff]
    %v203 = vld [vmem:[%s0 + $0x20] sm:$0xff]
    %v204 = vld [vmem:[%s0 + $0x28] sm:$0xff]
    %v205 = vld [vmem:[#allocation2] sm:$0xff]
    %v206 = vld [vmem:[#allocation2 + $0x8] sm:$0xff]
    %v207 = vld [vmem:[#allocation2 + $0x10] sm:$0xff]
    %v208 = vld [vmem:[#allocation2 + $0x18] sm:$0xff]
    %v209 = vld [vmem:[#allocation2 + $0x20] sm:$0xff]
    %v210 = vld [vmem:[#allocation2 + $0x28] sm:$0xff]
    %v211 = vld [vmem:[#allocation2 + $0x30] sm:$0xff]
    %v212 = vld [vmem:[#allocation2 + $0x38] sm:$0xff]
    %v213 = vld [vmem:[#allocation2 + $0x40] sm:$0xff]
    %v214 = vld [vmem:[#allocation2 + $0x48] sm:$0xff]
    %v215 = vld [vmem:[#allocation2 + $0x50] sm:$0xff]
    %v216 = vld [vmem:[#allocation2 + $0x58] sm:$0xff]
    %v217 = vld [vmem:[#allocation2 + $0x60] sm:$0xff]
    %v218 = vld [vmem:[#allocation2 + $0x68] sm:$0xff]
    %v219 = vld [vmem:[#allocation2 + $0x70] sm:$0xff]
    %v220 = vld [vmem:[#allocation2 + $0x78] sm:$0xff]
    %v221 = vld [vmem:[#allocation2 + $0x80] sm:$0xff]
    %v222 = vld [vmem:[#allocation2 + $0x88] sm:$0xff]
    %v223 = vld [vmem:[#allocation2 + $0x90] sm:$0xff]
    %v224 = vld [vmem:[#allocation2 + $0x98] sm:$0xff]
    %v225 = vld [vmem:[#allocation2 + $0xa0] sm:$0xff]
    %v226 = vld [vmem:[#allocation2 + $0xa8] sm:$0xff]
    %v227 = vld [vmem:[#allocation2 + $0xb0] sm:$0xff]
    %v228 = vld [vmem:[#allocation2 + $0xb8] sm:$0xff]
    %v229 = vld [vmem:[#allocation2 + $0xc0] sm:$0xff]
    %v230 = vld [vmem:[#allocation2 + $0xc8] sm:$0xff]
    %v231 = vld [vmem:[#allocation2 + $0xd0] sm:$0xff]
    %v232 = vld [vmem:[#allocation2 + $0xd8] sm:$0xff]
    %v233 = vld [vmem:[#allocation2 + $0xe0] sm:$0xff]
    %v234 = vld [vmem:[#allocation2 + $0xe8] sm:$0xff]
    %v235 = vld [vmem:[#allocation2 + $0xf0] sm:$0xff]
    %v236 = vld [vmem:[#allocation2 + $0xf8] sm:$0xff]
    %v237 = vld [vmem:[#allocation2 + $0x100] sm:$0xff]
    %v238 = vld [vmem:[#allocation2 + $0x108] sm:$0xff]
    %v239 = vld [vmem:[#allocation2 + $0x110] sm:$0xff]
    %v240 = vld [vmem:[#allocation2 + $0x118] sm:$0xff]
    %v241 = vld [vmem:[#allocation2 + $0x120] sm:$0xff]
    %v242 = vld [vmem:[#allocation2 + $0x128] sm:$0xff]
    %v243 = vld [vmem:[#allocation2 + $0x130] sm:$0xff]
    %v244 = vld [vmem:[#allocation2 + $0x138] sm:$0xff]
    %v245 = vld [vmem:[#allocation2 + $0x140] sm:$0xff]
    %v246 = vld [vmem:[#allocation2 + $0x148] sm:$0xff]
    %v247 = vld [vmem:[#allocation2 + $0x150] sm:$0xff]
    %v248 = vld [vmem:[#allocation2 + $0x158] sm:$0xff]
    %v249 = vld [vmem:[#allocation2 + $0x160] sm:$0xff]
    %v250 = vld [vmem:[#allocation2 + $0x168] sm:$0xff]
    %v251 = vld [vmem:[#allocation2 + $0x170] sm:$0xff]
    %v252 = vld [vmem:[#allocation2 + $0x178] sm:$0xff]
    %v253 = vld [vmem:[#allocation2 + $0x180] sm:$0xff]
    %v254 = vld [vmem:[#allocation2 + $0x188] sm:$0xff]
    %v255 = vld [vmem:[#allocation2 + $0x190] sm:$0xff]
    %v256 = vld [vmem:[#allocation2 + $0x198] sm:$0xff]
    %v257 = vld [vmem:[#allocation2 + $0x1a0] sm:$0xff]
    %v258 = vld [vmem:[#allocation2 + $0x1a8] sm:$0xff]
    %v259 = vld [vmem:[#allocation2 + $0x1b0] sm:$0xff]
    %v260 = vld [vmem:[#allocation2 + $0x1b8] sm:$0xff]
    %v261 = vld [vmem:[#allocation2 + $0x1c0] sm:$0xff]
    %v262 = vld [vmem:[#allocation2 + $0x1c8] sm:$0xff]
    %v263 = vld [vmem:[#allocation2 + $0x1d0] sm:$0xff]
    %v264 = vld [vmem:[#allocation2 + $0x1d8] sm:$0xff]
    %v265 = vld [vmem:[#allocation2 + $0x1e0] sm:$0xff]
    %v266 = vld [vmem:[#allocation2 + $0x1e8] sm:$0xff]
    %v267 = vld [vmem:[#allocation2 + $0x1f0] sm:$0xff]
    %v268 = vld [vmem:[#allocation2 + $0x1f8] sm:$0xff]
    %v269 = vld [vmem:[#allocation2 + $0x200] sm:$0xff]
    %v270 = vld [vmem:[#allocation2 + $0x208] sm:$0xff]
    %v271 = vld [vmem:[#allocation2 + $0x210] sm:$0xff]
    %v272 = vld [vmem:[#allocation2 + $0x218] sm:$0xff]
    %v273 = vld [vmem:[#allocation2 + $0x220] sm:$0xff]
    %v274 = vld [vmem:[#allocation2 + $0x228] sm:$0xff]
    %v275 = vld [vmem:[#allocation2 + $0x230] sm:$0xff]
    %v276 = vld [vmem:[#allocation2 + $0x238] sm:$0xff]
    %v277 = vld [vmem:[#allocation2 + $0x240] sm:$0xff]
    %v278 = vld [vmem:[#allocation2 + $0x248] sm:$0xff]
    %v279 = vld [vmem:[#allocation2 + $0x250] sm:$0xff]
    %v280 = vld [vmem:[#allocation2 + $0x258] sm:$0xff]
    %v281 = vld [vmem:[#allocation2 + $0x260] sm:$0xff]
    %v282 = vld [vmem:[#allocation2 + $0x268] sm:$0xff]
    %v283 = vld [vmem:[#allocation2 + $0x270] sm:$0xff]
    %v284 = vld [vmem:[#allocation2 + $0x278] sm:$0xff]
    %v285 = vld [vmem:[#allocation2 + $0x280] sm:$0xff]
    %v286 = vld [vmem:[#allocation2 + $0x288] sm:$0xff]
    %v287 = vld [vmem:[#allocation2 + $0x290] sm:$0xff]
    %v288 = vld [vmem:[#allocation2 + $0x298] sm:$0xff]
    %v289 = vld [vmem:[#allocation2 + $0x2a0] sm:$0xff]
    %v290 = vld [vmem:[#allocation2 + $0x2a8] sm:$0xff]
    %v291 = vld [vmem:[#allocation2 + $0x2b0] sm:$0xff]
    %v292 = vld [vmem:[#allocation2 + $0x2b8] sm:$0xff]
    %v293 = vld [vmem:[#allocation2 + $0x2c0] sm:$0xff]
    %v294 = vld [vmem:[#allocation2 + $0x2c8] sm:$0xff]
    %v295 = vld [vmem:[#allocation2 + $0x2d0] sm:$0xff]
    %v296 = vld [vmem:[#allocation2 + $0x2d8] sm:$0xff]
    %v297 = vld [vmem:[#allocation2 + $0x2e0] sm:$0xff]
    %v298 = vld [vmem:[#allocation2 + $0x2e8] sm:$0xff]
    %v299 = vld [vmem:[#allocation2 + $0x2f0] sm:$0xff]
    %v300 = vld [vmem:[#allocation2 + $0x2f8] sm:$0xff]
    %v301 = vld [vmem:[#allocation2 + $0x300] sm:$0xff]
    %v302 = vld [vmem:[#allocation2 + $0x308] sm:$0xff]
    %v303 = vld [vmem:[#allocation2 + $0x310] sm:$0xff]
    %v304 = vld [vmem:[#allocation2 + $0x318] sm:$0xff]
    %v305 = vld [vmem:[#allocation2 + $0x320] sm:$0xff]
    %v306 = vld [vmem:[#allocation2 + $0x328] sm:$0xff]
    %v307 = vld [vmem:[#allocation2 + $0x330] sm:$0xff]
    %v308 = vld [vmem:[#allocation2 + $0x338] sm:$0xff]
    %v309 = vld [vmem:[#allocation2 + $0x340] sm:$0xff]
    %v310 = vld [vmem:[#allocation2 + $0x348] sm:$0xff]
    %v311 = vld [vmem:[#allocation2 + $0x350] sm:$0xff]
    %v312 = vld [vmem:[#allocation2 + $0x358] sm:$0xff]
    %v313 = vld [vmem:[#allocation2 + $0x360] sm:$0xff]
    %v314 = vld [vmem:[#allocation2 + $0x368] sm:$0xff]
    %v315 = vld [vmem:[#allocation2 + $0x370] sm:$0xff]
    %v316 = vld [vmem:[#allocation2 + $0x378] sm:$0xff]
    %v317 = vld [vmem:[#allocation2 + $0x380] sm:$0xff]
    %v318 = vld [vmem:[#allocation2 + $0x388] sm:$0xff]
    %v319 = vld [vmem:[#allocation2 + $0x390] sm:$0xff]
    %v320 = vld [vmem:[#allocation2 + $0x398] sm:$0xff]
    %v321 = vld [vmem:[#allocation2 + $0x3a0] sm:$0xff]
    %v322 = vld [vmem:[#allocation2 + $0x3a8] sm:$0xff]
    %v323 = vld [vmem:[#allocation2 + $0x3b0] sm:$0xff]
    %v324 = vld [vmem:[#allocation2 + $0x3b8] sm:$0xff]
    %v325 = vld [vmem:[#allocation2 + $0x3c0] sm:$0xff]
    %v326 = vld [vmem:[#allocation2 + $0x3c8] sm:$0xff]
    %v327 = vld [vmem:[#allocation2 + $0x3d0] sm:$0xff]
    %v328 = vld [vmem:[#allocation2 + $0x3d8] sm:$0xff]
    %v329 = vld [vmem:[#allocation2 + $0x3e0] sm:$0xff]
    %v330 = vld [vmem:[#allocation2 + $0x3e8] sm:$0xff]
    %v331 = vld [vmem:[#allocation2 + $0x3f0] sm:$0xff]
    %v332 = vld [vmem:[#allocation2 + $0x3f8] sm:$0xff]
    %v333 = vld [vmem:[#allocation2 + $0x400] sm:$0xff]
    %v334 = vld [vmem:[#allocation2 + $0x408] sm:$0xff]
    %v335 = vld [vmem:[#allocation2 + $0x410] sm:$0xff]
    %v336 = vld [vmem:[#allocation2 + $0x418] sm:$0xff]
    %v337 = vld [vmem:[#allocation2 + $0x420] sm:$0xff]
    %v338 = vld [vmem:[#allocation2 + $0x428] sm:$0xff]
    %v339 = vld [vmem:[#allocation2 + $0x430] sm:$0xff]
    %v340 = vld [vmem:[#allocation2 + $0x438] sm:$0xff]
    %v341 = vld [vmem:[#allocation2 + $0x440] sm:$0xff]
    %v342 = vld [vmem:[#allocation2 + $0x448] sm:$0xff]
    %v343 = vld [vmem:[#allocation2 + $0x450] sm:$0xff]
    %v344 = vld [vmem:[#allocation2 + $0x458] sm:$0xff]
    %v345 = vld [vmem:[#allocation2 + $0x460] sm:$0xff]
    %v346 = vld [vmem:[#allocation2 + $0x468] sm:$0xff]
    %v347 = vld [vmem:[#allocation2 + $0x470] sm:$0xff]
    %v348 = vld [vmem:[#allocation2 + $0x478] sm:$0xff]
    %v349 = vld [vmem:[#allocation2 + $0x480] sm:$0xff]
    %v350 = vld [vmem:[#allocation2 + $0x488] sm:$0xff]
    %v351 = vld [vmem:[#allocation2 + $0x490] sm:$0xff]
    %v352 = vld [vmem:[#allocation2 + $0x498] sm:$0xff]
    %v353 = vld [vmem:[#allocation2 + $0x4a0] sm:$0xff]
    %v354 = vld [vmem:[#allocation2 + $0x4a8] sm:$0xff]
    %v355 = vld [vmem:[#allocation2 + $0x4b0] sm:$0xff]
    %v356 = vld [vmem:[#allocation2 + $0x4b8] sm:$0xff]
    %v357 = vld [vmem:[#allocation2 + $0x4c0] sm:$0xff]
    %v358 = vld [vmem:[#allocation2 + $0x4c8] sm:$0xff]
    %v359 = vld [vmem:[#allocation2 + $0x4d0] sm:$0xff]
    %v360 = vld [vmem:[#allocation2 + $0x4d8] sm:$0xff]
    %v361 = vld [vmem:[#allocation2 + $0x4e0] sm:$0xff]
    %v362 = vld [vmem:[#allocation2 + $0x4e8] sm:$0xff]
    %v363 = vld [vmem:[#allocation2 + $0x4f0] sm:$0xff]
    %v364 = vld [vmem:[#allocation2 + $0x4f8] sm:$0xff]
    %v365 = vld [vmem:[#allocation2 + $0x500] sm:$0xff]
    %v366 = vld [vmem:[#allocation2 + $0x508] sm:$0xff]
    %v367 = vld [vmem:[#allocation2 + $0x510] sm:$0xff]
    %v368 = vld [vmem:[#allocation2 + $0x518] sm:$0xff]
    %v369 = vld [vmem:[#allocation2 + $0x520] sm:$0xff]
    %v370 = vld [vmem:[#allocation2 + $0x528] sm:$0xff]
    %v371 = vld [vmem:[#allocation2 + $0x530] sm:$0xff]
    %v372 = vld [vmem:[#allocation2 + $0x538] sm:$0xff]
    %v373 = vld [vmem:[#allocation2 + $0x540] sm:$0xff]
    %v374 = vld [vmem:[#allocation2 + $0x548] sm:$0xff]
    %v375 = vld [vmem:[#allocation2 + $0x550] sm:$0xff]
    %v376 = vld [vmem:[#allocation2 + $0x558] sm:$0xff]
    %v377 = vld [vmem:[#allocation2 + $0x560] sm:$0xff]
    %v378 = vld [vmem:[#allocation2 + $0x568] sm:$0xff]
    %v379 = vld [vmem:[#allocation2 + $0x570] sm:$0xff]
    %v380 = vld [vmem:[#allocation2 + $0x578] sm:$0xff]
    %v381 = vld [vmem:[#allocation2 + $0x580] sm:$0xff]
    %v382 = vld [vmem:[#allocation2 + $0x588] sm:$0xff]
    %v383 = vld [vmem:[#allocation2 + $0x590] sm:$0xff]
    %v384 = vld [vmem:[#allocation2 + $0x598] sm:$0xff]
    %v385 = vld [vmem:[#allocation2 + $0x5a0] sm:$0xff]
    %v386 = vld [vmem:[#allocation2 + $0x5a8] sm:$0xff]
    %v387 = vld [vmem:[#allocation2 + $0x5b0] sm:$0xff]
    %v388 = vld [vmem:[#allocation2 + $0x5b8] sm:$0xff]
    %v389 = vld [vmem:[#allocation2 + $0x5c0] sm:$0xff]
    %v390 = vld [vmem:[#allocation2 + $0x5c8] sm:$0xff]
    %v391 = vld [vmem:[#allocation2 + $0x5d0] sm:$0xff]
    %v392 = vld [vmem:[#allocation2 + $0x5d8] sm:$0xff]
    %v393 = vld [vmem:[#allocation2 + $0x5e0] sm:$0xff]
    %v394 = vld [vmem:[#allocation2 + $0x5e8] sm:$0xff]
    %v395 = vld [vmem:[#allocation2 + $0x5f0] sm:$0xff]
    %v396 = vld [vmem:[#allocation2 + $0x5f8] sm:$0xff]
    %v397 = vpack.c.bf16 %v197, %v197
    %v398 = vpack.c.bf16 %v198, %v198
    %v399 = vld [vmem:[%s5] sm:$0xff]
    %v400 = vld [vmem:[%s5 + $0x8] sm:$0xff]
    %v401 = vld [vmem:[%s5 + $0x10] sm:$0xff]
    %v402 = vld [vmem:[%s5 + $0x18] sm:$0xff]
    %v403 = vld [vmem:[%s5 + $0x20] sm:$0xff]
    %v404 = vld [vmem:[%s5 + $0x28] sm:$0xff]
    %v405 = vld [vmem:[%s5 + $0x30] sm:$0xff]
    %v406 = vld [vmem:[%s5 + $0x38] sm:$0xff]
    %v407 = vld [vmem:[%s5 + $0x40] sm:$0xff]
    %v408 = vld [vmem:[%s5 + $0x48] sm:$0xff]
    %v409 = vld [vmem:[%s5 + $0x50] sm:$0xff]
    %v410 = vld [vmem:[%s5 + $0x58] sm:$0xff]
    %v411 = vld [vmem:[%s5 + $0x60] sm:$0xff]
    %v412 = vld [vmem:[%s5 + $0x68] sm:$0xff]
    %v413 = vld [vmem:[%s5 + $0x70] sm:$0xff]
    %v414 = vld [vmem:[%s5 + $0x78] sm:$0xff]
    %v415 = vld [vmem:[%s5 + $0x80] sm:$0xff]
    %v416 = vld [vmem:[%s5 + $0x88] sm:$0xff]
    %v417 = vld [vmem:[%s5 + $0x90] sm:$0xff]
    %v418 = vld [vmem:[%s5 + $0x98] sm:$0xff]
    %v419 = vld [vmem:[%s5 + $0xa0] sm:$0xff]
    %v420 = vld [vmem:[%s5 + $0xa8] sm:$0xff]
    %v421 = vld [vmem:[%s5 + $0xb0] sm:$0xff]
    %v422 = vld [vmem:[%s5 + $0xb8] sm:$0xff]
    %v423 = vld [vmem:[%s5 + $0xc0] sm:$0xff]
    %v424 = vld [vmem:[%s5 + $0xc8] sm:$0xff]
    %v425 = vld [vmem:[%s5 + $0xd0] sm:$0xff]
    %v426 = vld [vmem:[%s5 + $0xd8] sm:$0xff]
    %v427 = vld [vmem:[%s5 + $0xe0] sm:$0xff]
    %v428 = vld [vmem:[%s5 + $0xe8] sm:$0xff]
    %v429 = vld [vmem:[%s5 + $0xf0] sm:$0xff]
    %v430 = vld [vmem:[%s5 + $0xf8] sm:$0xff]
    %v463 = vunpack.c.l.b16 %v399
    %v464 = vunpack.c.h.b16 %v399
    %v465 = vunpack.c.l.b16 %v400
    %v466 = vunpack.c.h.b16 %v400
    %v467 = vunpack.c.l.b16 %v401
    %v468 = vunpack.c.h.b16 %v401
    %v469 = vunpack.c.l.b16 %v402
    %v470 = vunpack.c.h.b16 %v402
    %v471 = vunpack.c.l.b16 %v403
    %v472 = vunpack.c.h.b16 %v403
    %v473 = vunpack.c.l.b16 %v404
    %v474 = vunpack.c.h.b16 %v404
    %v475 = vunpack.c.l.b16 %v405
    %v476 = vunpack.c.h.b16 %v405
    %v477 = vunpack.c.l.b16 %v406
    %v478 = vunpack.c.h.b16 %v406
    %v479 = vunpack.c.l.b16 %v407
    %v480 = vunpack.c.h.b16 %v407
    %v481 = vunpack.c.l.b16 %v408
    %v482 = vunpack.c.h.b16 %v408
    %v483 = vunpack.c.l.b16 %v409
    %v484 = vunpack.c.h.b16 %v409
    %v485 = vunpack.c.l.b16 %v410
    %v486 = vunpack.c.h.b16 %v410
    %v487 = vunpack.c.l.b16 %v411
    %v488 = vunpack.c.h.b16 %v411
    %v489 = vunpack.c.l.b16 %v412
    %v490 = vunpack.c.h.b16 %v412
    %v491 = vunpack.c.l.b16 %v413
    %v492 = vunpack.c.h.b16 %v413
    %v493 = vunpack.c.l.b16 %v414
    %v494 = vunpack.c.h.b16 %v414
    %v495 = vunpack.c.l.b16 %v415
    %v496 = vunpack.c.h.b16 %v415
    %v497 = vunpack.c.l.b16 %v416
    %v498 = vunpack.c.h.b16 %v416
    %v499 = vunpack.c.l.b16 %v417
    %v500 = vunpack.c.h.b16 %v417
    %v501 = vunpack.c.l.b16 %v418
    %v502 = vunpack.c.h.b16 %v418
    %v503 = vunpack.c.l.b16 %v419
    %v504 = vunpack.c.h.b16 %v419
    %v505 = vunpack.c.l.b16 %v420
    %v506 = vunpack.c.h.b16 %v420
    %v507 = vunpack.c.l.b16 %v421
    %v508 = vunpack.c.h.b16 %v421
    %v509 = vunpack.c.l.b16 %v422
    %v510 = vunpack.c.h.b16 %v422
    %v511 = vunpack.c.l.b16 %v423
    %v512 = vunpack.c.h.b16 %v423
    %v513 = vunpack.c.l.b16 %v424
    %v514 = vunpack.c.h.b16 %v424
    %v515 = vunpack.c.l.b16 %v425
    %v516 = vunpack.c.h.b16 %v425
    %v517 = vunpack.c.l.b16 %v426
    %v518 = vunpack.c.h.b16 %v426
    %v519 = vunpack.c.l.b16 %v427
    %v520 = vunpack.c.h.b16 %v427
    %v521 = vunpack.c.l.b16 %v428
    %v522 = vunpack.c.h.b16 %v428
    %v523 = vunpack.c.l.b16 %v429
    %v524 = vunpack.c.h.b16 %v429
    %v525 = vunpack.c.l.b16 %v430
    %v526 = vunpack.c.h.b16 %v430
    %v527 = vpack.c.b16 %v465, %v463
    %v528 = vpack.c.b16 %v466, %v464
    %v529 = vpack.c.b16 %v469, %v467
    %v530 = vpack.c.b16 %v470, %v468
    %v531 = vpack.c.b16 %v473, %v471
    %v532 = vpack.c.b16 %v474, %v472
    %v533 = vpack.c.b16 %v477, %v475
    %v534 = vpack.c.b16 %v478, %v476
    %v535 = vpack.c.b16 %v481, %v479
    %v536 = vpack.c.b16 %v482, %v480
    %v537 = vpack.c.b16 %v485, %v483
    %v538 = vpack.c.b16 %v486, %v484
    %v539 = vpack.c.b16 %v489, %v487
    %v540 = vpack.c.b16 %v490, %v488
    %v541 = vpack.c.b16 %v493, %v491
    %v542 = vpack.c.b16 %v494, %v492
    %v543 = vpack.c.b16 %v497, %v495
    %v544 = vpack.c.b16 %v498, %v496
    %v545 = vpack.c.b16 %v501, %v499
    %v546 = vpack.c.b16 %v502, %v500
    %v547 = vpack.c.b16 %v505, %v503
    %v548 = vpack.c.b16 %v506, %v504
    %v549 = vpack.c.b16 %v509, %v507
    %v550 = vpack.c.b16 %v510, %v508
    %v551 = vpack.c.b16 %v513, %v511
    %v552 = vpack.c.b16 %v514, %v512
    %v553 = vpack.c.b16 %v517, %v515
    %v554 = vpack.c.b16 %v518, %v516
    %v555 = vpack.c.b16 %v521, %v519
    %v556 = vpack.c.b16 %v522, %v520
    %v557 = vpack.c.b16 %v525, %v523
    %v558 = vpack.c.b16 %v526, %v524
    %591 = vmatprep.subr.bf16.mxu0 %v528
    %592 = vmatpush1.bf16.msra.mxu0 %v527
    %593 = vmatprep.subr.bf16.mxu0 %v530
    %594 = vmatpush1.bf16.msra.mxu0 %v529
    %595 = vmatprep.subr.bf16.mxu0 %v532
    %596 = vmatpush1.bf16.msra.mxu0 %v531
    %597 = vmatprep.subr.bf16.mxu0 %v534
    %598 = vmatpush1.bf16.msra.mxu0 %v533
    %599 = vmatprep.subr.bf16.mxu0 %v536
    %600 = vmatpush1.bf16.msra.mxu0 %v535
    %601 = vmatprep.subr.bf16.mxu0 %v538
    %602 = vmatpush1.bf16.msra.mxu0 %v537
    %603 = vmatprep.subr.bf16.mxu0 %v540
    %604 = vmatpush1.bf16.msra.mxu0 %v539
    %605 = vmatprep.subr.bf16.mxu0 %v542
    %606 = vmatpush1.bf16.msra.mxu0 %v541
    %607 = vmatprep.subr.bf16.mxu0 %v544
    %608 = vmatpush1.bf16.msra.mxu0 %v543
    %609 = vmatprep.subr.bf16.mxu0 %v546
    %610 = vmatpush1.bf16.msra.mxu0 %v545
    %611 = vmatprep.subr.bf16.mxu0 %v548
    %612 = vmatpush1.bf16.msra.mxu0 %v547
    %613 = vmatprep.subr.bf16.mxu0 %v550
    %614 = vmatpush1.bf16.msra.mxu0 %v549
    %615 = vmatprep.subr.bf16.mxu0 %v552
    %616 = vmatpush1.bf16.msra.mxu0 %v551
    %617 = vmatprep.subr.bf16.mxu0 %v554
    %618 = vmatpush1.bf16.msra.mxu0 %v553
    %619 = vmatprep.subr.bf16.mxu0 %v556
    %620 = vmatpush1.bf16.msra.mxu0 %v555
    %621 = vmatprep.subr.bf16.mxu0 %v558
    %622 = vmatpush1.bf16.msra.mxu0 %v557
    %623 = vmatprep.mubr.bf16.mxu0 %v398
    %624 = vmatmul.mubr.bf16.gmra.mrb[0].mxu0 %v397
    %v625 = vpop.f32.mrb[0].mxu0
    %v626 = vadd.f32 0.0, %v625
    %v627 = vpop.f32.mrb[0].mxu0
    %v628 = vadd.f32 0.0, %v627
    %v629 = vpop.f32.mrb[0].mxu0
    %v630 = vpop.f32.mrb[0].mxu0
    %631 = vdwg.mxu0
    %v638 = vunpack.c.l.b16 %v199
    %v639 = vunpack.c.h.b16 %v199
    %v640 = vunpack.c.l.b16 %v200
    %v641 = vunpack.c.h.b16 %v200
    %v642 = vunpack.c.l.b16 %v201
    %v643 = vunpack.c.h.b16 %v201
    %v644 = vunpack.c.l.b16 %v202
    %v645 = vunpack.c.h.b16 %v202
    %v646 = vunpack.c.l.b16 %v203
    %v647 = vunpack.c.h.b16 %v203
    %v648 = vunpack.c.l.b16 %v204
    %v649 = vunpack.c.h.b16 %v204
    %v650 = vpack.c.b16 %v638, %v638
    %v651 = vpack.c.b16 %v639, %v639
    %v652 = vpack.c.b16 %v640, %v640
    %v653 = vpack.c.b16 %v641, %v641
    %v654 = vpack.c.b16 %v642, %v642
    %v655 = vpack.c.b16 %v643, %v643
    %v656 = vpack.c.b16 %v644, %v644
    %v657 = vpack.c.b16 %v645, %v645
    %v658 = vpack.c.b16 %v646, %v646
    %v659 = vpack.c.b16 %v647, %v647
    %v660 = vpack.c.b16 %v648, %v648
    %v661 = vpack.c.b16 %v649, %v649
    %v866 = vunpack.c.l.b16 %v205
    %v867 = vunpack.c.h.b16 %v205
    %v868 = vunpack.c.l.b16 %v206
    %v869 = vunpack.c.h.b16 %v206
    %v870 = vunpack.c.l.b16 %v207
    %v871 = vunpack.c.h.b16 %v207
    %v872 = vunpack.c.l.b16 %v208
    %v873 = vunpack.c.h.b16 %v208
    %v874 = vunpack.c.l.b16 %v209
    %v875 = vunpack.c.h.b16 %v209
    %v876 = vunpack.c.l.b16 %v210
    %v877 = vunpack.c.h.b16 %v210
    %v878 = vunpack.c.l.b16 %v211
    %v879 = vunpack.c.h.b16 %v211
    %v880 = vunpack.c.l.b16 %v212
    %v881 = vunpack.c.h.b16 %v212
    %v882 = vunpack.c.l.b16 %v213
    %v883 = vunpack.c.h.b16 %v213
    %v884 = vunpack.c.l.b16 %v214
    %v885 = vunpack.c.h.b16 %v214
    %v886 = vunpack.c.l.b16 %v215
    %v887 = vunpack.c.h.b16 %v215
    %v888 = vunpack.c.l.b16 %v216
    %v889 = vunpack.c.h.b16 %v216
    %v890 = vunpack.c.l.b16 %v217
    %v891 = vunpack.c.h.b16 %v217
    %v892 = vunpack.c.l.b16 %v218
    %v893 = vunpack.c.h.b16 %v218
    %v894 = vunpack.c.l.b16 %v219
    %v895 = vunpack.c.h.b16 %v219
    %v896 = vunpack.c.l.b16 %v220
    %v897 = vunpack.c.h.b16 %v220
    %v898 = vunpack.c.l.b16 %v221
    %v899 = vunpack.c.h.b16 %v221
    %v900 = vunpack.c.l.b16 %v222
    %v901 = vunpack.c.h.b16 %v222
    %v902 = vunpack.c.l.b16 %v223
    %v903 = vunpack.c.h.b16 %v223
    %v904 = vunpack.c.l.b16 %v224
    %v905 = vunpack.c.h.b16 %v224
    %v906 = vunpack.c.l.b16 %v225
    %v907 = vunpack.c.h.b16 %v225
    %v908 = vunpack.c.l.b16 %v226
    %v909 = vunpack.c.h.b16 %v226
    %v910 = vunpack.c.l.b16 %v227
    %v911 = vunpack.c.h.b16 %v227
    %v912 = vunpack.c.l.b16 %v228
    %v913 = vunpack.c.h.b16 %v228
    %v914 = vunpack.c.l.b16 %v229
    %v915 = vunpack.c.h.b16 %v229
    %v916 = vunpack.c.l.b16 %v230
    %v917 = vunpack.c.h.b16 %v230
    %v918 = vunpack.c.l.b16 %v231
    %v919 = vunpack.c.h.b16 %v231
    %v920 = vunpack.c.l.b16 %v232
    %v921 = vunpack.c.h.b16 %v232
    %v922 = vunpack.c.l.b16 %v233
    %v923 = vunpack.c.h.b16 %v233
    %v924 = vunpack.c.l.b16 %v234
    %v925 = vunpack.c.h.b16 %v234
    %v926 = vunpack.c.l.b16 %v235
    %v927 = vunpack.c.h.b16 %v235
    %v928 = vunpack.c.l.b16 %v236
    %v929 = vunpack.c.h.b16 %v236
    %v930 = vunpack.c.l.b16 %v237
    %v931 = vunpack.c.h.b16 %v237
    %v932 = vunpack.c.l.b16 %v238
    %v933 = vunpack.c.h.b16 %v238
    %v934 = vunpack.c.l.b16 %v239
    %v935 = vunpack.c.h.b16 %v239
    %v936 = vunpack.c.l.b16 %v240
    %v937 = vunpack.c.h.b16 %v240
    %v938 = vunpack.c.l.b16 %v241
    %v939 = vunpack.c.h.b16 %v241
    %v940 = vunpack.c.l.b16 %v242
    %v941 = vunpack.c.h.b16 %v242
    %v942 = vunpack.c.l.b16 %v243
    %v943 = vunpack.c.h.b16 %v243
    %v944 = vunpack.c.l.b16 %v244
    %v945 = vunpack.c.h.b16 %v244
    %v946 = vunpack.c.l.b16 %v245
    %v947 = vunpack.c.h.b16 %v245
    %v948 = vunpack.c.l.b16 %v246
    %v949 = vunpack.c.h.b16 %v246
    %v950 = vunpack.c.l.b16 %v247
    %v951 = vunpack.c.h.b16 %v247
    %v952 = vunpack.c.l.b16 %v248
    %v953 = vunpack.c.h.b16 %v248
    %v954 = vunpack.c.l.b16 %v249
    %v955 = vunpack.c.h.b16 %v249
    %v956 = vunpack.c.l.b16 %v250
    %v957 = vunpack.c.h.b16 %v250
    %v958 = vunpack.c.l.b16 %v251
    %v959 = vunpack.c.h.b16 %v251
    %v960 = vunpack.c.l.b16 %v252
    %v961 = vunpack.c.h.b16 %v252
    %v962 = vunpack.c.l.b16 %v253
    %v963 = vunpack.c.h.b16 %v253
    %v964 = vunpack.c.l.b16 %v254
    %v965 = vunpack.c.h.b16 %v254
    %v966 = vunpack.c.l.b16 %v255
    %v967 = vunpack.c.h.b16 %v255
    %v968 = vunpack.c.l.b16 %v256
    %v969 = vunpack.c.h.b16 %v256
    %v970 = vunpack.c.l.b16 %v257
    %v971 = vunpack.c.h.b16 %v257
    %v972 = vunpack.c.l.b16 %v258
    %v973 = vunpack.c.h.b16 %v258
    %v974 = vunpack.c.l.b16 %v259
    %v975 = vunpack.c.h.b16 %v259
    %v976 = vunpack.c.l.b16 %v260
    %v977 = vunpack.c.h.b16 %v260
    %v978 = vunpack.c.l.b16 %v261
    %v979 = vunpack.c.h.b16 %v261
    %v980 = vunpack.c.l.b16 %v262
    %v981 = vunpack.c.h.b16 %v262
    %v982 = vunpack.c.l.b16 %v263
    %v983 = vunpack.c.h.b16 %v263
    %v984 = vunpack.c.l.b16 %v264
    %v985 = vunpack.c.h.b16 %v264
    %v986 = vunpack.c.l.b16 %v265
    %v987 = vunpack.c.h.b16 %v265
    %v988 = vunpack.c.l.b16 %v266
    %v989 = vunpack.c.h.b16 %v266
    %v990 = vunpack.c.l.b16 %v267
    %v991 = vunpack.c.h.b16 %v267
    %v992 = vunpack.c.l.b16 %v268
    %v993 = vunpack.c.h.b16 %v268
    %v994 = vunpack.c.l.b16 %v269
    %v995 = vunpack.c.h.b16 %v269
    %v996 = vunpack.c.l.b16 %v270
    %v997 = vunpack.c.h.b16 %v270
    %v998 = vunpack.c.l.b16 %v271
    %v999 = vunpack.c.h.b16 %v271
    %v1000 = vunpack.c.l.b16 %v272
    %v1001 = vunpack.c.h.b16 %v272
    %v1002 = vunpack.c.l.b16 %v273
    %v1003 = vunpack.c.h.b16 %v273
    %v1004 = vunpack.c.l.b16 %v274
    %v1005 = vunpack.c.h.b16 %v274
    %v1006 = vunpack.c.l.b16 %v275
    %v1007 = vunpack.c.h.b16 %v275
    %v1008 = vunpack.c.l.b16 %v276
    %v1009 = vunpack.c.h.b16 %v276
    %v1010 = vunpack.c.l.b16 %v277
    %v1011 = vunpack.c.h.b16 %v277
    %v1012 = vunpack.c.l.b16 %v278
    %v1013 = vunpack.c.h.b16 %v278
    %v1014 = vunpack.c.l.b16 %v279
    %v1015 = vunpack.c.h.b16 %v279
    %v1016 = vunpack.c.l.b16 %v280
    %v1017 = vunpack.c.h.b16 %v280
    %v1018 = vunpack.c.l.b16 %v281
    %v1019 = vunpack.c.h.b16 %v281
    %v1020 = vunpack.c.l.b16 %v282
    %v1021 = vunpack.c.h.b16 %v282
    %v1022 = vunpack.c.l.b16 %v283
    %v1023 = vunpack.c.h.b16 %v283
    %v1024 = vunpack.c.l.b16 %v284
    %v1025 = vunpack.c.h.b16 %v284
    %v1026 = vunpack.c.l.b16 %v285
    %v1027 = vunpack.c.h.b16 %v285
    %v1028 = vunpack.c.l.b16 %v286
    %v1029 = vunpack.c.h.b16 %v286
    %v1030 = vunpack.c.l.b16 %v287
    %v1031 = vunpack.c.h.b16 %v287
    %v1032 = vunpack.c.l.b16 %v288
    %v1033 = vunpack.c.h.b16 %v288
    %v1034 = vunpack.c.l.b16 %v289
    %v1035 = vunpack.c.h.b16 %v289
    %v1036 = vunpack.c.l.b16 %v290
    %v1037 = vunpack.c.h.b16 %v290
    %v1038 = vunpack.c.l.b16 %v291
    %v1039 = vunpack.c.h.b16 %v291
    %v1040 = vunpack.c.l.b16 %v292
    %v1041 = vunpack.c.h.b16 %v292
    %v1042 = vunpack.c.l.b16 %v293
    %v1043 = vunpack.c.h.b16 %v293
    %v1044 = vunpack.c.l.b16 %v294
    %v1045 = vunpack.c.h.b16 %v294
    %v1046 = vunpack.c.l.b16 %v295
    %v1047 = vunpack.c.h.b16 %v295
    %v1048 = vunpack.c.l.b16 %v296
    %v1049 = vunpack.c.h.b16 %v296
    %v1050 = vunpack.c.l.b16 %v297
    %v1051 = vunpack.c.h.b16 %v297
    %v1052 = vunpack.c.l.b16 %v298
    %v1053 = vunpack.c.h.b16 %v298
    %v1054 = vunpack.c.l.b16 %v299
    %v1055 = vunpack.c.h.b16 %v299
    %v1056 = vunpack.c.l.b16 %v300
    %v1057 = vunpack.c.h.b16 %v300
    %v1058 = vunpack.c.l.b16 %v301
    %v1059 = vunpack.c.h.b16 %v301
    %v1060 = vunpack.c.l.b16 %v302
    %v1061 = vunpack.c.h.b16 %v302
    %v1062 = vunpack.c.l.b16 %v303
    %v1063 = vunpack.c.h.b16 %v303
    %v1064 = vunpack.c.l.b16 %v304
    %v1065 = vunpack.c.h.b16 %v304
    %v1066 = vunpack.c.l.b16 %v305
    %v1067 = vunpack.c.h.b16 %v305
    %v1068 = vunpack.c.l.b16 %v306
    %v1069 = vunpack.c.h.b16 %v306
    %v1070 = vunpack.c.l.b16 %v307
    %v1071 = vunpack.c.h.b16 %v307
    %v1072 = vunpack.c.l.b16 %v308
    %v1073 = vunpack.c.h.b16 %v308
    %v1074 = vunpack.c.l.b16 %v309
    %v1075 = vunpack.c.h.b16 %v309
    %v1076 = vunpack.c.l.b16 %v310
    %v1077 = vunpack.c.h.b16 %v310
    %v1078 = vunpack.c.l.b16 %v311
    %v1079 = vunpack.c.h.b16 %v311
    %v1080 = vunpack.c.l.b16 %v312
    %v1081 = vunpack.c.h.b16 %v312
    %v1082 = vunpack.c.l.b16 %v313
    %v1083 = vunpack.c.h.b16 %v313
    %v1084 = vunpack.c.l.b16 %v314
    %v1085 = vunpack.c.h.b16 %v314
    %v1086 = vunpack.c.l.b16 %v315
    %v1087 = vunpack.c.h.b16 %v315
    %v1088 = vunpack.c.l.b16 %v316
    %v1089 = vunpack.c.h.b16 %v316
    %v1090 = vunpack.c.l.b16 %v317
    %v1091 = vunpack.c.h.b16 %v317
    %v1092 = vunpack.c.l.b16 %v318
    %v1093 = vunpack.c.h.b16 %v318
    %v1094 = vunpack.c.l.b16 %v319
    %v1095 = vunpack.c.h.b16 %v319
    %v1096 = vunpack.c.l.b16 %v320
    %v1097 = vunpack.c.h.b16 %v320
    %v1098 = vunpack.c.l.b16 %v321
    %v1099 = vunpack.c.h.b16 %v321
    %v1100 = vunpack.c.l.b16 %v322
    %v1101 = vunpack.c.h.b16 %v322
    %v1102 = vunpack.c.l.b16 %v323
    %v1103 = vunpack.c.h.b16 %v323
    %v1104 = vunpack.c.l.b16 %v324
    %v1105 = vunpack.c.h.b16 %v324
    %v1106 = vunpack.c.l.b16 %v325
    %v1107 = vunpack.c.h.b16 %v325
    %v1108 = vunpack.c.l.b16 %v326
    %v1109 = vunpack.c.h.b16 %v326
    %v1110 = vunpack.c.l.b16 %v327
    %v1111 = vunpack.c.h.b16 %v327
    %v1112 = vunpack.c.l.b16 %v328
    %v1113 = vunpack.c.h.b16 %v328
    %v1114 = vunpack.c.l.b16 %v329
    %v1115 = vunpack.c.h.b16 %v329
    %v1116 = vunpack.c.l.b16 %v330
    %v1117 = vunpack.c.h.b16 %v330
    %v1118 = vunpack.c.l.b16 %v331
    %v1119 = vunpack.c.h.b16 %v331
    %v1120 = vunpack.c.l.b16 %v332
    %v1121 = vunpack.c.h.b16 %v332
    %v1122 = vunpack.c.l.b16 %v333
    %v1123 = vunpack.c.h.b16 %v333
    %v1124 = vunpack.c.l.b16 %v334
    %v1125 = vunpack.c.h.b16 %v334
    %v1126 = vunpack.c.l.b16 %v335
    %v1127 = vunpack.c.h.b16 %v335
    %v1128 = vunpack.c.l.b16 %v336
    %v1129 = vunpack.c.h.b16 %v336
    %v1130 = vunpack.c.l.b16 %v337
    %v1131 = vunpack.c.h.b16 %v337
    %v1132 = vunpack.c.l.b16 %v338
    %v1133 = vunpack.c.h.b16 %v338
    %v1134 = vunpack.c.l.b16 %v339
    %v1135 = vunpack.c.h.b16 %v339
    %v1136 = vunpack.c.l.b16 %v340
    %v1137 = vunpack.c.h.b16 %v340
    %v1138 = vunpack.c.l.b16 %v341
    %v1139 = vunpack.c.h.b16 %v341
    %v1140 = vunpack.c.l.b16 %v342
    %v1141 = vunpack.c.h.b16 %v342
    %v1142 = vunpack.c.l.b16 %v343
    %v1143 = vunpack.c.h.b16 %v343
    %v1144 = vunpack.c.l.b16 %v344
    %v1145 = vunpack.c.h.b16 %v344
    %v1146 = vunpack.c.l.b16 %v345
    %v1147 = vunpack.c.h.b16 %v345
    %v1148 = vunpack.c.l.b16 %v346
    %v1149 = vunpack.c.h.b16 %v346
    %v1150 = vunpack.c.l.b16 %v347
    %v1151 = vunpack.c.h.b16 %v347
    %v1152 = vunpack.c.l.b16 %v348
    %v1153 = vunpack.c.h.b16 %v348
    %v1154 = vunpack.c.l.b16 %v349
    %v1155 = vunpack.c.h.b16 %v349
    %v1156 = vunpack.c.l.b16 %v350
    %v1157 = vunpack.c.h.b16 %v350
    %v1158 = vunpack.c.l.b16 %v351
    %v1159 = vunpack.c.h.b16 %v351
    %v1160 = vunpack.c.l.b16 %v352
    %v1161 = vunpack.c.h.b16 %v352
    %v1162 = vunpack.c.l.b16 %v353
    %v1163 = vunpack.c.h.b16 %v353
    %v1164 = vunpack.c.l.b16 %v354
    %v1165 = vunpack.c.h.b16 %v354
    %v1166 = vunpack.c.l.b16 %v355
    %v1167 = vunpack.c.h.b16 %v355
    %v1168 = vunpack.c.l.b16 %v356
    %v1169 = vunpack.c.h.b16 %v356
    %v1170 = vunpack.c.l.b16 %v357
    %v1171 = vunpack.c.h.b16 %v357
    %v1172 = vunpack.c.l.b16 %v358
    %v1173 = vunpack.c.h.b16 %v358
    %v1174 = vunpack.c.l.b16 %v359
    %v1175 = vunpack.c.h.b16 %v359
    %v1176 = vunpack.c.l.b16 %v360
    %v1177 = vunpack.c.h.b16 %v360
    %v1178 = vunpack.c.l.b16 %v361
    %v1179 = vunpack.c.h.b16 %v361
    %v1180 = vunpack.c.l.b16 %v362
    %v1181 = vunpack.c.h.b16 %v362
    %v1182 = vunpack.c.l.b16 %v363
    %v1183 = vunpack.c.h.b16 %v363
    %v1184 = vunpack.c.l.b16 %v364
    %v1185 = vunpack.c.h.b16 %v364
    %v1186 = vunpack.c.l.b16 %v365
    %v1187 = vunpack.c.h.b16 %v365
    %v1188 = vunpack.c.l.b16 %v366
    %v1189 = vunpack.c.h.b16 %v366
    %v1190 = vunpack.c.l.b16 %v367
    %v1191 = vunpack.c.h.b16 %v367
    %v1192 = vunpack.c.l.b16 %v368
    %v1193 = vunpack.c.h.b16 %v368
    %v1194 = vunpack.c.l.b16 %v369
    %v1195 = vunpack.c.h.b16 %v369
    %v1196 = vunpack.c.l.b16 %v370
    %v1197 = vunpack.c.h.b16 %v370
    %v1198 = vunpack.c.l.b16 %v371
    %v1199 = vunpack.c.h.b16 %v371
    %v1200 = vunpack.c.l.b16 %v372
    %v1201 = vunpack.c.h.b16 %v372
    %v1202 = vunpack.c.l.b16 %v373
    %v1203 = vunpack.c.h.b16 %v373
    %v1204 = vunpack.c.l.b16 %v374
    %v1205 = vunpack.c.h.b16 %v374
    %v1206 = vunpack.c.l.b16 %v375
    %v1207 = vunpack.c.h.b16 %v375
    %v1208 = vunpack.c.l.b16 %v376
    %v1209 = vunpack.c.h.b16 %v376
    %v1210 = vunpack.c.l.b16 %v377
    %v1211 = vunpack.c.h.b16 %v377
    %v1212 = vunpack.c.l.b16 %v378
    %v1213 = vunpack.c.h.b16 %v378
    %v1214 = vunpack.c.l.b16 %v379
    %v1215 = vunpack.c.h.b16 %v379
    %v1216 = vunpack.c.l.b16 %v380
    %v1217 = vunpack.c.h.b16 %v380
    %v1218 = vunpack.c.l.b16 %v381
    %v1219 = vunpack.c.h.b16 %v381
    %v1220 = vunpack.c.l.b16 %v382
    %v1221 = vunpack.c.h.b16 %v382
    %v1222 = vunpack.c.l.b16 %v383
    %v1223 = vunpack.c.h.b16 %v383
    %v1224 = vunpack.c.l.b16 %v384
    %v1225 = vunpack.c.h.b16 %v384
    %v1226 = vunpack.c.l.b16 %v385
    %v1227 = vunpack.c.h.b16 %v385
    %v1228 = vunpack.c.l.b16 %v386
    %v1229 = vunpack.c.h.b16 %v386
    %v1230 = vunpack.c.l.b16 %v387
    %v1231 = vunpack.c.h.b16 %v387
    %v1232 = vunpack.c.l.b16 %v388
    %v1233 = vunpack.c.h.b16 %v388
    %v1234 = vunpack.c.l.b16 %v389
    %v1235 = vunpack.c.h.b16 %v389
    %v1236 = vunpack.c.l.b16 %v390
    %v1237 = vunpack.c.h.b16 %v390
    %v1238 = vunpack.c.l.b16 %v391
    %v1239 = vunpack.c.h.b16 %v391
    %v1240 = vunpack.c.l.b16 %v392
    %v1241 = vunpack.c.h.b16 %v392
    %v1242 = vunpack.c.l.b16 %v393
    %v1243 = vunpack.c.h.b16 %v393
    %v1244 = vunpack.c.l.b16 %v394
    %v1245 = vunpack.c.h.b16 %v394
    %v1246 = vunpack.c.l.b16 %v395
    %v1247 = vunpack.c.h.b16 %v395
    %v1248 = vunpack.c.l.b16 %v396
    %v1249 = vunpack.c.h.b16 %v396
    %v1250 = vpack.c.b16 %v868, %v866
    %v1251 = vpack.c.b16 %v869, %v867
    %v1252 = vpack.c.b16 %v872, %v870
    %v1253 = vpack.c.b16 %v873, %v871
    %v1254 = vpack.c.b16 %v876, %v874
    %v1255 = vpack.c.b16 %v877, %v875
    %v1256 = vpack.c.b16 %v880, %v878
    %v1257 = vpack.c.b16 %v881, %v879
    %v1258 = vpack.c.b16 %v884, %v882
    %v1259 = vpack.c.b16 %v885, %v883
    %v1260 = vpack.c.b16 %v888, %v886
    %v1261 = vpack.c.b16 %v889, %v887
    %v1262 = vpack.c.b16 %v892, %v890
    %v1263 = vpack.c.b16 %v893, %v891
    %v1264 = vpack.c.b16 %v896, %v894
    %v1265 = vpack.c.b16 %v897, %v895
    %v1266 = vpack.c.b16 %v900, %v898
    %v1267 = vpack.c.b16 %v901, %v899
    %v1268 = vpack.c.b16 %v904, %v902
    %v1269 = vpack.c.b16 %v905, %v903
    %v1270 = vpack.c.b16 %v908, %v906
    %v1271 = vpack.c.b16 %v909, %v907
    %v1272 = vpack.c.b16 %v912, %v910
    %v1273 = vpack.c.b16 %v913, %v911
    %v1274 = vpack.c.b16 %v916, %v914
    %v1275 = vpack.c.b16 %v917, %v915
    %v1276 = vpack.c.b16 %v920, %v918
    %v1277 = vpack.c.b16 %v921, %v919
    %v1278 = vpack.c.b16 %v924, %v922
    %v1279 = vpack.c.b16 %v925, %v923
    %v1280 = vpack.c.b16 %v928, %v926
    %v1281 = vpack.c.b16 %v929, %v927
    %v1282 = vpack.c.b16 %v932, %v930
    %v1283 = vpack.c.b16 %v933, %v931
    %v1284 = vpack.c.b16 %v936, %v934
    %v1285 = vpack.c.b16 %v937, %v935
    %v1286 = vpack.c.b16 %v940, %v938
    %v1287 = vpack.c.b16 %v941, %v939
    %v1288 = vpack.c.b16 %v944, %v942
    %v1289 = vpack.c.b16 %v945, %v943
    %v1290 = vpack.c.b16 %v948, %v946
    %v1291 = vpack.c.b16 %v949, %v947
    %v1292 = vpack.c.b16 %v952, %v950
    %v1293 = vpack.c.b16 %v953, %v951
    %v1294 = vpack.c.b16 %v956, %v954
    %v1295 = vpack.c.b16 %v957, %v955
    %v1296 = vpack.c.b16 %v960, %v958
    %v1297 = vpack.c.b16 %v961, %v959
    %v1298 = vpack.c.b16 %v964, %v962
    %v1299 = vpack.c.b16 %v965, %v963
    %v1300 = vpack.c.b16 %v968, %v966
    %v1301 = vpack.c.b16 %v969, %v967
    %v1302 = vpack.c.b16 %v972, %v970
    %v1303 = vpack.c.b16 %v973, %v971
    %v1304 = vpack.c.b16 %v976, %v974
    %v1305 = vpack.c.b16 %v977, %v975
    %v1306 = vpack.c.b16 %v980, %v978
    %v1307 = vpack.c.b16 %v981, %v979
    %v1308 = vpack.c.b16 %v984, %v982
    %v1309 = vpack.c.b16 %v985, %v983
    %v1310 = vpack.c.b16 %v988, %v986
    %v1311 = vpack.c.b16 %v989, %v987
    %v1312 = vpack.c.b16 %v992, %v990
    %v1313 = vpack.c.b16 %v993, %v991
    %v1314 = vpack.c.b16 %v996, %v994
    %v1315 = vpack.c.b16 %v997, %v995
    %v1316 = vpack.c.b16 %v1000, %v998
    %v1317 = vpack.c.b16 %v1001, %v999
    %v1318 = vpack.c.b16 %v1004, %v1002
    %v1319 = vpack.c.b16 %v1005, %v1003
    %v1320 = vpack.c.b16 %v1008, %v1006
    %v1321 = vpack.c.b16 %v1009, %v1007
    %v1322 = vpack.c.b16 %v1012, %v1010
    %v1323 = vpack.c.b16 %v1013, %v1011
    %v1324 = vpack.c.b16 %v1016, %v1014
    %v1325 = vpack.c.b16 %v1017, %v1015
    %v1326 = vpack.c.b16 %v1020, %v1018
    %v1327 = vpack.c.b16 %v1021, %v1019
    %v1328 = vpack.c.b16 %v1024, %v1022
    %v1329 = vpack.c.b16 %v1025, %v1023
    %v1330 = vpack.c.b16 %v1028, %v1026
    %v1331 = vpack.c.b16 %v1029, %v1027
    %v1332 = vpack.c.b16 %v1032, %v1030
    %v1333 = vpack.c.b16 %v1033, %v1031
    %v1334 = vpack.c.b16 %v1036, %v1034
    %v1335 = vpack.c.b16 %v1037, %v1035
    %v1336 = vpack.c.b16 %v1040, %v1038
    %v1337 = vpack.c.b16 %v1041, %v1039
    %v1338 = vpack.c.b16 %v1044, %v1042
    %v1339 = vpack.c.b16 %v1045, %v1043
    %v1340 = vpack.c.b16 %v1048, %v1046
    %v1341 = vpack.c.b16 %v1049, %v1047
    %v1342 = vpack.c.b16 %v1052, %v1050
    %v1343 = vpack.c.b16 %v1053, %v1051
    %v1344 = vpack.c.b16 %v1056, %v1054
    %v1345 = vpack.c.b16 %v1057, %v1055
    %v1346 = vpack.c.b16 %v1060, %v1058
    %v1347 = vpack.c.b16 %v1061, %v1059
    %v1348 = vpack.c.b16 %v1064, %v1062
    %v1349 = vpack.c.b16 %v1065, %v1063
    %v1350 = vpack.c.b16 %v1068, %v1066
    %v1351 = vpack.c.b16 %v1069, %v1067
    %v1352 = vpack.c.b16 %v1072, %v1070
    %v1353 = vpack.c.b16 %v1073, %v1071
    %v1354 = vpack.c.b16 %v1076, %v1074
    %v1355 = vpack.c.b16 %v1077, %v1075
    %v1356 = vpack.c.b16 %v1080, %v1078
    %v1357 = vpack.c.b16 %v1081, %v1079
    %v1358 = vpack.c.b16 %v1084, %v1082
    %v1359 = vpack.c.b16 %v1085, %v1083
    %v1360 = vpack.c.b16 %v1088, %v1086
    %v1361 = vpack.c.b16 %v1089, %v1087
    %v1362 = vpack.c.b16 %v1092, %v1090
    %v1363 = vpack.c.b16 %v1093, %v1091
    %v1364 = vpack.c.b16 %v1096, %v1094
    %v1365 = vpack.c.b16 %v1097, %v1095
    %v1366 = vpack.c.b16 %v1100, %v1098
    %v1367 = vpack.c.b16 %v1101, %v1099
    %v1368 = vpack.c.b16 %v1104, %v1102
    %v1369 = vpack.c.b16 %v1105, %v1103
    %v1370 = vpack.c.b16 %v1108, %v1106
    %v1371 = vpack.c.b16 %v1109, %v1107
    %v1372 = vpack.c.b16 %v1112, %v1110
    %v1373 = vpack.c.b16 %v1113, %v1111
    %v1374 = vpack.c.b16 %v1116, %v1114
    %v1375 = vpack.c.b16 %v1117, %v1115
    %v1376 = vpack.c.b16 %v1120, %v1118
    %v1377 = vpack.c.b16 %v1121, %v1119
    %v1378 = vpack.c.b16 %v1124, %v1122
    %v1379 = vpack.c.b16 %v1125, %v1123
    %v1380 = vpack.c.b16 %v1128, %v1126
    %v1381 = vpack.c.b16 %v1129, %v1127
    %v1382 = vpack.c.b16 %v1132, %v1130
    %v1383 = vpack.c.b16 %v1133, %v1131
    %v1384 = vpack.c.b16 %v1136, %v1134
    %v1385 = vpack.c.b16 %v1137, %v1135
    %v1386 = vpack.c.b16 %v1140, %v1138
    %v1387 = vpack.c.b16 %v1141, %v1139
    %v1388 = vpack.c.b16 %v1144, %v1142
    %v1389 = vpack.c.b16 %v1145, %v1143
    %v1390 = vpack.c.b16 %v1148, %v1146
    %v1391 = vpack.c.b16 %v1149, %v1147
    %v1392 = vpack.c.b16 %v1152, %v1150
    %v1393 = vpack.c.b16 %v1153, %v1151
    %v1394 = vpack.c.b16 %v1156, %v1154
    %v1395 = vpack.c.b16 %v1157, %v1155
    %v1396 = vpack.c.b16 %v1160, %v1158
    %v1397 = vpack.c.b16 %v1161, %v1159
    %v1398 = vpack.c.b16 %v1164, %v1162
    %v1399 = vpack.c.b16 %v1165, %v1163
    %v1400 = vpack.c.b16 %v1168, %v1166
    %v1401 = vpack.c.b16 %v1169, %v1167
    %v1402 = vpack.c.b16 %v1172, %v1170
    %v1403 = vpack.c.b16 %v1173, %v1171
    %v1404 = vpack.c.b16 %v1176, %v1174
    %v1405 = vpack.c.b16 %v1177, %v1175
    %v1406 = vpack.c.b16 %v1180, %v1178
    %v1407 = vpack.c.b16 %v1181, %v1179
    %v1408 = vpack.c.b16 %v1184, %v1182
    %v1409 = vpack.c.b16 %v1185, %v1183
    %v1410 = vpack.c.b16 %v1188, %v1186
    %v1411 = vpack.c.b16 %v1189, %v1187
    %v1412 = vpack.c.b16 %v1192, %v1190
    %v1413 = vpack.c.b16 %v1193, %v1191
    %v1414 = vpack.c.b16 %v1196, %v1194
    %v1415 = vpack.c.b16 %v1197, %v1195
    %v1416 = vpack.c.b16 %v1200, %v1198
    %v1417 = vpack.c.b16 %v1201, %v1199
    %v1418 = vpack.c.b16 %v1204, %v1202
    %v1419 = vpack.c.b16 %v1205, %v1203
    %v1420 = vpack.c.b16 %v1208, %v1206
    %v1421 = vpack.c.b16 %v1209, %v1207
    %v1422 = vpack.c.b16 %v1212, %v1210
    %v1423 = vpack.c.b16 %v1213, %v1211
    %v1424 = vpack.c.b16 %v1216, %v1214
    %v1425 = vpack.c.b16 %v1217, %v1215
    %v1426 = vpack.c.b16 %v1220, %v1218
    %v1427 = vpack.c.b16 %v1221, %v1219
    %v1428 = vpack.c.b16 %v1224, %v1222
    %v1429 = vpack.c.b16 %v1225, %v1223
    %v1430 = vpack.c.b16 %v1228, %v1226
    %v1431 = vpack.c.b16 %v1229, %v1227
    %v1432 = vpack.c.b16 %v1232, %v1230
    %v1433 = vpack.c.b16 %v1233, %v1231
    %v1434 = vpack.c.b16 %v1236, %v1234
    %v1435 = vpack.c.b16 %v1237, %v1235
    %v1436 = vpack.c.b16 %v1240, %v1238
    %v1437 = vpack.c.b16 %v1241, %v1239
    %v1438 = vpack.c.b16 %v1244, %v1242
    %v1439 = vpack.c.b16 %v1245, %v1243
    %v1440 = vpack.c.b16 %v1248, %v1246
    %v1441 = vpack.c.b16 %v1249, %v1247
    %1634 = vmatprep.subr.bf16.mxu0 %v1251
    %1635 = vmatpush1.bf16.msra.mxu0 %v1250
    %1636 = vmatprep.subr.bf16.mxu0 %v1253
    %1637 = vmatpush1.bf16.msra.mxu0 %v1252
    %1638 = vmatprep.subr.bf16.mxu0 %v1255
    %1639 = vmatpush1.bf16.msra.mxu0 %v1254
    %1640 = vmatprep.subr.bf16.mxu0 %v1257
    %1641 = vmatpush1.bf16.msra.mxu0 %v1256
    %1642 = vmatprep.subr.bf16.mxu0 %v1259
    %1643 = vmatpush1.bf16.msra.mxu0 %v1258
    %1644 = vmatprep.subr.bf16.mxu0 %v1261
    %1645 = vmatpush1.bf16.msra.mxu0 %v1260
    %1646 = vmatprep.subr.bf16.mxu0 %v1263
    %1647 = vmatpush1.bf16.msra.mxu0 %v1262
    %1648 = vmatprep.subr.bf16.mxu0 %v1265
    %1649 = vmatpush1.bf16.msra.mxu0 %v1264
    %1650 = vmatprep.subr.bf16.mxu0 %v1267
    %1651 = vmatpush1.bf16.msra.mxu0 %v1266
    %1652 = vmatprep.subr.bf16.mxu0 %v1269
    %1653 = vmatpush1.bf16.msra.mxu0 %v1268
    %1654 = vmatprep.subr.bf16.mxu0 %v1271
    %1655 = vmatpush1.bf16.msra.mxu0 %v1270
    %1656 = vmatprep.subr.bf16.mxu0 %v1273
    %1657 = vmatpush1.bf16.msra.mxu0 %v1272
    %1658 = vmatprep.subr.bf16.mxu0 %v1275
    %1659 = vmatpush1.bf16.msra.mxu0 %v1274
    %1660 = vmatprep.subr.bf16.mxu0 %v1277
    %1661 = vmatpush1.bf16.msra.mxu0 %v1276
    %1662 = vmatprep.subr.bf16.mxu0 %v1279
    %1663 = vmatpush1.bf16.msra.mxu0 %v1278
    %1664 = vmatprep.subr.bf16.mxu0 %v1281
    %1665 = vmatpush1.bf16.msra.mxu0 %v1280
    %1666 = vmatprep.mubr.bf16.mxu0 %v651
    %1667 = vmatmul.mubr.bf16.gmra.mrb[0].mxu0 %v650
    %v1668 = vpop.f32.mrb[0].mxu0
    %v1669 = vadd.f32 %v626, %v1668
    %v1670 = vpop.f32.mrb[0].mxu0
    %v1671 = vadd.f32 %v628, %v1670
    %v1672 = vpop.f32.mrb[0].mxu0
    %v1673 = vpop.f32.mrb[0].mxu0
    %1674 = vdwg.mxu0
    %1675 = vmatprep.subr.bf16.mxu0 %v1283
    %1676 = vmatpush1.bf16.msra.mxu0 %v1282
    %1677 = vmatprep.subr.bf16.mxu0 %v1285
    %1678 = vmatpush1.bf16.msra.mxu0 %v1284
    %1679 = vmatprep.subr.bf16.mxu0 %v1287
    %1680 = vmatpush1.bf16.msra.mxu0 %v1286
    %1681 = vmatprep.subr.bf16.mxu0 %v1289
    %1682 = vmatpush1.bf16.msra.mxu0 %v1288
    %1683 = vmatprep.subr.bf16.mxu0 %v1291
    %1684 = vmatpush1.bf16.msra.mxu0 %v1290
    %1685 = vmatprep.subr.bf16.mxu0 %v1293
    %1686 = vmatpush1.bf16.msra.mxu0 %v1292
    %1687 = vmatprep.subr.bf16.mxu0 %v1295
    %1688 = vmatpush1.bf16.msra.mxu0 %v1294
    %1689 = vmatprep.subr.bf16.mxu0 %v1297
    %1690 = vmatpush1.bf16.msra.mxu0 %v1296
    %1691 = vmatprep.subr.bf16.mxu0 %v1299
    %1692 = vmatpush1.bf16.msra.mxu0 %v1298
    %1693 = vmatprep.subr.bf16.mxu0 %v1301
    %1694 = vmatpush1.bf16.msra.mxu0 %v1300
    %1695 = vmatprep.subr.bf16.mxu0 %v1303
    %1696 = vmatpush1.bf16.msra.mxu0 %v1302
    %1697 = vmatprep.subr.bf16.mxu0 %v1305
    %1698 = vmatpush1.bf16.msra.mxu0 %v1304
    %1699 = vmatprep.subr.bf16.mxu0 %v1307
    %1700 = vmatpush1.bf16.msra.mxu0 %v1306
    %1701 = vmatprep.subr.bf16.mxu0 %v1309
    %1702 = vmatpush1.bf16.msra.mxu0 %v1308
    %1703 = vmatprep.subr.bf16.mxu0 %v1311
    %1704 = vmatpush1.bf16.msra.mxu0 %v1310
    %1705 = vmatprep.subr.bf16.mxu0 %v1313
    %1706 = vmatpush1.bf16.msra.mxu0 %v1312
    %1707 = vmatprep.mubr.bf16.mxu0 %v653
    %1708 = vmatmul.mubr.bf16.gmra.mrb[0].mxu0 %v652
    %v1709 = vpop.f32.mrb[0].mxu0
    %v1710 = vadd.f32 %v1669, %v1709
    %v1711 = vpop.f32.mrb[0].mxu0
    %v1712 = vadd.f32 %v1671, %v1711
    %v1713 = vpop.f32.mrb[0].mxu0
    %v1714 = vpop.f32.mrb[0].mxu0
    %1715 = vdwg.mxu0
    %1716 = vmatprep.subr.bf16.mxu0 %v1315
    %1717 = vmatpush1.bf16.msra.mxu0 %v1314
    %1718 = vmatprep.subr.bf16.mxu0 %v1317
    %1719 = vmatpush1.bf16.msra.mxu0 %v1316
    %1720 = vmatprep.subr.bf16.mxu0 %v1319
    %1721 = vmatpush1.bf16.msra.mxu0 %v1318
    %1722 = vmatprep.subr.bf16.mxu0 %v1321
    %1723 = vmatpush1.bf16.msra.mxu0 %v1320
    %1724 = vmatprep.subr.bf16.mxu0 %v1323
    %1725 = vmatpush1.bf16.msra.mxu0 %v1322
    %1726 = vmatprep.subr.bf16.mxu0 %v1325
    %1727 = vmatpush1.bf16.msra.mxu0 %v1324
    %1728 = vmatprep.subr.bf16.mxu0 %v1327
    %1729 = vmatpush1.bf16.msra.mxu0 %v1326
    %1730 = vmatprep.subr.bf16.mxu0 %v1329
    %1731 = vmatpush1.bf16.msra.mxu0 %v1328
    %1732 = vmatprep.subr.bf16.mxu0 %v1331
    %1733 = vmatpush1.bf16.msra.mxu0 %v1330
    %1734 = vmatprep.subr.bf16.mxu0 %v1333
    %1735 = vmatpush1.bf16.msra.mxu0 %v1332
    %1736 = vmatprep.subr.bf16.mxu0 %v1335
    %1737 = vmatpush1.bf16.msra.mxu0 %v1334
    %1738 = vmatprep.subr.bf16.mxu0 %v1337
    %1739 = vmatpush1.bf16.msra.mxu0 %v1336
    %1740 = vmatprep.subr.bf16.mxu0 %v1339
    %1741 = vmatpush1.bf16.msra.mxu0 %v1338
    %1742 = vmatprep.subr.bf16.mxu0 %v1341
    %1743 = vmatpush1.bf16.msra.mxu0 %v1340
    %1744 = vmatprep.subr.bf16.mxu0 %v1343
    %1745 = vmatpush1.bf16.msra.mxu0 %v1342
    %1746 = vmatprep.subr.bf16.mxu0 %v1345
    %1747 = vmatpush1.bf16.msra.mxu0 %v1344
    %1748 = vmatprep.mubr.bf16.mxu0 %v655
    %1749 = vmatmul.mubr.bf16.gmra.mrb[0].mxu0 %v654
    %v1750 = vpop.f32.mrb[0].mxu0
    %v1751 = vadd.f32 %v1710, %v1750
    %v1752 = vpop.f32.mrb[0].mxu0
    %v1753 = vadd.f32 %v1712, %v1752
    %v1754 = vpop.f32.mrb[0].mxu0
    %v1755 = vpop.f32.mrb[0].mxu0
    %1756 = vdwg.mxu0
    %1757 = vmatprep.subr.bf16.mxu0 %v1347
    %1758 = vmatpush1.bf16.msra.mxu0 %v1346
    %1759 = vmatprep.subr.bf16.mxu0 %v1349
    %1760 = vmatpush1.bf16.msra.mxu0 %v1348
    %1761 = vmatprep.subr.bf16.mxu0 %v1351
    %1762 = vmatpush1.bf16.msra.mxu0 %v1350
    %1763 = vmatprep.subr.bf16.mxu0 %v1353
    %1764 = vmatpush1.bf16.msra.mxu0 %v1352
    %1765 = vmatprep.subr.bf16.mxu0 %v1355
    %1766 = vmatpush1.bf16.msra.mxu0 %v1354
    %1767 = vmatprep.subr.bf16.mxu0 %v1357
    %1768 = vmatpush1.bf16.msra.mxu0 %v1356
    %1769 = vmatprep.subr.bf16.mxu0 %v1359
    %1770 = vmatpush1.bf16.msra.mxu0 %v1358
    %1771 = vmatprep.subr.bf16.mxu0 %v1361
    %1772 = vmatpush1.bf16.msra.mxu0 %v1360
    %1773 = vmatprep.subr.bf16.mxu0 %v1363
    %1774 = vmatpush1.bf16.msra.mxu0 %v1362
    %1775 = vmatprep.subr.bf16.mxu0 %v1365
    %1776 = vmatpush1.bf16.msra.mxu0 %v1364
    %1777 = vmatprep.subr.bf16.mxu0 %v1367
    %1778 = vmatpush1.bf16.msra.mxu0 %v1366
    %1779 = vmatprep.subr.bf16.mxu0 %v1369
    %1780 = vmatpush1.bf16.msra.mxu0 %v1368
    %1781 = vmatprep.subr.bf16.mxu0 %v1371
    %1782 = vmatpush1.bf16.msra.mxu0 %v1370
    %1783 = vmatprep.subr.bf16.mxu0 %v1373
    %1784 = vmatpush1.bf16.msra.mxu0 %v1372
    %1785 = vmatprep.subr.bf16.mxu0 %v1375
    %1786 = vmatpush1.bf16.msra.mxu0 %v1374
    %1787 = vmatprep.subr.bf16.mxu0 %v1377
    %1788 = vmatpush1.bf16.msra.mxu0 %v1376
    %1789 = vmatprep.mubr.bf16.mxu0 %v657
    %1790 = vmatmul.mubr.bf16.gmra.mrb[0].mxu0 %v656
    %v1791 = vpop.f32.mrb[0].mxu0
    %v1792 = vadd.f32 %v1751, %v1791
    %v1793 = vpop.f32.mrb[0].mxu0
    %v1794 = vadd.f32 %v1753, %v1793
    %v1795 = vpop.f32.mrb[0].mxu0
    %v1796 = vpop.f32.mrb[0].mxu0
    %1797 = vdwg.mxu0
    %1798 = vmatprep.subr.bf16.mxu0 %v1379
    %1799 = vmatpush1.bf16.msra.mxu0 %v1378
    %1800 = vmatprep.subr.bf16.mxu0 %v1381
    %1801 = vmatpush1.bf16.msra.mxu0 %v1380
    %1802 = vmatprep.subr.bf16.mxu0 %v1383
    %1803 = vmatpush1.bf16.msra.mxu0 %v1382
    %1804 = vmatprep.subr.bf16.mxu0 %v1385
    %1805 = vmatpush1.bf16.msra.mxu0 %v1384
    %1806 = vmatprep.subr.bf16.mxu0 %v1387
    %1807 = vmatpush1.bf16.msra.mxu0 %v1386
    %1808 = vmatprep.subr.bf16.mxu0 %v1389
    %1809 = vmatpush1.bf16.msra.mxu0 %v1388
    %1810 = vmatprep.subr.bf16.mxu0 %v1391
    %1811 = vmatpush1.bf16.msra.mxu0 %v1390
    %1812 = vmatprep.subr.bf16.mxu0 %v1393
    %1813 = vmatpush1.bf16.msra.mxu0 %v1392
    %1814 = vmatprep.subr.bf16.mxu0 %v1395
    %1815 = vmatpush1.bf16.msra.mxu0 %v1394
    %1816 = vmatprep.subr.bf16.mxu0 %v1397
    %1817 = vmatpush1.bf16.msra.mxu0 %v1396
    %1818 = vmatprep.subr.bf16.mxu0 %v1399
    %1819 = vmatpush1.bf16.msra.mxu0 %v1398
    %1820 = vmatprep.subr.bf16.mxu0 %v1401
    %1821 = vmatpush1.bf16.msra.mxu0 %v1400
    %1822 = vmatprep.subr.bf16.mxu0 %v1403
    %1823 = vmatpush1.bf16.msra.mxu0 %v1402
    %1824 = vmatprep.subr.bf16.mxu0 %v1405
    %1825 = vmatpush1.bf16.msra.mxu0 %v1404
    %1826 = vmatprep.subr.bf16.mxu0 %v1407
    %1827 = vmatpush1.bf16.msra.mxu0 %v1406
    %1828 = vmatprep.subr.bf16.mxu0 %v1409
    %1829 = vmatpush1.bf16.msra.mxu0 %v1408
    %1830 = vmatprep.mubr.bf16.mxu0 %v659
    %1831 = vmatmul.mubr.bf16.gmra.mrb[0].mxu0 %v658
    %v1832 = vpop.f32.mrb[0].mxu0
    %v1833 = vadd.f32 %v1792, %v1832
    %v1834 = vpop.f32.mrb[0].mxu0
    %v1835 = vadd.f32 %v1794, %v1834
    %v1836 = vpop.f32.mrb[0].mxu0
    %v1837 = vpop.f32.mrb[0].mxu0
    %1838 = vdwg.mxu0
    %1839 = vmatprep.subr.bf16.mxu0 %v1411
    %1840 = vmatpush1.bf16.msra.mxu0 %v1410
    %1841 = vmatprep.subr.bf16.mxu0 %v1413
    %1842 = vmatpush1.bf16.msra.mxu0 %v1412
    %1843 = vmatprep.subr.bf16.mxu0 %v1415
    %1844 = vmatpush1.bf16.msra.mxu0 %v1414
    %1845 = vmatprep.subr.bf16.mxu0 %v1417
    %1846 = vmatpush1.bf16.msra.mxu0 %v1416
    %1847 = vmatprep.subr.bf16.mxu0 %v1419
    %1848 = vmatpush1.bf16.msra.mxu0 %v1418
    %1849 = vmatprep.subr.bf16.mxu0 %v1421
    %1850 = vmatpush1.bf16.msra.mxu0 %v1420
    %1851 = vmatprep.subr.bf16.mxu0 %v1423
    %1852 = vmatpush1.bf16.msra.mxu0 %v1422
    %1853 = vmatprep.subr.bf16.mxu0 %v1425
    %1854 = vmatpush1.bf16.msra.mxu0 %v1424
    %1855 = vmatprep.subr.bf16.mxu0 %v1427
    %1856 = vmatpush1.bf16.msra.mxu0 %v1426
    %1857 = vmatprep.subr.bf16.mxu0 %v1429
    %1858 = vmatpush1.bf16.msra.mxu0 %v1428
    %1859 = vmatprep.subr.bf16.mxu0 %v1431
    %1860 = vmatpush1.bf16.msra.mxu0 %v1430
    %1861 = vmatprep.subr.bf16.mxu0 %v1433
    %1862 = vmatpush1.bf16.msra.mxu0 %v1432
    %1863 = vmatprep.subr.bf16.mxu0 %v1435
    %1864 = vmatpush1.bf16.msra.mxu0 %v1434
    %1865 = vmatprep.subr.bf16.mxu0 %v1437
    %1866 = vmatpush1.bf16.msra.mxu0 %v1436
    %1867 = vmatprep.subr.bf16.mxu0 %v1439
    %1868 = vmatpush1.bf16.msra.mxu0 %v1438
    %1869 = vmatprep.subr.bf16.mxu0 %v1441
    %1870 = vmatpush1.bf16.msra.mxu0 %v1440
    %1871 = vmatprep.mubr.bf16.mxu0 %v661
    %1872 = vmatmul.mubr.bf16.gmra.mrb[0].mxu0 %v660
    %v1873 = vpop.f32.mrb[0].mxu0
    %v1874 = vadd.f32 %v1833, %v1873
    %v1875 = vpop.f32.mrb[0].mxu0
    %v1876 = vadd.f32 %v1835, %v1875
    %v1877 = vpop.f32.mrb[0].mxu0
    %v1878 = vpop.f32.mrb[0].mxu0
    %1879 = vdwg.mxu0
    %v1880 = vld [vmem:[%s6] sm:$0x3]
    %v1882 = vlaneseq
    %v1883 = vshrl.u32 %v1882, 7
    %v1884 = vsub.s32 0, %v1883
    %v1885 = vrot.slane %v1880, %v1884
    %v1886 = vlaneseq
    %v1887 = vshrl.u32 %v1886, 7
    %v1888 = vsub.s32 1, %v1887
    %v1889 = vrot.slane %v1880, %v1888
    %v1892 = vadd.f32 %v1874, %v1885
    %v1893 = vadd.f32 %v1876, %v1889
    %v1894 = vmax.f32 %v1892, 0.0
    %v1895 = vmax.f32 %v1893, 0.0
    %v1896 = vpack.c.bf16 %v1894, %v1894
    %v1897 = vpack.c.bf16 %v1895, %v1895
    %v1898 = vld [vmem:[%s7] sm:$0xf]
    %v1899 = vld [vmem:[%s7 + $0x4] sm:$0xf]
    %v1900 = vld [vmem:[%s7 + $0x8] sm:$0xf]
    %v1901 = vld [vmem:[%s7 + $0xc] sm:$0xf]
    %v1902 = vld [vmem:[%s7 + $0x10] sm:$0xf]
    %v1903 = vld [vmem:[%s7 + $0x14] sm:$0xf]
    %v1904 = vld [vmem:[%s7 + $0x18] sm:$0xf]
    %v1905 = vld [vmem:[%s7 + $0x1c] sm:$0xf]
    %v1906 = vld [vmem:[%s7 + $0x20] sm:$0xf]
    %v1907 = vld [vmem:[%s7 + $0x24] sm:$0xf]
    %v1908 = vld [vmem:[%s7 + $0x28] sm:$0xf]
    %v1909 = vld [vmem:[%s7 + $0x2c] sm:$0xf]
    %v1910 = vld [vmem:[%s7 + $0x30] sm:$0xf]
    %v1911 = vld [vmem:[%s7 + $0x34] sm:$0xf]
    %v1912 = vld [vmem:[%s7 + $0x38] sm:$0xf]
    %v1913 = vld [vmem:[%s7 + $0x3c] sm:$0xf]
    %v1914 = vld [vmem:[%s7 + $0x40] sm:$0xf]
    %v1915 = vld [vmem:[%s7 + $0x44] sm:$0xf]
    %v1916 = vld [vmem:[%s7 + $0x48] sm:$0xf]
    %v1917 = vld [vmem:[%s7 + $0x4c] sm:$0xf]
    %v1918 = vld [vmem:[%s7 + $0x50] sm:$0xf]
    %v1919 = vld [vmem:[%s7 + $0x54] sm:$0xf]
    %v1920 = vld [vmem:[%s7 + $0x58] sm:$0xf]
    %v1921 = vld [vmem:[%s7 + $0x5c] sm:$0xf]
    %v1922 = vld [vmem:[%s7 + $0x60] sm:$0xf]
    %v1923 = vld [vmem:[%s7 + $0x64] sm:$0xf]
    %v1924 = vld [vmem:[%s7 + $0x68] sm:$0xf]
    %v1925 = vld [vmem:[%s7 + $0x6c] sm:$0xf]
    %v1926 = vld [vmem:[%s7 + $0x70] sm:$0xf]
    %v1927 = vld [vmem:[%s7 + $0x74] sm:$0xf]
    %v1928 = vld [vmem:[%s7 + $0x78] sm:$0xf]
    %v1929 = vld [vmem:[%s7 + $0x7c] sm:$0xf]
    %v1930 = vld [vmem:[%s8] sm:$0x1]
    %v1932 = vlaneseq
    %v1933 = vshrl.u32 %v1932, 7
    %v1934 = vsub.s32 0, %v1933
    %v1935 = vrot.slane %v1930, %v1934
    %v1969 = vunpack.c.l.b16 %v1898
    %v1970 = vunpack.c.l.b16 %v1899
    %v1971 = vunpack.c.l.b16 %v1900
    %v1972 = vunpack.c.l.b16 %v1901
    %v1973 = vunpack.c.l.b16 %v1902
    %v1974 = vunpack.c.l.b16 %v1903
    %v1975 = vunpack.c.l.b16 %v1904
    %v1976 = vunpack.c.l.b16 %v1905
    %v1977 = vunpack.c.l.b16 %v1906
    %v1978 = vunpack.c.l.b16 %v1907
    %v1979 = vunpack.c.l.b16 %v1908
    %v1980 = vunpack.c.l.b16 %v1909
    %v1981 = vunpack.c.l.b16 %v1910
    %v1982 = vunpack.c.l.b16 %v1911
    %v1983 = vunpack.c.l.b16 %v1912
    %v1984 = vunpack.c.l.b16 %v1913
    %v1985 = vunpack.c.l.b16 %v1914
    %v1986 = vunpack.c.l.b16 %v1915
    %v1987 = vunpack.c.l.b16 %v1916
    %v1988 = vunpack.c.l.b16 %v1917
    %v1989 = vunpack.c.l.b16 %v1918
    %v1990 = vunpack.c.l.b16 %v1919
    %v1991 = vunpack.c.l.b16 %v1920
    %v1992 = vunpack.c.l.b16 %v1921
    %v1993 = vunpack.c.l.b16 %v1922
    %v1994 = vunpack.c.l.b16 %v1923
    %v1995 = vunpack.c.l.b16 %v1924
    %v1996 = vunpack.c.l.b16 %v1925
    %v1997 = vunpack.c.l.b16 %v1926
    %v1998 = vunpack.c.l.b16 %v1927
    %v1999 = vunpack.c.l.b16 %v1928
    %v2000 = vunpack.c.l.b16 %v1929
    %v2001 = vpack.c.b16 %v1970, %v1969
    %v2002 = vpack.c.b16 %v1972, %v1971
    %v2003 = vpack.c.b16 %v1974, %v1973
    %v2004 = vpack.c.b16 %v1976, %v1975
    %v2005 = vpack.c.b16 %v1978, %v1977
    %v2006 = vpack.c.b16 %v1980, %v1979
    %v2007 = vpack.c.b16 %v1982, %v1981
    %v2008 = vpack.c.b16 %v1984, %v1983
    %v2009 = vpack.c.b16 %v1986, %v1985
    %v2010 = vpack.c.b16 %v1988, %v1987
    %v2011 = vpack.c.b16 %v1990, %v1989
    %v2012 = vpack.c.b16 %v1992, %v1991
    %v2013 = vpack.c.b16 %v1994, %v1993
    %v2014 = vpack.c.b16 %v1996, %v1995
    %v2015 = vpack.c.b16 %v1998, %v1997
    %v2016 = vpack.c.b16 %v2000, %v1999
    %2033 = vmatprep.subr.bf16.mxu0 0
    %2034 = vmatpush1.bf16.msra.mxu0 %v2001
    %2035 = vmatprep.subr.bf16.mxu0 0
    %2036 = vmatpush1.bf16.msra.mxu0 %v2002
    %2037 = vmatprep.subr.bf16.mxu0 0
    %2038 = vmatpush1.bf16.msra.mxu0 %v2003
    %2039 = vmatprep.subr.bf16.mxu0 0
    %2040 = vmatpush1.bf16.msra.mxu0 %v2004
    %2041 = vmatprep.subr.bf16.mxu0 0
    %2042 = vmatpush1.bf16.msra.mxu0 %v2005
    %2043 = vmatprep.subr.bf16.mxu0 0
    %2044 = vmatpush1.bf16.msra.mxu0 %v2006
    %2045 = vmatprep.subr.bf16.mxu0 0
    %2046 = vmatpush1.bf16.msra.mxu0 %v2007
    %2047 = vmatprep.subr.bf16.mxu0 0
    %2048 = vmatpush1.bf16.msra.mxu0 %v2008
    %2049 = vmatprep.subr.bf16.mxu0 0
    %2050 = vmatpush1.bf16.msra.mxu0 %v2009
    %2051 = vmatprep.subr.bf16.mxu0 0
    %2052 = vmatpush1.bf16.msra.mxu0 %v2010
    %2053 = vmatprep.subr.bf16.mxu0 0
    %2054 = vmatpush1.bf16.msra.mxu0 %v2011
    %2055 = vmatprep.subr.bf16.mxu0 0
    %2056 = vmatpush1.bf16.msra.mxu0 %v2012
    %2057 = vmatprep.subr.bf16.mxu0 0
    %2058 = vmatpush1.bf16.msra.mxu0 %v2013
    %2059 = vmatprep.subr.bf16.mxu0 0
    %2060 = vmatpush1.bf16.msra.mxu0 %v2014
    %2061 = vmatprep.subr.bf16.mxu0 0
    %2062 = vmatpush1.bf16.msra.mxu0 %v2015
    %2063 = vmatprep.subr.bf16.mxu0 0
    %2064 = vmatpush1.bf16.msra.mxu0 %v2016
    %2065 = vmatprep.mubr.bf16.mxu0 %v1897
    %2066 = vmatmul.mubr.bf16.gmra.mrb[0].mxu0 %v1896
    %v2067 = vpop.f32.mrb[0].mxu0
    %v2068 = vadd.f32 %v1935, %v2067
    %v2069 = vpop.f32.mrb[0].mxu0
    %v2070 = vpop.f32.mrb[0].mxu0
    %v2071 = vpop.f32.mrb[0].mxu0
    %2072 = vdwg.mxu0
    %2073 = vst [vmem:[%s9] sm:$0xff] %v2068
    // Predicated region
    $region42: #{simple_view_forward.3} parent=1 // pred_check
      _
    $region43: #{simple_view_forward.3} parent=1 // pred_check_branch
      %2075 = sbr.rel (0) target = $region45
    $region44: #{simple_view_forward.3} parent=1 // pred_region
      _
    $region45: #{simple_view_forward.3} parent=1 // pred_fallthru
      _
    // Predicated region
    $region46: #{simple_view_forward.3} parent=1 // pred_check
      _
    $region47: #{simple_view_forward.3} parent=1 // pred_check_branch
      %2077 = sbr.rel (0) target = $region49
    $region48: #{simple_view_forward.3} parent=1 // pred_region
      _
    $region49: #{simple_view_forward.3} parent=1 // pred_fallthru
      _
    %2078 = vsyncpa [#allocation3], 1

// kernel: simple_view_forward.2
$region0: #{simple_view_forward.2}
  #allocation0 [shape = 'u32[]', space=smem, size = 0x4, offset = 0x4, fixed_abs, tag = 'smem constant byte address 0x4 - core index']
  #allocation1 [shape = 'u32[144,128]{1,0:T(1,128)}', space=vmem, size = 0x12000, scoped, tag = 'internal scratch']
  #allocation2 [shape = 'f32[8,256]{1,0:T(8,128)}', space=vmem, size = 0x2000, scoped, tag = 'scratch operand']
  #allocation3 [shape = 's32[1]{0}', space=sflag, size = 0x4, scoped, tag = 'scoped memory for simple_view_forward.2']
  #allocation4 [shape = 'u8[512]{0}', space=smem, size = 0x200, scoped, tag = 'prefetched SMEM operand 0']
  #allocation5 [shape = 'u8[512]{0}', space=smem, size = 0x200, scoped, tag = 'prefetched SMEM operand 1']
  %s0 = inlined_call_operand.vmem [shape: s32[6], index: 0, kind: input, shape index: {}]
  %s1 = inlined_call_operand.vmem [shape: s32[6], index: 1, kind: input, shape index: {}]
  %s2 = inlined_call_operand.vmem [shape: bf16[6,8,256], index: 2, kind: input, shape index: {}]
  %s3 = inlined_call_operand.hbm [shape: bf16[3,256,256], index: 3, kind: input, shape index: {}]
  %s4 = inlined_call_operand.vmem [shape: f32[3,1,256], index: 4, kind: input, shape index: {}]
  %s5 = inlined_call_operand.vmem [shape: bf16[8,1536], index: 5, kind: output, shape index: {}]
  %s6 = sld [smem:[#allocation0]]
  $region57: #{simple_view_forward.2} parent=0
    _
  %s8 = ssub.s32 1, %s6
  %s9 = scalar_select 0, %s8, %s6
  %s10 = sshll.u32 %s0, 4
  %s11 = int_to_ptr.vmem [resolvable:$true] %s10
  %13 = dma.vmem_to_smem %s11, 16, [#allocation4], [#allocation3]
  %s14 = sshll.u32 %s1, 4
  %s15 = int_to_ptr.vmem [resolvable:$true] %s14
  %17 = dma.vmem_to_smem %s15, 16, [#allocation5], [#allocation3]
  %18 = dma.done [#allocation3], 32
  %19 = sfence
  $region1: #{simple_view_forward.2} parent=0
    #allocation6 [shape = 'u8[262144]{0}', space=vmem, size = 0x40000, scoped, tag = 'input window, operand 3']
    #allocation7 [shape = 's32[2]{0}', space=sflag, size = 0x8, scoped, tag = 'scoped memory for simple_view_forward.2']
    %20 = vsyncpa [#allocation7], 0
    %s21 = scalar_lea.sflag [#allocation7], 1
    %22 = vsyncpa %s21, 0
    loop: start=0, step=1, limit=8
    $region2: #{simple_view_forward.2} parent=1 // loop_pre_header
      _
    $region3: #{simple_view_forward.2} parent=1 // loop_header
      %s24 = sphi 0, %s28
      %p25 = scmp.ge.s32.totalorder %s24, 8
      %s31 = sphi 0, %s43
      %s32 = sphi 0, %s39
      %s33 = sphi 0, %s31
      %s34 = sphi 0, %s32
      %s35 = sphi 0, %s33
      %s36 = sphi 0, %s34
      %s50 = sphi 0, %s52
      %s53 = sphi 0, %s50
      %s54 = sphi 0, %s53
      %s70 = sphi 0, %s54
      %s80 = sphi 0, %s82
      %s83 = sphi 0, %s80
      %s84 = sphi 0, %s83
      %s100 = sphi 0, %s84
      %s108 = sphi 0, %s110
      %s111 = sphi 0, %s108
      %s112 = sphi 0, %s111
      %s128 = sphi 0, %s112
      %s134 = sphi 0, %s136
      %s137 = sphi 0, %s134
      %s138 = sphi 0, %s137
      %s154 = sphi 0, %s138
    $region4: #{simple_view_forward.2} parent=1 // loop_header_branch
      %27 = sbr.rel (%p25) target = $region8
    $region5: #{simple_view_forward.2} parent=1 // loop_body
      %s29 = ssub.s32 %s24, 1
      %s30 = ssub.s32 %s24, 2
      %s37 = sadd.s32 1, %s32
      %p38 = scmp.ge.s32.totalorder %s37, 1
      %s39 = scalar_select %p38, 0, %s37
      %s40 = sadd.s32 1, %s31
      %s41 = scalar_select %p38, %s40, %s31
      %p42 = scmp.ge.s32.totalorder %s41, 6
      %s43 = scalar_select %p42, 0, %s41
      %s44 = sld [smem:[#allocation4 + %s31]]
      %s45 = sld [smem:[#allocation4 + %s43]]
      %s46 = ssub.s32 %s44, %s45
      %s47 = ssub.s32 %s32, %s39
      %s48 = sor.u32 %s46, %s47
      %p49 = scmp.eq.s32.totalorder %s48, 0
      %s51 = sadd.s32 %s50, 1
      %s52 = scalar_select %p49, %s50, %s51
      %p55 = pneg %p49
      %p56 = scmp.eq.s32.totalorder %s24, 5
      %p57 = por %p55, %p56
      %p58 = scmp.ne.s32.totalorder %s50, %s53
      %p59 = scmp.eq.s32.totalorder %s24, 0
      %p60 = por %p58, %p59
      %p61 = scmp.ne.s32.totalorder %s50, %s53
      %p62 = scmp.eq.s32.totalorder %s29, 5
      %p63 = por %p61, %p62
      %p64 = scmp.ne.s32.totalorder %s53, %s54
      %p65 = scmp.eq.s32.totalorder %s29, 0
      %p66 = por %p64, %p65
      %p67 = scmp.ne.s32.totalorder %s53, %s54
      %p68 = scmp.eq.s32.totalorder %s30, 5
      %p69 = por %p67, %p68
      %p71 = scmp.ne.s32.totalorder %s54, %s70
      %p72 = scmp.eq.s32.totalorder %s30, 0
      %p73 = por %p71, %p72
      %s74 = sld [smem:[#allocation5 + %s31]]
      %s75 = sld [smem:[#allocation5 + %s43]]
      %s76 = ssub.s32 %s74, %s75
      %s77 = ssub.s32 %s32, %s39
      %s78 = sor.u32 %s76, %s77
      %p79 = scmp.eq.s32.totalorder %s78, 0
      %s81 = sadd.s32 %s80, 1
      %s82 = scalar_select %p79, %s80, %s81
      %p85 = pneg %p79
      %p86 = scmp.eq.s32.totalorder %s24, 5
      %p87 = por %p85, %p86
      %p88 = scmp.ne.s32.totalorder %s80, %s83
      %p89 = scmp.eq.s32.totalorder %s24, 0
      %p90 = por %p88, %p89
      %p91 = scmp.ne.s32.totalorder %s80, %s83
      %p92 = scmp.eq.s32.totalorder %s29, 5
      %p93 = por %p91, %p92
      %p94 = scmp.ne.s32.totalorder %s83, %s84
      %p95 = scmp.eq.s32.totalorder %s29, 0
      %p96 = por %p94, %p95
      %p97 = scmp.ne.s32.totalorder %s83, %s84
      %p98 = scmp.eq.s32.totalorder %s30, 5
      %p99 = por %p97, %p98
      %p101 = scmp.ne.s32.totalorder %s84, %s100
      %p102 = scmp.eq.s32.totalorder %s30, 0
      %p103 = por %p101, %p102
      %s104 = sld [smem:[#allocation5 + %s31]]
      %s105 = sld [smem:[#allocation5 + %s43]]
      %s106 = ssub.s32 %s104, %s105
      %p107 = scmp.eq.s32.totalorder %s106, 0
      %s109 = sadd.s32 %s108, 1
      %s110 = scalar_select %p107, %s108, %s109
      %p113 = pneg %p107
      %p114 = scmp.eq.s32.totalorder %s24, 5
      %p115 = por %p113, %p114
      %p116 = scmp.ne.s32.totalorder %s108, %s111
      %p117 = scmp.eq.s32.totalorder %s24, 0
      %p118 = por %p116, %p117
      %p119 = scmp.ne.s32.totalorder %s108, %s111
      %p120 = scmp.eq.s32.totalorder %s29, 5
      %p121 = por %p119, %p120
      %p122 = scmp.ne.s32.totalorder %s111, %s112
      %p123 = scmp.eq.s32.totalorder %s29, 0
      %p124 = por %p122, %p123
      %p125 = scmp.ne.s32.totalorder %s111, %s112
      %p126 = scmp.eq.s32.totalorder %s30, 5
      %p127 = por %p125, %p126
      %p129 = scmp.ne.s32.totalorder %s112, %s128
      %p130 = scmp.eq.s32.totalorder %s30, 0
      %p131 = por %p129, %p130
      %s132 = ssub.s32 %s31, %s43
      %p133 = scmp.eq.s32.totalorder %s132, 0
      %s135 = sadd.s32 %s134, 1
      %s136 = scalar_select %p133, %s134, %s135
      %p139 = pneg %p133
      %p140 = scmp.eq.s32.totalorder %s24, 5
      %p141 = por %p139, %p140
      %p142 = scmp.ne.s32.totalorder %s134, %s137
      %p143 = scmp.eq.s32.totalorder %s24, 0
      %p144 = por %p142, %p143
      %p145 = scmp.ne.s32.totalorder %s134, %s137
      %p146 = scmp.eq.s32.totalorder %s29, 5
      %p147 = por %p145, %p146
      %p148 = scmp.ne.s32.totalorder %s137, %s138
      %p149 = scmp.eq.s32.totalorder %s29, 0
      %p150 = por %p148, %p149
      %p151 = scmp.ne.s32.totalorder %s137, %s138
      %p152 = scmp.eq.s32.totalorder %s30, 5
      %p153 = por %p151, %p152
      %p155 = scmp.ne.s32.totalorder %s138, %s154
      %p156 = scmp.eq.s32.totalorder %s30, 0
      %p157 = por %p155, %p156
      %p158 = scmp.le.s32.totalorder 1, %s24
      %p159 = scmp.lt.s32.totalorder %s24, 7
      %p160 = pnand %p158, %p159
      %p161 = pneg %p160
      // Predicated region
      $region9: #{simple_view_forward.2} parent=5 // pred_check
        _
      $region10: #{simple_view_forward.2} parent=5 // pred_check_branch
        %163 = sbr.rel (%p160) target = $region12
      $region11: #{simple_view_forward.2} parent=5 // pred_region
        %s164 = ssub.s32 %s24, 1
      $region12: #{simple_view_forward.2} parent=5 // pred_fallthru
        _
      %p165 = scmp.lt.s32.totalorder %s24, 6
      // Predicated region
      $region13: #{simple_view_forward.2} parent=5 // pred_check
        %p166 = pneg %p165
      $region14: #{simple_view_forward.2} parent=5 // pred_check_branch
        %168 = sbr.rel (%p166) target = $region16
      $region15: #{simple_view_forward.2} parent=5 // pred_region
        // Predicated region
        $region17: #{simple_view_forward.2} parent=15 // pred_check
          %p169 = pneg %p60
        $region18: #{simple_view_forward.2} parent=15 // pred_check_branch
          %171 = sbr.rel (%p169) target = $region20
        $region19: #{simple_view_forward.2} parent=15 // pred_region
          %s172 = sld [smem:[#allocation4 + %s31]]
          %s173 = smul.u32 2, %s32
          %p174 = scmp.lt.s32.totalorder %s172, 5
          %s175 = scalar_select %p174, %s172, 5
          %p176 = scmp.lt.s32.totalorder %s173, 1
          %s177 = scalar_select %p176, %s173, 1
          %s178 = smul.addr %s175, 2
          %s179 = sadd.s32 %s177, %s178
          %s180 = smul.addr %s179, 4
          %s181 = scalar_lea.vmem %s2, %s180
          %s182 = sld [smem:[#allocation4 + %s31]]
          %s183 = smul.u32 2, %s32
        $region20: #{simple_view_forward.2} parent=15 // pred_fallthru
          _
        // Predicated region
        $region21: #{simple_view_forward.2} parent=15 // pred_check
          %p184 = pneg %p90
        $region22: #{simple_view_forward.2} parent=15 // pred_check_branch
          %186 = sbr.rel (%p184) target = $region24
        $region23: #{simple_view_forward.2} parent=15 // pred_region
          %s187 = sand.u32 %s80, 1
          %s188 = scalar_lea.sflag [#allocation7], %s187
          %s189 = sand.u32 %s80, 1
          %s190 = smul.addr %s189, 256
          %s191 = scalar_lea.vmem [#allocation6], %s190
          %s192 = sld [smem:[#allocation5 + %s31]]
          %s193 = smul.u32 32, %s32
          %s195 = ssub.s32 4096, 4096
          %196 = vsyncadd %s188, %s195
          %s197 = smul.addr %s193, 2
          %s198 = smul.addr %s192, 64
          %s199 = sadd.s32 %s197, %s198
          %s200 = smul.addr %s199, 64
          %s201 = scalar_lea.hbm %s3, %s200
          %s202 = sshll.u32 %s191, 4
          %s203 = int_to_ptr.vmem [resolvable:$true] %s202
          %208 = dma.hbm_to_vmem [thread:$0]  %s201, 4096, %s203, %s188, 128, 128, 8
        $region24: #{simple_view_forward.2} parent=15 // pred_fallthru
          _
        // Predicated region
        $region25: #{simple_view_forward.2} parent=15 // pred_check
          %p209 = pneg %p118
        $region26: #{simple_view_forward.2} parent=15 // pred_check_branch
          %211 = sbr.rel (%p209) target = $region28
        $region27: #{simple_view_forward.2} parent=15 // pred_region
          %s212 = sld [smem:[#allocation5 + %s31]]
          %p213 = scmp.lt.s32.totalorder %s212, 2
          %s214 = scalar_select %p213, %s212, 2
          %s215 = smul.addr %s214, 2
          %s216 = scalar_lea.vmem %s4, %s215
          %s217 = sld [smem:[#allocation5 + %s31]]
        $region28: #{simple_view_forward.2} parent=15 // pred_fallthru
          _
      $region16: #{simple_view_forward.2} parent=5 // pred_fallthru
        _
      %p218 = scmp.le.s32.totalorder 1, %s24
      %p219 = scmp.lt.s32.totalorder %s24, 7
      %p220 = pnand %p218, %p219
      %p221 = pneg %p220
      // Predicated region
      $region29: #{simple_view_forward.2} parent=5 // pred_check
        _
      $region30: #{simple_view_forward.2} parent=5 // pred_check_branch
        %223 = sbr.rel (%p220) target = $region32
      $region31: #{simple_view_forward.2} parent=5 // pred_region
        %s224 = ssub.s32 %s24, 1
        %s225 = sand.u32 %s83, 1
        %s226 = scalar_lea.sflag [#allocation7], %s225
        %s227 = sand.u32 %s83, 1
        %s228 = smul.addr %s227, 256
        %s229 = scalar_lea.vmem [#allocation6], %s228
        // Predicated region
        $region33: #{simple_view_forward.2} parent=31 // pred_check
          %p230 = pneg %p96
        $region34: #{simple_view_forward.2} parent=31 // pred_check_branch
          %232 = sbr.rel (%p230) target = $region36
        $region35: #{simple_view_forward.2} parent=31 // pred_region
          %233 = dma.done %s226, 4096
        $region36: #{simple_view_forward.2} parent=31 // pred_fallthru
          _
        %s234 = sld [smem:[#allocation4 + %s33]]
        %s235 = smul.u32 2, %s34
        %p236 = scmp.lt.s32.totalorder %s234, 5
        %s237 = scalar_select %p236, %s234, 5
        %p238 = scmp.lt.s32.totalorder %s235, 1
        %s239 = scalar_select %p238, %s235, 1
        %s240 = smul.addr %s237, 2
        %s241 = sadd.s32 %s239, %s240
        %s242 = smul.addr %s241, 4
        %s243 = scalar_lea.vmem %s2, %s242
        %p244 = pneg %p66
        %p245 = pneg %p63
        %s246 = sand.u32 %s83, 1
        %s247 = scalar_lea.sflag [#allocation7], %s246
        %s248 = sand.u32 %s83, 1
        %s249 = smul.addr %s248, 256
        %s250 = scalar_lea.vmem [#allocation6], %s249
        %p251 = pneg %p96
        %p252 = pneg %p93
        %s253 = sld [smem:[#allocation5 + %s33]]
        %p254 = scmp.lt.s32.totalorder %s253, 2
        %s255 = scalar_select %p254, %s253, 2
        %s256 = smul.addr %s255, 2
        %s257 = scalar_lea.vmem %s4, %s256
        %p258 = pneg %p124
        %p259 = pneg %p121
        %p260 = pneg %p150
        %p261 = pneg %p147
        %s262 = smul.u32 2, %s33
        %p263 = scmp.lt.s32.totalorder %s262, 11
        %s264 = scalar_select %p263, %s262, 11
        %s265 = smul.addr %s264, 4
        %s266 = scalar_lea.vmem %s5, %s265
        %s267 = sld [smem:[#allocation4 + %s33]]
        %s268 = smul.u32 2, %s34
        %p269 = scmp.lt.s32.totalorder %s267, 5
        %s270 = scalar_select %p269, %s267, 5
        %p271 = scmp.lt.s32.totalorder %s268, 1
        %s272 = scalar_select %p271, %s268, 1
        %s273 = smul.addr %s270, 2
        %s274 = sadd.s32 %s272, %s273
        %s275 = smul.addr %s274, 4
        %s276 = scalar_lea.vmem %s2, %s275
        %s277 = sld [smem:[#allocation4 + %s33]]
        %s278 = smul.u32 2, %s34
        %s279 = sld [smem:[#allocation5 + %s33]]
        %s280 = smul.u32 32, %s34
        %s281 = sld [smem:[#allocation5 + %s33]]
        %p282 = scmp.lt.s32.totalorder %s281, 2
        %s283 = scalar_select %p282, %s281, 2
        %s284 = smul.addr %s283, 2
        %s285 = scalar_lea.vmem %s4, %s284
        %s286 = sld [smem:[#allocation5 + %s33]]
        %s287 = smul.u32 2, %s33
        %p288 = scmp.lt.s32.totalorder %s287, 11
        %s289 = scalar_select %p288, %s287, 11
        %s290 = smul.addr %s289, 4
        %s291 = scalar_lea.vmem %s5, %s290
        %s292 = smul.u32 2, %s33
        %p293 = scmp.eq.s32.totalorder %s34, 0
        // Predicated region
        $region37: #{simple_view_forward.2} parent=31 // pred_check
          %p294 = pneg %p293
        $region38: #{simple_view_forward.2} parent=31 // pred_check_branch
          %296 = sbr.rel (%p294) target = $region40
        $region39: #{simple_view_forward.2} parent=31 // pred_region
          %297 = vst [vmem:[#allocation2] sm:$0xff] 0.0
          %298 = vst [vmem:[#allocation2 + $0x8] sm:$0xff] 0.0
        $region40: #{simple_view_forward.2} parent=31 // pred_fallthru
          _
        %v299 = vld [vmem:[#allocation2] sm:$0xff]
        %v300 = vld [vmem:[#allocation2 + $0x8] sm:$0xff]
        %v301 = vld [vmem:[%s276] sm:$0xff]
        %v302 = vld [vmem:[%s229] sm:$0xff]
        %v303 = vld [vmem:[%s229 + $0x8] sm:$0xff]
        %v304 = vld [vmem:[%s229 + $0x10] sm:$0xff]
        %v305 = vld [vmem:[%s229 + $0x18] sm:$0xff]
        %v306 = vld [vmem:[%s229 + $0x20] sm:$0xff]
        %v307 = vld [vmem:[%s229 + $0x28] sm:$0xff]
        %v308 = vld [vmem:[%s229 + $0x30] sm:$0xff]
        %v309 = vld [vmem:[%s229 + $0x38] sm:$0xff]
        %v310 = vld [vmem:[%s229 + $0x40] sm:$0xff]
        %v311 = vld [vmem:[%s229 + $0x48] sm:$0xff]
        %v312 = vld [vmem:[%s229 + $0x50] sm:$0xff]
        %v313 = vld [vmem:[%s229 + $0x58] sm:$0xff]
        %v314 = vld [vmem:[%s229 + $0x60] sm:$0xff]
        %v315 = vld [vmem:[%s229 + $0x68] sm:$0xff]
        %v316 = vld [vmem:[%s229 + $0x70] sm:$0xff]
        %v317 = vld [vmem:[%s229 + $0x78] sm:$0xff]
        %v318 = vld [vmem:[%s229 + $0x80] sm:$0xff]
        %v319 = vld [vmem:[%s229 + $0x88] sm:$0xff]
        %v320 = vld [vmem:[%s229 + $0x90] sm:$0xff]
        %v321 = vld [vmem:[%s229 + $0x98] sm:$0xff]
        %v322 = vld [vmem:[%s229 + $0xa0] sm:$0xff]
        %v323 = vld [vmem:[%s229 + $0xa8] sm:$0xff]
        %v324 = vld [vmem:[%s229 + $0xb0] sm:$0xff]
        %v325 = vld [vmem:[%s229 + $0xb8] sm:$0xff]
        %v326 = vld [vmem:[%s229 + $0xc0] sm:$0xff]
        %v327 = vld [vmem:[%s229 + $0xc8] sm:$0xff]
        %v328 = vld [vmem:[%s229 + $0xd0] sm:$0xff]
        %v329 = vld [vmem:[%s229 + $0xd8] sm:$0xff]
        %v330 = vld [vmem:[%s229 + $0xe0] sm:$0xff]
        %v331 = vld [vmem:[%s229 + $0xe8] sm:$0xff]
        %v332 = vld [vmem:[%s229 + $0xf0] sm:$0xff]
        %v333 = vld [vmem:[%s229 + $0xf8] sm:$0xff]
        %v335 = vunpack.c.l.b16 %v301
        %v336 = vunpack.c.h.b16 %v301
        %v337 = vpack.c.b16 %v335, %v335
        %v338 = vpack.c.b16 %v336, %v336
        %v373 = vunpack.c.l.b16 %v302
        %v374 = vunpack.c.h.b16 %v302
        %v375 = vunpack.c.l.b16 %v303
        %v376 = vunpack.c.h.b16 %v303
        %v377 = vunpack.c.l.b16 %v304
        %v378 = vunpack.c.h.b16 %v304
        %v379 = vunpack.c.l.b16 %v305
        %v380 = vunpack.c.h.b16 %v305
        %v381 = vunpack.c.l.b16 %v306
        %v382 = vunpack.c.h.b16 %v306
        %v383 = vunpack.c.l.b16 %v307
        %v384 = vunpack.c.h.b16 %v307
        %v385 = vunpack.c.l.b16 %v308
        %v386 = vunpack.c.h.b16 %v308
        %v387 = vunpack.c.l.b16 %v309
        %v388 = vunpack.c.h.b16 %v309
        %v389 = vunpack.c.l.b16 %v310
        %v390 = vunpack.c.h.b16 %v310
        %v391 = vunpack.c.l.b16 %v311
        %v392 = vunpack.c.h.b16 %v311
        %v393 = vunpack.c.l.b16 %v312
        %v394 = vunpack.c.h.b16 %v312
        %v395 = vunpack.c.l.b16 %v313
        %v396 = vunpack.c.h.b16 %v313
        %v397 = vunpack.c.l.b16 %v314
        %v398 = vunpack.c.h.b16 %v314
        %v399 = vunpack.c.l.b16 %v315
        %v400 = vunpack.c.h.b16 %v315
        %v401 = vunpack.c.l.b16 %v316
        %v402 = vunpack.c.h.b16 %v316
        %v403 = vunpack.c.l.b16 %v317
        %v404 = vunpack.c.h.b16 %v317
        %v405 = vunpack.c.l.b16 %v318
        %v406 = vunpack.c.h.b16 %v318
        %v407 = vunpack.c.l.b16 %v319
        %v408 = vunpack.c.h.b16 %v319
        %v409 = vunpack.c.l.b16 %v320
        %v410 = vunpack.c.h.b16 %v320
        %v411 = vunpack.c.l.b16 %v321
        %v412 = vunpack.c.h.b16 %v321
        %v413 = vunpack.c.l.b16 %v322
        %v414 = vunpack.c.h.b16 %v322
        %v415 = vunpack.c.l.b16 %v323
        %v416 = vunpack.c.h.b16 %v323
        %v417 = vunpack.c.l.b16 %v324
        %v418 = vunpack.c.h.b16 %v324
        %v419 = vunpack.c.l.b16 %v325
        %v420 = vunpack.c.h.b16 %v325
        %v421 = vunpack.c.l.b16 %v326
        %v422 = vunpack.c.h.b16 %v326
        %v423 = vunpack.c.l.b16 %v327
        %v424 = vunpack.c.h.b16 %v327
        %v425 = vunpack.c.l.b16 %v328
        %v426 = vunpack.c.h.b16 %v328
        %v427 = vunpack.c.l.b16 %v329
        %v428 = vunpack.c.h.b16 %v329
        %v429 = vunpack.c.l.b16 %v330
        %v430 = vunpack.c.h.b16 %v330
        %v431 = vunpack.c.l.b16 %v331
        %v432 = vunpack.c.h.b16 %v331
        %v433 = vunpack.c.l.b16 %v332
        %v434 = vunpack.c.h.b16 %v332
        %v435 = vunpack.c.l.b16 %v333
        %v436 = vunpack.c.h.b16 %v333
        %v437 = vpack.c.b16 %v375, %v373
        %v438 = vpack.c.b16 %v376, %v374
        %v439 = vpack.c.b16 %v379, %v377
        %v440 = vpack.c.b16 %v380, %v378
        %v441 = vpack.c.b16 %v383, %v381
        %v442 = vpack.c.b16 %v384, %v382
        %v443 = vpack.c.b16 %v387, %v385
        %v444 = vpack.c.b16 %v388, %v386
        %v445 = vpack.c.b16 %v391, %v389
        %v446 = vpack.c.b16 %v392, %v390
        %v447 = vpack.c.b16 %v395, %v393
        %v448 = vpack.c.b16 %v396, %v394
        %v449 = vpack.c.b16 %v399, %v397
        %v450 = vpack.c.b16 %v400, %v398
        %v451 = vpack.c.b16 %v403, %v401
        %v452 = vpack.c.b16 %v404, %v402
        %v453 = vpack.c.b16 %v407, %v405
        %v454 = vpack.c.b16 %v408, %v406
        %v455 = vpack.c.b16 %v411, %v409
        %v456 = vpack.c.b16 %v412, %v410
        %v457 = vpack.c.b16 %v415, %v413
        %v458 = vpack.c.b16 %v416, %v414
        %v459 = vpack.c.b16 %v419, %v417
        %v460 = vpack.c.b16 %v420, %v418
        %v461 = vpack.c.b16 %v423, %v421
        %v462 = vpack.c.b16 %v424, %v422
        %v463 = vpack.c.b16 %v427, %v425
        %v464 = vpack.c.b16 %v428, %v426
        %v465 = vpack.c.b16 %v431, %v429
        %v466 = vpack.c.b16 %v432, %v430
        %v467 = vpack.c.b16 %v435, %v433
        %v468 = vpack.c.b16 %v436, %v434
        %501 = vmatprep.subr.bf16.mxu0 %v438
        %502 = vmatpush1.bf16.msra.mxu0 %v437
        %503 = vmatprep.subr.bf16.mxu0 %v440
        %504 = vmatpush1.bf16.msra.mxu0 %v439
        %505 = vmatprep.subr.bf16.mxu0 %v442
        %506 = vmatpush1.bf16.msra.mxu0 %v441
        %507 = vmatprep.subr.bf16.mxu0 %v444
        %508 = vmatpush1.bf16.msra.mxu0 %v443
        %509 = vmatprep.subr.bf16.mxu0 %v446
        %510 = vmatpush1.bf16.msra.mxu0 %v445
        %511 = vmatprep.subr.bf16.mxu0 %v448
        %512 = vmatpush1.bf16.msra.mxu0 %v447
        %513 = vmatprep.subr.bf16.mxu0 %v450
        %514 = vmatpush1.bf16.msra.mxu0 %v449
        %515 = vmatprep.subr.bf16.mxu0 %v452
        %516 = vmatpush1.bf16.msra.mxu0 %v451
        %517 = vmatprep.subr.bf16.mxu0 %v454
        %518 = vmatpush1.bf16.msra.mxu0 %v453
        %519 = vmatprep.subr.bf16.mxu0 %v456
        %520 = vmatpush1.bf16.msra.mxu0 %v455
        %521 = vmatprep.subr.bf16.mxu0 %v458
        %522 = vmatpush1.bf16.msra.mxu0 %v457
        %523 = vmatprep.subr.bf16.mxu0 %v460
        %524 = vmatpush1.bf16.msra.mxu0 %v459
        %525 = vmatprep.subr.bf16.mxu0 %v462
        %526 = vmatpush1.bf16.msra.mxu0 %v461
        %527 = vmatprep.subr.bf16.mxu0 %v464
        %528 = vmatpush1.bf16.msra.mxu0 %v463
        %529 = vmatprep.subr.bf16.mxu0 %v466
        %530 = vmatpush1.bf16.msra.mxu0 %v465
        %531 = vmatprep.subr.bf16.mxu0 %v468
        %532 = vmatpush1.bf16.msra.mxu0 %v467
        %533 = vmatprep.mubr.bf16.mxu0 %v338
        %534 = vmatmul.mubr.bf16.gmra.mrb[0].mxu0 %v337
        %v535 = vpop.f32.mrb[0].mxu0
        %v536 = vadd.f32 0.0, %v535
        %v537 = vpop.f32.mrb[0].mxu0
        %v538 = vadd.f32 0.0, %v537
        %v539 = vpop.f32.mrb[0].mxu0
        %v540 = vpop.f32.mrb[0].mxu0
        %541 = vdwg.mxu0
        %v542 = vadd.f32 %v299, %v536
        %v543 = vadd.f32 %v300, %v538
        %544 = vst [vmem:[#allocation2] sm:$0xff] %v542
        %545 = vst [vmem:[#allocation2 + $0x8] sm:$0xff] %v543
        // Predicated region
        $region41: #{simple_view_forward.2} parent=31 // pred_check
          %p546 = pneg %p293
        $region42: #{simple_view_forward.2} parent=31 // pred_check_branch
          %548 = sbr.rel (%p546) target = $region44
        $region43: #{simple_view_forward.2} parent=31 // pred_region
          %v549 = vld [vmem:[#allocation2] sm:$0xff]
          %v550 = vld [vmem:[#allocation2 + $0x8] sm:$0xff]
          %v551 = vld [vmem:[%s285] sm:$0x3]
          %v553 = vlaneseq
          %v554 = vshrl.u32 %v553, 7
          %v555 = vsub.s32 0, %v554
          %v556 = vrot.slane %v551, %v555
          %v557 = vlaneseq
          %v558 = vshrl.u32 %v557, 7
          %v559 = vsub.s32 1, %v558
          %v560 = vrot.slane %v551, %v559
          %v563 = vadd.f32 %v549, %v556
          %v564 = vadd.f32 %v550, %v560
          %v565 = vmax.f32 %v563, 0.0
          %v566 = vmax.f32 %v564, 0.0
          %v567 = vpack.c.bf16 %v565, %v565
          %v568 = vpack.c.bf16 %v566, %v566
          %v571 = vunpack.c.l.b16 %v567
          %v572 = vunpack.c.l.b16 %v568
          %v573 = vpack.c.b16 %v572, %v571
          %575 = vst [vmem:[%s291] sm:$0xff] %v573
        $region44: #{simple_view_forward.2} parent=31 // pred_fallthru
          _
        %s576 = smul.u32 2, %s33
        %p577 = scmp.lt.s32.totalorder %s576, 11
        %s578 = scalar_select %p577, %s576, 11
        %s579 = smul.addr %s578, 4
        %s580 = scalar_lea.vmem %s5, %s579
        // Predicated region
        $region45: #{simple_view_forward.2} parent=31 // pred_check
          %p581 = pneg %p147
        $region46: #{simple_view_forward.2} parent=31 // pred_check_branch
          %583 = sbr.rel (%p581) target = $region48
        $region47: #{simple_view_forward.2} parent=31 // pred_region
          %s584 = smul.u32 2, %s33
        $region48: #{simple_view_forward.2} parent=31 // pred_fallthru
          _
      $region32: #{simple_view_forward.2} parent=5 // pred_fallthru
        _
      %p585 = scmp.le.s32.totalorder 2, %s24
      // Predicated region
      $region49: #{simple_view_forward.2} parent=5 // pred_check
        %p586 = pneg %p585
      $region50: #{simple_view_forward.2} parent=5 // pred_check_branch
        %588 = sbr.rel (%p586) target = $region52
      $region51: #{simple_view_forward.2} parent=5 // pred_region
        %s589 = ssub.s32 %s24, 2
        // Predicated region
        $region53: #{simple_view_forward.2} parent=51 // pred_check
          %p590 = pneg %p153
        $region54: #{simple_view_forward.2} parent=51 // pred_check_branch
          %592 = sbr.rel (%p590) target = $region56
        $region55: #{simple_view_forward.2} parent=51 // pred_region
          %s593 = smul.u32 2, %s35
          %p594 = scmp.lt.s32.totalorder %s593, 11
          %s595 = scalar_select %p594, %s593, 11
          %s596 = smul.addr %s595, 4
          %s597 = scalar_lea.vmem %s5, %s596
        $region56: #{simple_view_forward.2} parent=51 // pred_fallthru
          _
      $region52: #{simple_view_forward.2} parent=5 // pred_fallthru
        _
    $region6: #{simple_view_forward.2} parent=1 // loop_footer
      %s28 = sadd.s32 1, %s24
    $region7: #{simple_view_forward.2} parent=1 // loop_footer_branch
      %23 = sbr.rel target = $region3
    $region8: #{simple_view_forward.2} parent=1 // loop_exit
      _
    %598 = vsyncpa [#allocation7], 1
    %s599 = scalar_lea.sflag [#allocation7], 1
    %600 = vsyncpa %s599, 1

// kernel: simple_view_forward.3
$region0: #{simple_view_forward.3}
  #allocation0 [shape = 'u32[]', space=smem, size = 0x4, offset = 0x4, fixed_abs, tag = 'smem constant byte address 0x4 - core index']
  #allocation1 [shape = 'u32[144,128]{1,0:T(1,128)}', space=vmem, size = 0x12000, scoped, tag = 'internal scratch']
  %s0 = inlined_call_operand.vmem [shape: bf16[8,1536], index: 0, kind: input, shape index: {}]
  %s1 = inlined_call_operand.vmem [shape: bf16[8,128], index: 1, kind: input, shape index: {}]
  %s2 = inlined_call_operand.vmem [shape: bf16[128,256], index: 2, kind: input, shape index: {}]
  %s3 = inlined_call_operand.vmem [shape: f32[1,256], index: 3, kind: input, shape index: {}]
  %s4 = inlined_call_operand.hbm [shape: bf16[1536,256], index: 4, kind: input, shape index: {}]
  %s5 = inlined_call_operand.vmem [shape: bf16[256,256], index: 5, kind: input, shape index: {}]
  %s6 = inlined_call_operand.vmem [shape: f32[1,256], index: 6, kind: input, shape index: {}]
  %s7 = inlined_call_operand.vmem [shape: bf16[256,128], index: 7, kind: input, shape index: {}]
  %s8 = inlined_call_operand.vmem [shape: f32[1,128], index: 8, kind: input, shape index: {}]
  %s9 = inlined_call_operand.vmem [shape: f32[8,128], index: 9, kind: output, shape index: {}]
  %s10 = sld [smem:[#allocation0]]
  $region50: #{simple_view_forward.3} parent=0
    _
  %s12 = ssub.s32 1, %s10
  %s13 = scalar_select 0, %s12, %s10
  $region1: #{simple_view_forward.3} parent=0
    #allocation2 [shape = 'u8[786432]{0}', space=vmem, size = 0xc0000, scoped, tag = 'input window, operand 4, single buffered']
    #allocation3 [shape = 's32[1]{0}', space=sflag, size = 0x4, scoped, tag = 'scoped memory for simple_view_forward.3']
    %14 = vsyncpa [#allocation3], 0
    // Predicated region
    $region2: #{simple_view_forward.3} parent=1 // pred_check
      _
    $region3: #{simple_view_forward.3} parent=1 // pred_check_branch
      %16 = sbr.rel (0) target = $region5
    $region4: #{simple_view_forward.3} parent=1 // pred_region
      _
    $region5: #{simple_view_forward.3} parent=1 // pred_fallthru
      _
    // Predicated region
    $region6: #{simple_view_forward.3} parent=1 // pred_check
      _
    $region7: #{simple_view_forward.3} parent=1 // pred_check_branch
      %18 = sbr.rel (0) target = $region9
    $region8: #{simple_view_forward.3} parent=1 // pred_region
      _
    $region9: #{simple_view_forward.3} parent=1 // pred_fallthru
      _
    // Predicated region
    $region10: #{simple_view_forward.3} parent=1 // pred_check
      _
    $region11: #{simple_view_forward.3} parent=1 // pred_check_branch
      %20 = sbr.rel (0) target = $region13
    $region12: #{simple_view_forward.3} parent=1 // pred_region
      _
    $region13: #{simple_view_forward.3} parent=1 // pred_fallthru
      _
    // Predicated region
    $region14: #{simple_view_forward.3} parent=1 // pred_check
      _
    $region15: #{simple_view_forward.3} parent=1 // pred_check_branch
      %22 = sbr.rel (0) target = $region17
    $region16: #{simple_view_forward.3} parent=1 // pred_region
      _
    $region17: #{simple_view_forward.3} parent=1 // pred_fallthru
      _
    // Predicated region
    $region18: #{simple_view_forward.3} parent=1 // pred_check
      _
    $region19: #{simple_view_forward.3} parent=1 // pred_check_branch
      %24 = sbr.rel (0) target = $region21
    $region20: #{simple_view_forward.3} parent=1 // pred_region
      %s26 = ssub.s32 24576, 24576
      %27 = vsyncadd [#allocation3], %s26
      %s28 = sshll.u32 [#allocation2], 4
      %s29 = int_to_ptr.vmem [resolvable:$true] %s28
      %34 = dma.hbm_to_vmem [thread:$0]  %s4, 24576, %s29, [#allocation3], 128, 128, 8
    $region21: #{simple_view_forward.3} parent=1 // pred_fallthru
      _
    // Predicated region
    $region22: #{simple_view_forward.3} parent=1 // pred_check
      _
    $region23: #{simple_view_forward.3} parent=1 // pred_check_branch
      %36 = sbr.rel (0) target = $region25
    $region24: #{simple_view_forward.3} parent=1 // pred_region
      _
    $region25: #{simple_view_forward.3} parent=1 // pred_fallthru
      _
    // Predicated region
    $region26: #{simple_view_forward.3} parent=1 // pred_check
      _
    $region27: #{simple_view_forward.3} parent=1 // pred_check_branch
      %38 = sbr.rel (0) target = $region29
    $region28: #{simple_view_forward.3} parent=1 // pred_region
      _
    $region29: #{simple_view_forward.3} parent=1 // pred_fallthru
      _
    // Predicated region
    $region30: #{simple_view_forward.3} parent=1 // pred_check
      _
    $region31: #{simple_view_forward.3} parent=1 // pred_check_branch
      %40 = sbr.rel (0) target = $region33
    $region32: #{simple_view_forward.3} parent=1 // pred_region
      _
    $region33: #{simple_view_forward.3} parent=1 // pred_fallthru
      _
    // Predicated region
    $region34: #{simple_view_forward.3} parent=1 // pred_check
      _
    $region35: #{simple_view_forward.3} parent=1 // pred_check_branch
      %42 = sbr.rel (0) target = $region37
    $region36: #{simple_view_forward.3} parent=1 // pred_region
      _
    $region37: #{simple_view_forward.3} parent=1 // pred_fallthru
      _
    // Predicated region
    $region38: #{simple_view_forward.3} parent=1 // pred_check
      _
    $region39: #{simple_view_forward.3} parent=1 // pred_check_branch
      %44 = sbr.rel (0) target = $region41
    $region40: #{simple_view_forward.3} parent=1 // pred_region
      %45 = dma.done [#allocation3], 24576
    $region41: #{simple_view_forward.3} parent=1 // pred_fallthru
      _
    %v47 = vld [vmem:[%s1] sm:$0xf]
    %v48 = vld [vmem:[%s2] sm:$0xff]
    %v49 = vld [vmem:[%s2 + $0x8] sm:$0xff]
    %v50 = vld [vmem:[%s2 + $0x10] sm:$0xff]
    %v51 = vld [vmem:[%s2 + $0x18] sm:$0xff]
    %v52 = vld [vmem:[%s2 + $0x20] sm:$0xff]
    %v53 = vld [vmem:[%s2 + $0x28] sm:$0xff]
    %v54 = vld [vmem:[%s2 + $0x30] sm:$0xff]
    %v55 = vld [vmem:[%s2 + $0x38] sm:$0xff]
    %v56 = vld [vmem:[%s2 + $0x40] sm:$0xff]
    %v57 = vld [vmem:[%s2 + $0x48] sm:$0xff]
    %v58 = vld [vmem:[%s2 + $0x50] sm:$0xff]
    %v59 = vld [vmem:[%s2 + $0x58] sm:$0xff]
    %v60 = vld [vmem:[%s2 + $0x60] sm:$0xff]
    %v61 = vld [vmem:[%s2 + $0x68] sm:$0xff]
    %v62 = vld [vmem:[%s2 + $0x70] sm:$0xff]
    %v63 = vld [vmem:[%s2 + $0x78] sm:$0xff]
    %v64 = vld [vmem:[%s3] sm:$0x3]
    %v66 = vlaneseq
    %v67 = vshrl.u32 %v66, 7
    %v68 = vsub.s32 0, %v67
    %v69 = vrot.slane %v64, %v68
    %v70 = vlaneseq
    %v71 = vshrl.u32 %v70, 7
    %v72 = vsub.s32 1, %v71
    %v73 = vrot.slane %v64, %v72
    %v92 = vunpack.c.l.b16 %v48
    %v93 = vunpack.c.h.b16 %v48
    %v94 = vunpack.c.l.b16 %v49
    %v95 = vunpack.c.h.b16 %v49
    %v96 = vunpack.c.l.b16 %v50
    %v97 = vunpack.c.h.b16 %v50
    %v98 = vunpack.c.l.b16 %v51
    %v99 = vunpack.c.h.b16 %v51
    %v100 = vunpack.c.l.b16 %v52
    %v101 = vunpack.c.h.b16 %v52
    %v102 = vunpack.c.l.b16 %v53
    %v103 = vunpack.c.h.b16 %v53
    %v104 = vunpack.c.l.b16 %v54
    %v105 = vunpack.c.h.b16 %v54
    %v106 = vunpack.c.l.b16 %v55
    %v107 = vunpack.c.h.b16 %v55
    %v108 = vunpack.c.l.b16 %v56
    %v109 = vunpack.c.h.b16 %v56
    %v110 = vunpack.c.l.b16 %v57
    %v111 = vunpack.c.h.b16 %v57
    %v112 = vunpack.c.l.b16 %v58
    %v113 = vunpack.c.h.b16 %v58
    %v114 = vunpack.c.l.b16 %v59
    %v115 = vunpack.c.h.b16 %v59
    %v116 = vunpack.c.l.b16 %v60
    %v117 = vunpack.c.h.b16 %v60
    %v118 = vunpack.c.l.b16 %v61
    %v119 = vunpack.c.h.b16 %v61
    %v120 = vunpack.c.l.b16 %v62
    %v121 = vunpack.c.h.b16 %v62
    %v122 = vunpack.c.l.b16 %v63
    %v123 = vunpack.c.h.b16 %v63
    %v124 = vpack.c.b16 %v94, %v92
    %v125 = vpack.c.b16 %v95, %v93
    %v126 = vpack.c.b16 %v98, %v96
    %v127 = vpack.c.b16 %v99, %v97
    %v128 = vpack.c.b16 %v102, %v100
    %v129 = vpack.c.b16 %v103, %v101
    %v130 = vpack.c.b16 %v106, %v104
    %v131 = vpack.c.b16 %v107, %v105
    %v132 = vpack.c.b16 %v110, %v108
    %v133 = vpack.c.b16 %v111, %v109
    %v134 = vpack.c.b16 %v114, %v112
    %v135 = vpack.c.b16 %v115, %v113
    %v136 = vpack.c.b16 %v118, %v116
    %v137 = vpack.c.b16 %v119, %v117
    %v138 = vpack.c.b16 %v122, %v120
    %v139 = vpack.c.b16 %v123, %v121
    %156 = vmatprep.subr.bf16.mxu0 %v125
    %157 = vmatpush1.bf16.msra.mxu0 %v124
    %158 = vmatprep.subr.bf16.mxu0 %v127
    %159 = vmatpush1.bf16.msra.mxu0 %v126
    %160 = vmatprep.subr.bf16.mxu0 %v129
    %161 = vmatpush1.bf16.msra.mxu0 %v128
    %162 = vmatprep.subr.bf16.mxu0 %v131
    %163 = vmatpush1.bf16.msra.mxu0 %v130
    %164 = vmatprep.subr.bf16.mxu0 %v133
    %165 = vmatpush1.bf16.msra.mxu0 %v132
    %166 = vmatprep.subr.bf16.mxu0 %v135
    %167 = vmatpush1.bf16.msra.mxu0 %v134
    %168 = vmatprep.subr.bf16.mxu0 %v137
    %169 = vmatpush1.bf16.msra.mxu0 %v136
    %170 = vmatprep.subr.bf16.mxu0 %v139
    %171 = vmatpush1.bf16.msra.mxu0 %v138
    %172 = vmatprep.subr.bf16.mxu0 0
    %173 = vmatpush1.bf16.msra.mxu0 0
    %174 = vmatprep.subr.bf16.mxu0 0
    %175 = vmatpush1.bf16.msra.mxu0 0
    %176 = vmatprep.subr.bf16.mxu0 0
    %177 = vmatpush1.bf16.msra.mxu0 0
    %178 = vmatprep.subr.bf16.mxu0 0
    %179 = vmatpush1.bf16.msra.mxu0 0
    %180 = vmatprep.subr.bf16.mxu0 0
    %181 = vmatpush1.bf16.msra.mxu0 0
    %182 = vmatprep.subr.bf16.mxu0 0
    %183 = vmatpush1.bf16.msra.mxu0 0
    %184 = vmatprep.subr.bf16.mxu0 0
    %185 = vmatpush1.bf16.msra.mxu0 0
    %186 = vmatprep.subr.bf16.mxu0 0
    %187 = vmatpush1.bf16.msra.mxu0 0
    %188 = vmatprep.mubr.bf16.mxu0 0
    %189 = vmatmul.mubr.bf16.gmra.mrb[0].mxu0 %v47
    %v190 = vpop.f32.mrb[0].mxu0
    %v191 = vadd.f32 %v69, %v190
    %v192 = vpop.f32.mrb[0].mxu0
    %v193 = vadd.f32 %v73, %v192
    %v194 = vpop.f32.mrb[0].mxu0
    %v195 = vpop.f32.mrb[0].mxu0
    %196 = vdwg.mxu0
    %v197 = vmax.f32 %v191, 0.0
    %v198 = vmax.f32 %v193, 0.0
    %v199 = vld [vmem:[%s0] sm:$0xff]
    %v200 = vld [vmem:[%s0 + $0x8] sm:$0xff]
    %v201 = vld [vmem:[%s0 + $0x10] sm:$0xff]
    %v202 = vld [vmem:[%s0 + $0x18] sm:$0xff]
    %v203 = vld [vmem:[%s0 + $0x20] sm:$0xff]
    %v204 = vld [vmem:[%s0 + $0x28] sm:$0xff]
    %v205 = vld [vmem:[#allocation2] sm:$0xff]
    %v206 = vld [vmem:[#allocation2 + $0x8] sm:$0xff]
    %v207 = vld [vmem:[#allocation2 + $0x10] sm:$0xff]
    %v208 = vld [vmem:[#allocation2 + $0x18] sm:$0xff]
    %v209 = vld [vmem:[#allocation2 + $0x20] sm:$0xff]
    %v210 = vld [vmem:[#allocation2 + $0x28] sm:$0xff]
    %v211 = vld [vmem:[#allocation2 + $0x30] sm:$0xff]
    %v212 = vld [vmem:[#allocation2 + $0x38] sm:$0xff]
    %v213 = vld [vmem:[#allocation2 + $0x40] sm:$0xff]
    %v214 = vld [vmem:[#allocation2 + $0x48] sm:$0xff]
    %v215 = vld [vmem:[#allocation2 + $0x50] sm:$0xff]
    %v216 = vld [vmem:[#allocation2 + $0x58] sm:$0xff]
    %v217 = vld [vmem:[#allocation2 + $0x60] sm:$0xff]
    %v218 = vld [vmem:[#allocation2 + $0x68] sm:$0xff]
    %v219 = vld [vmem:[#allocation2 + $0x70] sm:$0xff]
    %v220 = vld [vmem:[#allocation2 + $0x78] sm:$0xff]
    %v221 = vld [vmem:[#allocation2 + $0x80] sm:$0xff]
    %v222 = vld [vmem:[#allocation2 + $0x88] sm:$0xff]
    %v223 = vld [vmem:[#allocation2 + $0x90] sm:$0xff]
    %v224 = vld [vmem:[#allocation2 + $0x98] sm:$0xff]
    %v225 = vld [vmem:[#allocation2 + $0xa0] sm:$0xff]
    %v226 = vld [vmem:[#allocation2 + $0xa8] sm:$0xff]
    %v227 = vld [vmem:[#allocation2 + $0xb0] sm:$0xff]
    %v228 = vld [vmem:[#allocation2 + $0xb8] sm:$0xff]
    %v229 = vld [vmem:[#allocation2 + $0xc0] sm:$0xff]
    %v230 = vld [vmem:[#allocation2 + $0xc8] sm:$0xff]
    %v231 = vld [vmem:[#allocation2 + $0xd0] sm:$0xff]
    %v232 = vld [vmem:[#allocation2 + $0xd8] sm:$0xff]
    %v233 = vld [vmem:[#allocation2 + $0xe0] sm:$0xff]
    %v234 = vld [vmem:[#allocation2 + $0xe8] sm:$0xff]
    %v235 = vld [vmem:[#allocation2 + $0xf0] sm:$0xff]
    %v236 = vld [vmem:[#allocation2 + $0xf8] sm:$0xff]
    %v237 = vld [vmem:[#allocation2 + $0x100] sm:$0xff]
    %v238 = vld [vmem:[#allocation2 + $0x108] sm:$0xff]
    %v239 = vld [vmem:[#allocation2 + $0x110] sm:$0xff]
    %v240 = vld [vmem:[#allocation2 + $0x118] sm:$0xff]
    %v241 = vld [vmem:[#allocation2 + $0x120] sm:$0xff]
    %v242 = vld [vmem:[#allocation2 + $0x128] sm:$0xff]
    %v243 = vld [vmem:[#allocation2 + $0x130] sm:$0xff]
    %v244 = vld [vmem:[#allocation2 + $0x138] sm:$0xff]
    %v245 = vld [vmem:[#allocation2 + $0x140] sm:$0xff]
    %v246 = vld [vmem:[#allocation2 + $0x148] sm:$0xff]
    %v247 = vld [vmem:[#allocation2 + $0x150] sm:$0xff]
    %v248 = vld [vmem:[#allocation2 + $0x158] sm:$0xff]
    %v249 = vld [vmem:[#allocation2 + $0x160] sm:$0xff]
    %v250 = vld [vmem:[#allocation2 + $0x168] sm:$0xff]
    %v251 = vld [vmem:[#allocation2 + $0x170] sm:$0xff]
    %v252 = vld [vmem:[#allocation2 + $0x178] sm:$0xff]
    %v253 = vld [vmem:[#allocation2 + $0x180] sm:$0xff]
    %v254 = vld [vmem:[#allocation2 + $0x188] sm:$0xff]
    %v255 = vld [vmem:[#allocation2 + $0x190] sm:$0xff]
    %v256 = vld [vmem:[#allocation2 + $0x198] sm:$0xff]
    %v257 = vld [vmem:[#allocation2 + $0x1a0] sm:$0xff]
    %v258 = vld [vmem:[#allocation2 + $0x1a8] sm:$0xff]
    %v259 = vld [vmem:[#allocation2 + $0x1b0] sm:$0xff]
    %v260 = vld [vmem:[#allocation2 + $0x1b8] sm:$0xff]
    %v261 = vld [vmem:[#allocation2 + $0x1c0] sm:$0xff]
    %v262 = vld [vmem:[#allocation2 + $0x1c8] sm:$0xff]
    %v263 = vld [vmem:[#allocation2 + $0x1d0] sm:$0xff]
    %v264 = vld [vmem:[#allocation2 + $0x1d8] sm:$0xff]
    %v265 = vld [vmem:[#allocation2 + $0x1e0] sm:$0xff]
    %v266 = vld [vmem:[#allocation2 + $0x1e8] sm:$0xff]
    %v267 = vld [vmem:[#allocation2 + $0x1f0] sm:$0xff]
    %v268 = vld [vmem:[#allocation2 + $0x1f8] sm:$0xff]
    %v269 = vld [vmem:[#allocation2 + $0x200] sm:$0xff]
    %v270 = vld [vmem:[#allocation2 + $0x208] sm:$0xff]
    %v271 = vld [vmem:[#allocation2 + $0x210] sm:$0xff]
    %v272 = vld [vmem:[#allocation2 + $0x218] sm:$0xff]
    %v273 = vld [vmem:[#allocation2 + $0x220] sm:$0xff]
    %v274 = vld [vmem:[#allocation2 + $0x228] sm:$0xff]
    %v275 = vld [vmem:[#allocation2 + $0x230] sm:$0xff]
    %v276 = vld [vmem:[#allocation2 + $0x238] sm:$0xff]
    %v277 = vld [vmem:[#allocation2 + $0x240] sm:$0xff]
    %v278 = vld [vmem:[#allocation2 + $0x248] sm:$0xff]
    %v279 = vld [vmem:[#allocation2 + $0x250] sm:$0xff]
    %v280 = vld [vmem:[#allocation2 + $0x258] sm:$0xff]
    %v281 = vld [vmem:[#allocation2 + $0x260] sm:$0xff]
    %v282 = vld [vmem:[#allocation2 + $0x268] sm:$0xff]
    %v283 = vld [vmem:[#allocation2 + $0x270] sm:$0xff]
    %v284 = vld [vmem:[#allocation2 + $0x278] sm:$0xff]
    %v285 = vld [vmem:[#allocation2 + $0x280] sm:$0xff]
    %v286 = vld [vmem:[#allocation2 + $0x288] sm:$0xff]
    %v287 = vld [vmem:[#allocation2 + $0x290] sm:$0xff]
    %v288 = vld [vmem:[#allocation2 + $0x298] sm:$0xff]
    %v289 = vld [vmem:[#allocation2 + $0x2a0] sm:$0xff]
    %v290 = vld [vmem:[#allocation2 + $0x2a8] sm:$0xff]
    %v291 = vld [vmem:[#allocation2 + $0x2b0] sm:$0xff]
    %v292 = vld [vmem:[#allocation2 + $0x2b8] sm:$0xff]
    %v293 = vld [vmem:[#allocation2 + $0x2c0] sm:$0xff]
    %v294 = vld [vmem:[#allocation2 + $0x2c8] sm:$0xff]
    %v295 = vld [vmem:[#allocation2 + $0x2d0] sm:$0xff]
    %v296 = vld [vmem:[#allocation2 + $0x2d8] sm:$0xff]
    %v297 = vld [vmem:[#allocation2 + $0x2e0] sm:$0xff]
    %v298 = vld [vmem:[#allocation2 + $0x2e8] sm:$0xff]
    %v299 = vld [vmem:[#allocation2 + $0x2f0] sm:$0xff]
    %v300 = vld [vmem:[#allocation2 + $0x2f8] sm:$0xff]
    %v301 = vld [vmem:[#allocation2 + $0x300] sm:$0xff]
    %v302 = vld [vmem:[#allocation2 + $0x308] sm:$0xff]
    %v303 = vld [vmem:[#allocation2 + $0x310] sm:$0xff]
    %v304 = vld [vmem:[#allocation2 + $0x318] sm:$0xff]
    %v305 = vld [vmem:[#allocation2 + $0x320] sm:$0xff]
    %v306 = vld [vmem:[#allocation2 + $0x328] sm:$0xff]
    %v307 = vld [vmem:[#allocation2 + $0x330] sm:$0xff]
    %v308 = vld [vmem:[#allocation2 + $0x338] sm:$0xff]
    %v309 = vld [vmem:[#allocation2 + $0x340] sm:$0xff]
    %v310 = vld [vmem:[#allocation2 + $0x348] sm:$0xff]
    %v311 = vld [vmem:[#allocation2 + $0x350] sm:$0xff]
    %v312 = vld [vmem:[#allocation2 + $0x358] sm:$0xff]
    %v313 = vld [vmem:[#allocation2 + $0x360] sm:$0xff]
    %v314 = vld [vmem:[#allocation2 + $0x368] sm:$0xff]
    %v315 = vld [vmem:[#allocation2 + $0x370] sm:$0xff]
    %v316 = vld [vmem:[#allocation2 + $0x378] sm:$0xff]
    %v317 = vld [vmem:[#allocation2 + $0x380] sm:$0xff]
    %v318 = vld [vmem:[#allocation2 + $0x388] sm:$0xff]
    %v319 = vld [vmem:[#allocation2 + $0x390] sm:$0xff]
    %v320 = vld [vmem:[#allocation2 + $0x398] sm:$0xff]
    %v321 = vld [vmem:[#allocation2 + $0x3a0] sm:$0xff]
    %v322 = vld [vmem:[#allocation2 + $0x3a8] sm:$0xff]
    %v323 = vld [vmem:[#allocation2 + $0x3b0] sm:$0xff]
    %v324 = vld [vmem:[#allocation2 + $0x3b8] sm:$0xff]
    %v325 = vld [vmem:[#allocation2 + $0x3c0] sm:$0xff]
    %v326 = vld [vmem:[#allocation2 + $0x3c8] sm:$0xff]
    %v327 = vld [vmem:[#allocation2 + $0x3d0] sm:$0xff]
    %v328 = vld [vmem:[#allocation2 + $0x3d8] sm:$0xff]
    %v329 = vld [vmem:[#allocation2 + $0x3e0] sm:$0xff]
    %v330 = vld [vmem:[#allocation2 + $0x3e8] sm:$0xff]
    %v331 = vld [vmem:[#allocation2 + $0x3f0] sm:$0xff]
    %v332 = vld [vmem:[#allocation2 + $0x3f8] sm:$0xff]
    %v333 = vld [vmem:[#allocation2 + $0x400] sm:$0xff]
    %v334 = vld [vmem:[#allocation2 + $0x408] sm:$0xff]
    %v335 = vld [vmem:[#allocation2 + $0x410] sm:$0xff]
    %v336 = vld [vmem:[#allocation2 + $0x418] sm:$0xff]
    %v337 = vld [vmem:[#allocation2 + $0x420] sm:$0xff]
    %v338 = vld [vmem:[#allocation2 + $0x428] sm:$0xff]
    %v339 = vld [vmem:[#allocation2 + $0x430] sm:$0xff]
    %v340 = vld [vmem:[#allocation2 + $0x438] sm:$0xff]
    %v341 = vld [vmem:[#allocation2 + $0x440] sm:$0xff]
    %v342 = vld [vmem:[#allocation2 + $0x448] sm:$0xff]
    %v343 = vld [vmem:[#allocation2 + $0x450] sm:$0xff]
    %v344 = vld [vmem:[#allocation2 + $0x458] sm:$0xff]
    %v345 = vld [vmem:[#allocation2 + $0x460] sm:$0xff]
    %v346 = vld [vmem:[#allocation2 + $0x468] sm:$0xff]
    %v347 = vld [vmem:[#allocation2 + $0x470] sm:$0xff]
    %v348 = vld [vmem:[#allocation2 + $0x478] sm:$0xff]
    %v349 = vld [vmem:[#allocation2 + $0x480] sm:$0xff]
    %v350 = vld [vmem:[#allocation2 + $0x488] sm:$0xff]
    %v351 = vld [vmem:[#allocation2 + $0x490] sm:$0xff]
    %v352 = vld [vmem:[#allocation2 + $0x498] sm:$0xff]
    %v353 = vld [vmem:[#allocation2 + $0x4a0] sm:$0xff]
    %v354 = vld [vmem:[#allocation2 + $0x4a8] sm:$0xff]
    %v355 = vld [vmem:[#allocation2 + $0x4b0] sm:$0xff]
    %v356 = vld [vmem:[#allocation2 + $0x4b8] sm:$0xff]
    %v357 = vld [vmem:[#allocation2 + $0x4c0] sm:$0xff]
    %v358 = vld [vmem:[#allocation2 + $0x4c8] sm:$0xff]
    %v359 = vld [vmem:[#allocation2 + $0x4d0] sm:$0xff]
    %v360 = vld [vmem:[#allocation2 + $0x4d8] sm:$0xff]
    %v361 = vld [vmem:[#allocation2 + $0x4e0] sm:$0xff]
    %v362 = vld [vmem:[#allocation2 + $0x4e8] sm:$0xff]
    %v363 = vld [vmem:[#allocation2 + $0x4f0] sm:$0xff]
    %v364 = vld [vmem:[#allocation2 + $0x4f8] sm:$0xff]
    %v365 = vld [vmem:[#allocation2 + $0x500] sm:$0xff]
    %v366 = vld [vmem:[#allocation2 + $0x508] sm:$0xff]
    %v367 = vld [vmem:[#allocation2 + $0x510] sm:$0xff]
    %v368 = vld [vmem:[#allocation2 + $0x518] sm:$0xff]
    %v369 = vld [vmem:[#allocation2 + $0x520] sm:$0xff]
    %v370 = vld [vmem:[#allocation2 + $0x528] sm:$0xff]
    %v371 = vld [vmem:[#allocation2 + $0x530] sm:$0xff]
    %v372 = vld [vmem:[#allocation2 + $0x538] sm:$0xff]
    %v373 = vld [vmem:[#allocation2 + $0x540] sm:$0xff]
    %v374 = vld [vmem:[#allocation2 + $0x548] sm:$0xff]
    %v375 = vld [vmem:[#allocation2 + $0x550] sm:$0xff]
    %v376 = vld [vmem:[#allocation2 + $0x558] sm:$0xff]
    %v377 = vld [vmem:[#allocation2 + $0x560] sm:$0xff]
    %v378 = vld [vmem:[#allocation2 + $0x568] sm:$0xff]
    %v379 = vld [vmem:[#allocation2 + $0x570] sm:$0xff]
    %v380 = vld [vmem:[#allocation2 + $0x578] sm:$0xff]
    %v381 = vld [vmem:[#allocation2 + $0x580] sm:$0xff]
    %v382 = vld [vmem:[#allocation2 + $0x588] sm:$0xff]
    %v383 = vld [vmem:[#allocation2 + $0x590] sm:$0xff]
    %v384 = vld [vmem:[#allocation2 + $0x598] sm:$0xff]
    %v385 = vld [vmem:[#allocation2 + $0x5a0] sm:$0xff]
    %v386 = vld [vmem:[#allocation2 + $0x5a8] sm:$0xff]
    %v387 = vld [vmem:[#allocation2 + $0x5b0] sm:$0xff]
    %v388 = vld [vmem:[#allocation2 + $0x5b8] sm:$0xff]
    %v389 = vld [vmem:[#allocation2 + $0x5c0] sm:$0xff]
    %v390 = vld [vmem:[#allocation2 + $0x5c8] sm:$0xff]
    %v391 = vld [vmem:[#allocation2 + $0x5d0] sm:$0xff]
    %v392 = vld [vmem:[#allocation2 + $0x5d8] sm:$0xff]
    %v393 = vld [vmem:[#allocation2 + $0x5e0] sm:$0xff]
    %v394 = vld [vmem:[#allocation2 + $0x5e8] sm:$0xff]
    %v395 = vld [vmem:[#allocation2 + $0x5f0] sm:$0xff]
    %v396 = vld [vmem:[#allocation2 + $0x5f8] sm:$0xff]
    %v397 = vpack.c.bf16 %v197, %v197
    %v398 = vpack.c.bf16 %v198, %v198
    %v399 = vld [vmem:[%s5] sm:$0xff]
    %v400 = vld [vmem:[%s5 + $0x8] sm:$0xff]
    %v401 = vld [vmem:[%s5 + $0x10] sm:$0xff]
    %v402 = vld [vmem:[%s5 + $0x18] sm:$0xff]
    %v403 = vld [vmem:[%s5 + $0x20] sm:$0xff]
    %v404 = vld [vmem:[%s5 + $0x28] sm:$0xff]
    %v405 = vld [vmem:[%s5 + $0x30] sm:$0xff]
    %v406 = vld [vmem:[%s5 + $0x38] sm:$0xff]
    %v407 = vld [vmem:[%s5 + $0x40] sm:$0xff]
    %v408 = vld [vmem:[%s5 + $0x48] sm:$0xff]
    %v409 = vld [vmem:[%s5 + $0x50] sm:$0xff]
    %v410 = vld [vmem:[%s5 + $0x58] sm:$0xff]
    %v411 = vld [vmem:[%s5 + $0x60] sm:$0xff]
    %v412 = vld [vmem:[%s5 + $0x68] sm:$0xff]
    %v413 = vld [vmem:[%s5 + $0x70] sm:$0xff]
    %v414 = vld [vmem:[%s5 + $0x78] sm:$0xff]
    %v415 = vld [vmem:[%s5 + $0x80] sm:$0xff]
    %v416 = vld [vmem:[%s5 + $0x88] sm:$0xff]
    %v417 = vld [vmem:[%s5 + $0x90] sm:$0xff]
    %v418 = vld [vmem:[%s5 + $0x98] sm:$0xff]
    %v419 = vld [vmem:[%s5 + $0xa0] sm:$0xff]
    %v420 = vld [vmem:[%s5 + $0xa8] sm:$0xff]
    %v421 = vld [vmem:[%s5 + $0xb0] sm:$0xff]
    %v422 = vld [vmem:[%s5 + $0xb8] sm:$0xff]
    %v423 = vld [vmem:[%s5 + $0xc0] sm:$0xff]
    %v424 = vld [vmem:[%s5 + $0xc8] sm:$0xff]
    %v425 = vld [vmem:[%s5 + $0xd0] sm:$0xff]
    %v426 = vld [vmem:[%s5 + $0xd8] sm:$0xff]
    %v427 = vld [vmem:[%s5 + $0xe0] sm:$0xff]
    %v428 = vld [vmem:[%s5 + $0xe8] sm:$0xff]
    %v429 = vld [vmem:[%s5 + $0xf0] sm:$0xff]
    %v430 = vld [vmem:[%s5 + $0xf8] sm:$0xff]
    %v463 = vunpack.c.l.b16 %v399
    %v464 = vunpack.c.h.b16 %v399
    %v465 = vunpack.c.l.b16 %v400
    %v466 = vunpack.c.h.b16 %v400
    %v467 = vunpack.c.l.b16 %v401
    %v468 = vunpack.c.h.b16 %v401
    %v469 = vunpack.c.l.b16 %v402
    %v470 = vunpack.c.h.b16 %v402
    %v471 = vunpack.c.l.b16 %v403
    %v472 = vunpack.c.h.b16 %v403
    %v473 = vunpack.c.l.b16 %v404
    %v474 = vunpack.c.h.b16 %v404
    %v475 = vunpack.c.l.b16 %v405
    %v476 = vunpack.c.h.b16 %v405
    %v477 = vunpack.c.l.b16 %v406
    %v478 = vunpack.c.h.b16 %v406
    %v479 = vunpack.c.l.b16 %v407
    %v480 = vunpack.c.h.b16 %v407
    %v481 = vunpack.c.l.b16 %v408
    %v482 = vunpack.c.h.b16 %v408
    %v483 = vunpack.c.l.b16 %v409
    %v484 = vunpack.c.h.b16 %v409
    %v485 = vunpack.c.l.b16 %v410
    %v486 = vunpack.c.h.b16 %v410
    %v487 = vunpack.c.l.b16 %v411
    %v488 = vunpack.c.h.b16 %v411
    %v489 = vunpack.c.l.b16 %v412
    %v490 = vunpack.c.h.b16 %v412
    %v491 = vunpack.c.l.b16 %v413
    %v492 = vunpack.c.h.b16 %v413
    %v493 = vunpack.c.l.b16 %v414
    %v494 = vunpack.c.h.b16 %v414
    %v495 = vunpack.c.l.b16 %v415
    %v496 = vunpack.c.h.b16 %v415
    %v497 = vunpack.c.l.b16 %v416
    %v498 = vunpack.c.h.b16 %v416
    %v499 = vunpack.c.l.b16 %v417
    %v500 = vunpack.c.h.b16 %v417
    %v501 = vunpack.c.l.b16 %v418
    %v502 = vunpack.c.h.b16 %v418
    %v503 = vunpack.c.l.b16 %v419
    %v504 = vunpack.c.h.b16 %v419
    %v505 = vunpack.c.l.b16 %v420
    %v506 = vunpack.c.h.b16 %v420
    %v507 = vunpack.c.l.b16 %v421
    %v508 = vunpack.c.h.b16 %v421
    %v509 = vunpack.c.l.b16 %v422
    %v510 = vunpack.c.h.b16 %v422
    %v511 = vunpack.c.l.b16 %v423
    %v512 = vunpack.c.h.b16 %v423
    %v513 = vunpack.c.l.b16 %v424
    %v514 = vunpack.c.h.b16 %v424
    %v515 = vunpack.c.l.b16 %v425
    %v516 = vunpack.c.h.b16 %v425
    %v517 = vunpack.c.l.b16 %v426
    %v518 = vunpack.c.h.b16 %v426
    %v519 = vunpack.c.l.b16 %v427
    %v520 = vunpack.c.h.b16 %v427
    %v521 = vunpack.c.l.b16 %v428
    %v522 = vunpack.c.h.b16 %v428
    %v523 = vunpack.c.l.b16 %v429
    %v524 = vunpack.c.h.b16 %v429
    %v525 = vunpack.c.l.b16 %v430
    %v526 = vunpack.c.h.b16 %v430
    %v527 = vpack.c.b16 %v465, %v463
    %v528 = vpack.c.b16 %v466, %v464
    %v529 = vpack.c.b16 %v469, %v467
    %v530 = vpack.c.b16 %v470, %v468
    %v531 = vpack.c.b16 %v473, %v471
    %v532 = vpack.c.b16 %v474, %v472
    %v533 = vpack.c.b16 %v477, %v475
    %v534 = vpack.c.b16 %v478, %v476
    %v535 = vpack.c.b16 %v481, %v479
    %v536 = vpack.c.b16 %v482, %v480
    %v537 = vpack.c.b16 %v485, %v483
    %v538 = vpack.c.b16 %v486, %v484
    %v539 = vpack.c.b16 %v489, %v487
    %v540 = vpack.c.b16 %v490, %v488
    %v541 = vpack.c.b16 %v493, %v491
    %v542 = vpack.c.b16 %v494, %v492
    %v543 = vpack.c.b16 %v497, %v495
    %v544 = vpack.c.b16 %v498, %v496
    %v545 = vpack.c.b16 %v501, %v499
    %v546 = vpack.c.b16 %v502, %v500
    %v547 = vpack.c.b16 %v505, %v503
    %v548 = vpack.c.b16 %v506, %v504
    %v549 = vpack.c.b16 %v509, %v507
    %v550 = vpack.c.b16 %v510, %v508
    %v551 = vpack.c.b16 %v513, %v511
    %v552 = vpack.c.b16 %v514, %v512
    %v553 = vpack.c.b16 %v517, %v515
    %v554 = vpack.c.b16 %v518, %v516
    %v555 = vpack.c.b16 %v521, %v519
    %v556 = vpack.c.b16 %v522, %v520
    %v557 = vpack.c.b16 %v525, %v523
    %v558 = vpack.c.b16 %v526, %v524
    %591 = vmatprep.subr.bf16.mxu0 %v528
    %592 = vmatpush1.bf16.msra.mxu0 %v527
    %593 = vmatprep.subr.bf16.mxu0 %v530
    %594 = vmatpush1.bf16.msra.mxu0 %v529
    %595 = vmatprep.subr.bf16.mxu0 %v532
    %596 = vmatpush1.bf16.msra.mxu0 %v531
    %597 = vmatprep.subr.bf16.mxu0 %v534
    %598 = vmatpush1.bf16.msra.mxu0 %v533
    %599 = vmatprep.subr.bf16.mxu0 %v536
    %600 = vmatpush1.bf16.msra.mxu0 %v535
    %601 = vmatprep.subr.bf16.mxu0 %v538
    %602 = vmatpush1.bf16.msra.mxu0 %v537
    %603 = vmatprep.subr.bf16.mxu0 %v540
    %604 = vmatpush1.bf16.msra.mxu0 %v539
    %605 = vmatprep.subr.bf16.mxu0 %v542
    %606 = vmatpush1.bf16.msra.mxu0 %v541
    %607 = vmatprep.subr.bf16.mxu0 %v544
    %608 = vmatpush1.bf16.msra.mxu0 %v543
    %609 = vmatprep.subr.bf16.mxu0 %v546
    %610 = vmatpush1.bf16.msra.mxu0 %v545
    %611 = vmatprep.subr.bf16.mxu0 %v548
    %612 = vmatpush1.bf16.msra.mxu0 %v547
    %613 = vmatprep.subr.bf16.mxu0 %v550
    %614 = vmatpush1.bf16.msra.mxu0 %v549
    %615 = vmatprep.subr.bf16.mxu0 %v552
    %616 = vmatpush1.bf16.msra.mxu0 %v551
    %617 = vmatprep.subr.bf16.mxu0 %v554
    %618 = vmatpush1.bf16.msra.mxu0 %v553
    %619 = vmatprep.subr.bf16.mxu0 %v556
    %620 = vmatpush1.bf16.msra.mxu0 %v555
    %621 = vmatprep.subr.bf16.mxu0 %v558
    %622 = vmatpush1.bf16.msra.mxu0 %v557
    %623 = vmatprep.mubr.bf16.mxu0 %v398
    %624 = vmatmul.mubr.bf16.gmra.mrb[0].mxu0 %v397
    %v625 = vpop.f32.mrb[0].mxu0
    %v626 = vadd.f32 0.0, %v625
    %v627 = vpop.f32.mrb[0].mxu0
    %v628 = vadd.f32 0.0, %v627
    %v629 = vpop.f32.mrb[0].mxu0
    %v630 = vpop.f32.mrb[0].mxu0
    %631 = vdwg.mxu0
    %v638 = vunpack.c.l.b16 %v199
    %v639 = vunpack.c.h.b16 %v199
    %v640 = vunpack.c.l.b16 %v200
    %v641 = vunpack.c.h.b16 %v200
    %v642 = vunpack.c.l.b16 %v201
    %v643 = vunpack.c.h.b16 %v201
    %v644 = vunpack.c.l.b16 %v202
    %v645 = vunpack.c.h.b16 %v202
    %v646 = vunpack.c.l.b16 %v203
    %v647 = vunpack.c.h.b16 %v203
    %v648 = vunpack.c.l.b16 %v204
    %v649 = vunpack.c.h.b16 %v204
    %v650 = vpack.c.b16 %v638, %v638
    %v651 = vpack.c.b16 %v639, %v639
    %v652 = vpack.c.b16 %v640, %v640
    %v653 = vpack.c.b16 %v641, %v641
    %v654 = vpack.c.b16 %v642, %v642
    %v655 = vpack.c.b16 %v643, %v643
    %v656 = vpack.c.b16 %v644, %v644
    %v657 = vpack.c.b16 %v645, %v645
    %v658 = vpack.c.b16 %v646, %v646
    %v659 = vpack.c.b16 %v647, %v647
    %v660 = vpack.c.b16 %v648, %v648
    %v661 = vpack.c.b16 %v649, %v649
    %v866 = vunpack.c.l.b16 %v205
    %v867 = vunpack.c.h.b16 %v205
    %v868 = vunpack.c.l.b16 %v206
    %v869 = vunpack.c.h.b16 %v206
    %v870 = vunpack.c.l.b16 %v207
    %v871 = vunpack.c.h.b16 %v207
    %v872 = vunpack.c.l.b16 %v208
    %v873 = vunpack.c.h.b16 %v208
    %v874 = vunpack.c.l.b16 %v209
    %v875 = vunpack.c.h.b16 %v209
    %v876 = vunpack.c.l.b16 %v210
    %v877 = vunpack.c.h.b16 %v210
    %v878 = vunpack.c.l.b16 %v211
    %v879 = vunpack.c.h.b16 %v211
    %v880 = vunpack.c.l.b16 %v212
    %v881 = vunpack.c.h.b16 %v212
    %v882 = vunpack.c.l.b16 %v213
    %v883 = vunpack.c.h.b16 %v213
    %v884 = vunpack.c.l.b16 %v214
    %v885 = vunpack.c.h.b16 %v214
    %v886 = vunpack.c.l.b16 %v215
    %v887 = vunpack.c.h.b16 %v215
    %v888 = vunpack.c.l.b16 %v216
    %v889 = vunpack.c.h.b16 %v216
    %v890 = vunpack.c.l.b16 %v217
    %v891 = vunpack.c.h.b16 %v217
    %v892 = vunpack.c.l.b16 %v218
    %v893 = vunpack.c.h.b16 %v218
    %v894 = vunpack.c.l.b16 %v219
    %v895 = vunpack.c.h.b16 %v219
    %v896 = vunpack.c.l.b16 %v220
    %v897 = vunpack.c.h.b16 %v220
    %v898 = vunpack.c.l.b16 %v221
    %v899 = vunpack.c.h.b16 %v221
    %v900 = vunpack.c.l.b16 %v222
    %v901 = vunpack.c.h.b16 %v222
    %v902 = vunpack.c.l.b16 %v223
    %v903 = vunpack.c.h.b16 %v223
    %v904 = vunpack.c.l.b16 %v224
    %v905 = vunpack.c.h.b16 %v224
    %v906 = vunpack.c.l.b16 %v225
    %v907 = vunpack.c.h.b16 %v225
    %v908 = vunpack.c.l.b16 %v226
    %v909 = vunpack.c.h.b16 %v226
    %v910 = vunpack.c.l.b16 %v227
    %v911 = vunpack.c.h.b16 %v227
    %v912 = vunpack.c.l.b16 %v228
    %v913 = vunpack.c.h.b16 %v228
    %v914 = vunpack.c.l.b16 %v229
    %v915 = vunpack.c.h.b16 %v229
    %v916 = vunpack.c.l.b16 %v230
    %v917 = vunpack.c.h.b16 %v230
    %v918 = vunpack.c.l.b16 %v231
    %v919 = vunpack.c.h.b16 %v231
    %v920 = vunpack.c.l.b16 %v232
    %v921 = vunpack.c.h.b16 %v232
    %v922 = vunpack.c.l.b16 %v233
    %v923 = vunpack.c.h.b16 %v233
    %v924 = vunpack.c.l.b16 %v234
    %v925 = vunpack.c.h.b16 %v234
    %v926 = vunpack.c.l.b16 %v235
    %v927 = vunpack.c.h.b16 %v235
    %v928 = vunpack.c.l.b16 %v236
    %v929 = vunpack.c.h.b16 %v236
    %v930 = vunpack.c.l.b16 %v237
    %v931 = vunpack.c.h.b16 %v237
    %v932 = vunpack.c.l.b16 %v238
    %v933 = vunpack.c.h.b16 %v238
    %v934 = vunpack.c.l.b16 %v239
    %v935 = vunpack.c.h.b16 %v239
    %v936 = vunpack.c.l.b16 %v240
    %v937 = vunpack.c.h.b16 %v240
    %v938 = vunpack.c.l.b16 %v241
    %v939 = vunpack.c.h.b16 %v241
    %v940 = vunpack.c.l.b16 %v242
    %v941 = vunpack.c.h.b16 %v242
    %v942 = vunpack.c.l.b16 %v243
    %v943 = vunpack.c.h.b16 %v243
    %v944 = vunpack.c.l.b16 %v244
    %v945 = vunpack.c.h.b16 %v244
    %v946 = vunpack.c.l.b16 %v245
    %v947 = vunpack.c.h.b16 %v245
    %v948 = vunpack.c.l.b16 %v246
    %v949 = vunpack.c.h.b16 %v246
    %v950 = vunpack.c.l.b16 %v247
    %v951 = vunpack.c.h.b16 %v247
    %v952 = vunpack.c.l.b16 %v248
    %v953 = vunpack.c.h.b16 %v248
    %v954 = vunpack.c.l.b16 %v249
    %v955 = vunpack.c.h.b16 %v249
    %v956 = vunpack.c.l.b16 %v250
    %v957 = vunpack.c.h.b16 %v250
    %v958 = vunpack.c.l.b16 %v251
    %v959 = vunpack.c.h.b16 %v251
    %v960 = vunpack.c.l.b16 %v252
    %v961 = vunpack.c.h.b16 %v252
    %v962 = vunpack.c.l.b16 %v253
    %v963 = vunpack.c.h.b16 %v253
    %v964 = vunpack.c.l.b16 %v254
    %v965 = vunpack.c.h.b16 %v254
    %v966 = vunpack.c.l.b16 %v255
    %v967 = vunpack.c.h.b16 %v255
    %v968 = vunpack.c.l.b16 %v256
    %v969 = vunpack.c.h.b16 %v256
    %v970 = vunpack.c.l.b16 %v257
    %v971 = vunpack.c.h.b16 %v257
    %v972 = vunpack.c.l.b16 %v258
    %v973 = vunpack.c.h.b16 %v258
    %v974 = vunpack.c.l.b16 %v259
    %v975 = vunpack.c.h.b16 %v259
    %v976 = vunpack.c.l.b16 %v260
    %v977 = vunpack.c.h.b16 %v260
    %v978 = vunpack.c.l.b16 %v261
    %v979 = vunpack.c.h.b16 %v261
    %v980 = vunpack.c.l.b16 %v262
    %v981 = vunpack.c.h.b16 %v262
    %v982 = vunpack.c.l.b16 %v263
    %v983 = vunpack.c.h.b16 %v263
    %v984 = vunpack.c.l.b16 %v264
    %v985 = vunpack.c.h.b16 %v264
    %v986 = vunpack.c.l.b16 %v265
    %v987 = vunpack.c.h.b16 %v265
    %v988 = vunpack.c.l.b16 %v266
    %v989 = vunpack.c.h.b16 %v266
    %v990 = vunpack.c.l.b16 %v267
    %v991 = vunpack.c.h.b16 %v267
    %v992 = vunpack.c.l.b16 %v268
    %v993 = vunpack.c.h.b16 %v268
    %v994 = vunpack.c.l.b16 %v269
    %v995 = vunpack.c.h.b16 %v269
    %v996 = vunpack.c.l.b16 %v270
    %v997 = vunpack.c.h.b16 %v270
    %v998 = vunpack.c.l.b16 %v271
    %v999 = vunpack.c.h.b16 %v271
    %v1000 = vunpack.c.l.b16 %v272
    %v1001 = vunpack.c.h.b16 %v272
    %v1002 = vunpack.c.l.b16 %v273
    %v1003 = vunpack.c.h.b16 %v273
    %v1004 = vunpack.c.l.b16 %v274
    %v1005 = vunpack.c.h.b16 %v274
    %v1006 = vunpack.c.l.b16 %v275
    %v1007 = vunpack.c.h.b16 %v275
    %v1008 = vunpack.c.l.b16 %v276
    %v1009 = vunpack.c.h.b16 %v276
    %v1010 = vunpack.c.l.b16 %v277
    %v1011 = vunpack.c.h.b16 %v277
    %v1012 = vunpack.c.l.b16 %v278
    %v1013 = vunpack.c.h.b16 %v278
    %v1014 = vunpack.c.l.b16 %v279
    %v1015 = vunpack.c.h.b16 %v279
    %v1016 = vunpack.c.l.b16 %v280
    %v1017 = vunpack.c.h.b16 %v280
    %v1018 = vunpack.c.l.b16 %v281
    %v1019 = vunpack.c.h.b16 %v281
    %v1020 = vunpack.c.l.b16 %v282
    %v1021 = vunpack.c.h.b16 %v282
    %v1022 = vunpack.c.l.b16 %v283
    %v1023 = vunpack.c.h.b16 %v283
    %v1024 = vunpack.c.l.b16 %v284
    %v1025 = vunpack.c.h.b16 %v284
    %v1026 = vunpack.c.l.b16 %v285
    %v1027 = vunpack.c.h.b16 %v285
    %v1028 = vunpack.c.l.b16 %v286
    %v1029 = vunpack.c.h.b16 %v286
    %v1030 = vunpack.c.l.b16 %v287
    %v1031 = vunpack.c.h.b16 %v287
    %v1032 = vunpack.c.l.b16 %v288
    %v1033 = vunpack.c.h.b16 %v288
    %v1034 = vunpack.c.l.b16 %v289
    %v1035 = vunpack.c.h.b16 %v289
    %v1036 = vunpack.c.l.b16 %v290
    %v1037 = vunpack.c.h.b16 %v290
    %v1038 = vunpack.c.l.b16 %v291
    %v1039 = vunpack.c.h.b16 %v291
    %v1040 = vunpack.c.l.b16 %v292
    %v1041 = vunpack.c.h.b16 %v292
    %v1042 = vunpack.c.l.b16 %v293
    %v1043 = vunpack.c.h.b16 %v293
    %v1044 = vunpack.c.l.b16 %v294
    %v1045 = vunpack.c.h.b16 %v294
    %v1046 = vunpack.c.l.b16 %v295
    %v1047 = vunpack.c.h.b16 %v295
    %v1048 = vunpack.c.l.b16 %v296
    %v1049 = vunpack.c.h.b16 %v296
    %v1050 = vunpack.c.l.b16 %v297
    %v1051 = vunpack.c.h.b16 %v297
    %v1052 = vunpack.c.l.b16 %v298
    %v1053 = vunpack.c.h.b16 %v298
    %v1054 = vunpack.c.l.b16 %v299
    %v1055 = vunpack.c.h.b16 %v299
    %v1056 = vunpack.c.l.b16 %v300
    %v1057 = vunpack.c.h.b16 %v300
    %v1058 = vunpack.c.l.b16 %v301
    %v1059 = vunpack.c.h.b16 %v301
    %v1060 = vunpack.c.l.b16 %v302
    %v1061 = vunpack.c.h.b16 %v302
    %v1062 = vunpack.c.l.b16 %v303
    %v1063 = vunpack.c.h.b16 %v303
    %v1064 = vunpack.c.l.b16 %v304
    %v1065 = vunpack.c.h.b16 %v304
    %v1066 = vunpack.c.l.b16 %v305
    %v1067 = vunpack.c.h.b16 %v305
    %v1068 = vunpack.c.l.b16 %v306
    %v1069 = vunpack.c.h.b16 %v306
    %v1070 = vunpack.c.l.b16 %v307
    %v1071 = vunpack.c.h.b16 %v307
    %v1072 = vunpack.c.l.b16 %v308
    %v1073 = vunpack.c.h.b16 %v308
    %v1074 = vunpack.c.l.b16 %v309
    %v1075 = vunpack.c.h.b16 %v309
    %v1076 = vunpack.c.l.b16 %v310
    %v1077 = vunpack.c.h.b16 %v310
    %v1078 = vunpack.c.l.b16 %v311
    %v1079 = vunpack.c.h.b16 %v311
    %v1080 = vunpack.c.l.b16 %v312
    %v1081 = vunpack.c.h.b16 %v312
    %v1082 = vunpack.c.l.b16 %v313
    %v1083 = vunpack.c.h.b16 %v313
    %v1084 = vunpack.c.l.b16 %v314
    %v1085 = vunpack.c.h.b16 %v314
    %v1086 = vunpack.c.l.b16 %v315
    %v1087 = vunpack.c.h.b16 %v315
    %v1088 = vunpack.c.l.b16 %v316
    %v1089 = vunpack.c.h.b16 %v316
    %v1090 = vunpack.c.l.b16 %v317
    %v1091 = vunpack.c.h.b16 %v317
    %v1092 = vunpack.c.l.b16 %v318
    %v1093 = vunpack.c.h.b16 %v318
    %v1094 = vunpack.c.l.b16 %v319
    %v1095 = vunpack.c.h.b16 %v319
    %v1096 = vunpack.c.l.b16 %v320
    %v1097 = vunpack.c.h.b16 %v320
    %v1098 = vunpack.c.l.b16 %v321
    %v1099 = vunpack.c.h.b16 %v321
    %v1100 = vunpack.c.l.b16 %v322
    %v1101 = vunpack.c.h.b16 %v322
    %v1102 = vunpack.c.l.b16 %v323
    %v1103 = vunpack.c.h.b16 %v323
    %v1104 = vunpack.c.l.b16 %v324
    %v1105 = vunpack.c.h.b16 %v324
    %v1106 = vunpack.c.l.b16 %v325
    %v1107 = vunpack.c.h.b16 %v325
    %v1108 = vunpack.c.l.b16 %v326
    %v1109 = vunpack.c.h.b16 %v326
    %v1110 = vunpack.c.l.b16 %v327
    %v1111 = vunpack.c.h.b16 %v327
    %v1112 = vunpack.c.l.b16 %v328
    %v1113 = vunpack.c.h.b16 %v328
    %v1114 = vunpack.c.l.b16 %v329
    %v1115 = vunpack.c.h.b16 %v329
    %v1116 = vunpack.c.l.b16 %v330
    %v1117 = vunpack.c.h.b16 %v330
    %v1118 = vunpack.c.l.b16 %v331
    %v1119 = vunpack.c.h.b16 %v331
    %v1120 = vunpack.c.l.b16 %v332
    %v1121 = vunpack.c.h.b16 %v332
    %v1122 = vunpack.c.l.b16 %v333
    %v1123 = vunpack.c.h.b16 %v333
    %v1124 = vunpack.c.l.b16 %v334
    %v1125 = vunpack.c.h.b16 %v334
    %v1126 = vunpack.c.l.b16 %v335
    %v1127 = vunpack.c.h.b16 %v335
    %v1128 = vunpack.c.l.b16 %v336
    %v1129 = vunpack.c.h.b16 %v336
    %v1130 = vunpack.c.l.b16 %v337
    %v1131 = vunpack.c.h.b16 %v337
    %v1132 = vunpack.c.l.b16 %v338
    %v1133 = vunpack.c.h.b16 %v338
    %v1134 = vunpack.c.l.b16 %v339
    %v1135 = vunpack.c.h.b16 %v339
    %v1136 = vunpack.c.l.b16 %v340
    %v1137 = vunpack.c.h.b16 %v340
    %v1138 = vunpack.c.l.b16 %v341
    %v1139 = vunpack.c.h.b16 %v341
    %v1140 = vunpack.c.l.b16 %v342
    %v1141 = vunpack.c.h.b16 %v342
    %v1142 = vunpack.c.l.b16 %v343
    %v1143 = vunpack.c.h.b16 %v343
    %v1144 = vunpack.c.l.b16 %v344
    %v1145 = vunpack.c.h.b16 %v344
    %v1146 = vunpack.c.l.b16 %v345
    %v1147 = vunpack.c.h.b16 %v345
    %v1148 = vunpack.c.l.b16 %v346
    %v1149 = vunpack.c.h.b16 %v346
    %v1150 = vunpack.c.l.b16 %v347
    %v1151 = vunpack.c.h.b16 %v347
    %v1152 = vunpack.c.l.b16 %v348
    %v1153 = vunpack.c.h.b16 %v348
    %v1154 = vunpack.c.l.b16 %v349
    %v1155 = vunpack.c.h.b16 %v349
    %v1156 = vunpack.c.l.b16 %v350
    %v1157 = vunpack.c.h.b16 %v350
    %v1158 = vunpack.c.l.b16 %v351
    %v1159 = vunpack.c.h.b16 %v351
    %v1160 = vunpack.c.l.b16 %v352
    %v1161 = vunpack.c.h.b16 %v352
    %v1162 = vunpack.c.l.b16 %v353
    %v1163 = vunpack.c.h.b16 %v353
    %v1164 = vunpack.c.l.b16 %v354
    %v1165 = vunpack.c.h.b16 %v354
    %v1166 = vunpack.c.l.b16 %v355
    %v1167 = vunpack.c.h.b16 %v355
    %v1168 = vunpack.c.l.b16 %v356
    %v1169 = vunpack.c.h.b16 %v356
    %v1170 = vunpack.c.l.b16 %v357
    %v1171 = vunpack.c.h.b16 %v357
    %v1172 = vunpack.c.l.b16 %v358
    %v1173 = vunpack.c.h.b16 %v358
    %v1174 = vunpack.c.l.b16 %v359
    %v1175 = vunpack.c.h.b16 %v359
    %v1176 = vunpack.c.l.b16 %v360
    %v1177 = vunpack.c.h.b16 %v360
    %v1178 = vunpack.c.l.b16 %v361
    %v1179 = vunpack.c.h.b16 %v361
    %v1180 = vunpack.c.l.b16 %v362
    %v1181 = vunpack.c.h.b16 %v362
    %v1182 = vunpack.c.l.b16 %v363
    %v1183 = vunpack.c.h.b16 %v363
    %v1184 = vunpack.c.l.b16 %v364
    %v1185 = vunpack.c.h.b16 %v364
    %v1186 = vunpack.c.l.b16 %v365
    %v1187 = vunpack.c.h.b16 %v365
    %v1188 = vunpack.c.l.b16 %v366
    %v1189 = vunpack.c.h.b16 %v366
    %v1190 = vunpack.c.l.b16 %v367
    %v1191 = vunpack.c.h.b16 %v367
    %v1192 = vunpack.c.l.b16 %v368
    %v1193 = vunpack.c.h.b16 %v368
    %v1194 = vunpack.c.l.b16 %v369
    %v1195 = vunpack.c.h.b16 %v369
    %v1196 = vunpack.c.l.b16 %v370
    %v1197 = vunpack.c.h.b16 %v370
    %v1198 = vunpack.c.l.b16 %v371
    %v1199 = vunpack.c.h.b16 %v371
    %v1200 = vunpack.c.l.b16 %v372
    %v1201 = vunpack.c.h.b16 %v372
    %v1202 = vunpack.c.l.b16 %v373
    %v1203 = vunpack.c.h.b16 %v373
    %v1204 = vunpack.c.l.b16 %v374
    %v1205 = vunpack.c.h.b16 %v374
    %v1206 = vunpack.c.l.b16 %v375
    %v1207 = vunpack.c.h.b16 %v375
    %v1208 = vunpack.c.l.b16 %v376
    %v1209 = vunpack.c.h.b16 %v376
    %v1210 = vunpack.c.l.b16 %v377
    %v1211 = vunpack.c.h.b16 %v377
    %v1212 = vunpack.c.l.b16 %v378
    %v1213 = vunpack.c.h.b16 %v378
    %v1214 = vunpack.c.l.b16 %v379
    %v1215 = vunpack.c.h.b16 %v379
    %v1216 = vunpack.c.l.b16 %v380
    %v1217 = vunpack.c.h.b16 %v380
    %v1218 = vunpack.c.l.b16 %v381
    %v1219 = vunpack.c.h.b16 %v381
    %v1220 = vunpack.c.l.b16 %v382
    %v1221 = vunpack.c.h.b16 %v382
    %v1222 = vunpack.c.l.b16 %v383
    %v1223 = vunpack.c.h.b16 %v383
    %v1224 = vunpack.c.l.b16 %v384
    %v1225 = vunpack.c.h.b16 %v384
    %v1226 = vunpack.c.l.b16 %v385
    %v1227 = vunpack.c.h.b16 %v385
    %v1228 = vunpack.c.l.b16 %v386
    %v1229 = vunpack.c.h.b16 %v386
    %v1230 = vunpack.c.l.b16 %v387
    %v1231 = vunpack.c.h.b16 %v387
    %v1232 = vunpack.c.l.b16 %v388
    %v1233 = vunpack.c.h.b16 %v388
    %v1234 = vunpack.c.l.b16 %v389
    %v1235 = vunpack.c.h.b16 %v389
    %v1236 = vunpack.c.l.b16 %v390
    %v1237 = vunpack.c.h.b16 %v390
    %v1238 = vunpack.c.l.b16 %v391
    %v1239 = vunpack.c.h.b16 %v391
    %v1240 = vunpack.c.l.b16 %v392
    %v1241 = vunpack.c.h.b16 %v392
    %v1242 = vunpack.c.l.b16 %v393
    %v1243 = vunpack.c.h.b16 %v393
    %v1244 = vunpack.c.l.b16 %v394
    %v1245 = vunpack.c.h.b16 %v394
    %v1246 = vunpack.c.l.b16 %v395
    %v1247 = vunpack.c.h.b16 %v395
    %v1248 = vunpack.c.l.b16 %v396
    %v1249 = vunpack.c.h.b16 %v396
    %v1250 = vpack.c.b16 %v868, %v866
    %v1251 = vpack.c.b16 %v869, %v867
    %v1252 = vpack.c.b16 %v872, %v870
    %v1253 = vpack.c.b16 %v873, %v871
    %v1254 = vpack.c.b16 %v876, %v874
    %v1255 = vpack.c.b16 %v877, %v875
    %v1256 = vpack.c.b16 %v880, %v878
    %v1257 = vpack.c.b16 %v881, %v879
    %v1258 = vpack.c.b16 %v884, %v882
    %v1259 = vpack.c.b16 %v885, %v883
    %v1260 = vpack.c.b16 %v888, %v886
    %v1261 = vpack.c.b16 %v889, %v887
    %v1262 = vpack.c.b16 %v892, %v890
    %v1263 = vpack.c.b16 %v893, %v891
    %v1264 = vpack.c.b16 %v896, %v894
    %v1265 = vpack.c.b16 %v897, %v895
    %v1266 = vpack.c.b16 %v900, %v898
    %v1267 = vpack.c.b16 %v901, %v899
    %v1268 = vpack.c.b16 %v904, %v902
    %v1269 = vpack.c.b16 %v905, %v903
    %v1270 = vpack.c.b16 %v908, %v906
    %v1271 = vpack.c.b16 %v909, %v907
    %v1272 = vpack.c.b16 %v912, %v910
    %v1273 = vpack.c.b16 %v913, %v911
    %v1274 = vpack.c.b16 %v916, %v914
    %v1275 = vpack.c.b16 %v917, %v915
    %v1276 = vpack.c.b16 %v920, %v918
    %v1277 = vpack.c.b16 %v921, %v919
    %v1278 = vpack.c.b16 %v924, %v922
    %v1279 = vpack.c.b16 %v925, %v923
    %v1280 = vpack.c.b16 %v928, %v926
    %v1281 = vpack.c.b16 %v929, %v927
    %v1282 = vpack.c.b16 %v932, %v930
    %v1283 = vpack.c.b16 %v933, %v931
    %v1284 = vpack.c.b16 %v936, %v934
    %v1285 = vpack.c.b16 %v937, %v935
    %v1286 = vpack.c.b16 %v940, %v938
    %v1287 = vpack.c.b16 %v941, %v939
    %v1288 = vpack.c.b16 %v944, %v942
    %v1289 = vpack.c.b16 %v945, %v943
    %v1290 = vpack.c.b16 %v948, %v946
    %v1291 = vpack.c.b16 %v949, %v947
    %v1292 = vpack.c.b16 %v952, %v950
    %v1293 = vpack.c.b16 %v953, %v951
    %v1294 = vpack.c.b16 %v956, %v954
    %v1295 = vpack.c.b16 %v957, %v955
    %v1296 = vpack.c.b16 %v960, %v958
    %v1297 = vpack.c.b16 %v961, %v959
    %v1298 = vpack.c.b16 %v964, %v962
    %v1299 = vpack.c.b16 %v965, %v963
    %v1300 = vpack.c.b16 %v968, %v966
    %v1301 = vpack.c.b16 %v969, %v967
    %v1302 = vpack.c.b16 %v972, %v970
    %v1303 = vpack.c.b16 %v973, %v971
    %v1304 = vpack.c.b16 %v976, %v974
    %v1305 = vpack.c.b16 %v977, %v975
    %v1306 = vpack.c.b16 %v980, %v978
    %v1307 = vpack.c.b16 %v981, %v979
    %v1308 = vpack.c.b16 %v984, %v982
    %v1309 = vpack.c.b16 %v985, %v983
    %v1310 = vpack.c.b16 %v988, %v986
    %v1311 = vpack.c.b16 %v989, %v987
    %v1312 = vpack.c.b16 %v992, %v990
    %v1313 = vpack.c.b16 %v993, %v991
    %v1314 = vpack.c.b16 %v996, %v994
    %v1315 = vpack.c.b16 %v997, %v995
    %v1316 = vpack.c.b16 %v1000, %v998
    %v1317 = vpack.c.b16 %v1001, %v999
    %v1318 = vpack.c.b16 %v1004, %v1002
    %v1319 = vpack.c.b16 %v1005, %v1003
    %v1320 = vpack.c.b16 %v1008, %v1006
    %v1321 = vpack.c.b16 %v1009, %v1007
    %v1322 = vpack.c.b16 %v1012, %v1010
    %v1323 = vpack.c.b16 %v1013, %v1011
    %v1324 = vpack.c.b16 %v1016, %v1014
    %v1325 = vpack.c.b16 %v1017, %v1015
    %v1326 = vpack.c.b16 %v1020, %v1018
    %v1327 = vpack.c.b16 %v1021, %v1019
    %v1328 = vpack.c.b16 %v1024, %v1022
    %v1329 = vpack.c.b16 %v1025, %v1023
    %v1330 = vpack.c.b16 %v1028, %v1026
    %v1331 = vpack.c.b16 %v1029, %v1027
    %v1332 = vpack.c.b16 %v1032, %v1030
    %v1333 = vpack.c.b16 %v1033, %v1031
    %v1334 = vpack.c.b16 %v1036, %v1034
    %v1335 = vpack.c.b16 %v1037, %v1035
    %v1336 = vpack.c.b16 %v1040, %v1038
    %v1337 = vpack.c.b16 %v1041, %v1039
    %v1338 = vpack.c.b16 %v1044, %v1042
    %v1339 = vpack.c.b16 %v1045, %v1043
    %v1340 = vpack.c.b16 %v1048, %v1046
    %v1341 = vpack.c.b16 %v1049, %v1047
    %v1342 = vpack.c.b16 %v1052, %v1050
    %v1343 = vpack.c.b16 %v1053, %v1051
    %v1344 = vpack.c.b16 %v1056, %v1054
    %v1345 = vpack.c.b16 %v1057, %v1055
    %v1346 = vpack.c.b16 %v1060, %v1058
    %v1347 = vpack.c.b16 %v1061, %v1059
    %v1348 = vpack.c.b16 %v1064, %v1062
    %v1349 = vpack.c.b16 %v1065, %v1063
    %v1350 = vpack.c.b16 %v1068, %v1066
    %v1351 = vpack.c.b16 %v1069, %v1067
    %v1352 = vpack.c.b16 %v1072, %v1070
    %v1353 = vpack.c.b16 %v1073, %v1071
    %v1354 = vpack.c.b16 %v1076, %v1074
    %v1355 = vpack.c.b16 %v1077, %v1075
    %v1356 = vpack.c.b16 %v1080, %v1078
    %v1357 = vpack.c.b16 %v1081, %v1079
    %v1358 = vpack.c.b16 %v1084, %v1082
    %v1359 = vpack.c.b16 %v1085, %v1083
    %v1360 = vpack.c.b16 %v1088, %v1086
    %v1361 = vpack.c.b16 %v1089, %v1087
    %v1362 = vpack.c.b16 %v1092, %v1090
    %v1363 = vpack.c.b16 %v1093, %v1091
    %v1364 = vpack.c.b16 %v1096, %v1094
    %v1365 = vpack.c.b16 %v1097, %v1095
    %v1366 = vpack.c.b16 %v1100, %v1098
    %v1367 = vpack.c.b16 %v1101, %v1099
    %v1368 = vpack.c.b16 %v1104, %v1102
    %v1369 = vpack.c.b16 %v1105, %v1103
    %v1370 = vpack.c.b16 %v1108, %v1106
    %v1371 = vpack.c.b16 %v1109, %v1107
    %v1372 = vpack.c.b16 %v1112, %v1110
    %v1373 = vpack.c.b16 %v1113, %v1111
    %v1374 = vpack.c.b16 %v1116, %v1114
    %v1375 = vpack.c.b16 %v1117, %v1115
    %v1376 = vpack.c.b16 %v1120, %v1118
    %v1377 = vpack.c.b16 %v1121, %v1119
    %v1378 = vpack.c.b16 %v1124, %v1122
    %v1379 = vpack.c.b16 %v1125, %v1123
    %v1380 = vpack.c.b16 %v1128, %v1126
    %v1381 = vpack.c.b16 %v1129, %v1127
    %v1382 = vpack.c.b16 %v1132, %v1130
    %v1383 = vpack.c.b16 %v1133, %v1131
    %v1384 = vpack.c.b16 %v1136, %v1134
    %v1385 = vpack.c.b16 %v1137, %v1135
    %v1386 = vpack.c.b16 %v1140, %v1138
    %v1387 = vpack.c.b16 %v1141, %v1139
    %v1388 = vpack.c.b16 %v1144, %v1142
    %v1389 = vpack.c.b16 %v1145, %v1143
    %v1390 = vpack.c.b16 %v1148, %v1146
    %v1391 = vpack.c.b16 %v1149, %v1147
    %v1392 = vpack.c.b16 %v1152, %v1150
    %v1393 = vpack.c.b16 %v1153, %v1151
    %v1394 = vpack.c.b16 %v1156, %v1154
    %v1395 = vpack.c.b16 %v1157, %v1155
    %v1396 = vpack.c.b16 %v1160, %v1158
    %v1397 = vpack.c.b16 %v1161, %v1159
    %v1398 = vpack.c.b16 %v1164, %v1162
    %v1399 = vpack.c.b16 %v1165, %v1163
    %v1400 = vpack.c.b16 %v1168, %v1166
    %v1401 = vpack.c.b16 %v1169, %v1167
    %v1402 = vpack.c.b16 %v1172, %v1170
    %v1403 = vpack.c.b16 %v1173, %v1171
    %v1404 = vpack.c.b16 %v1176, %v1174
    %v1405 = vpack.c.b16 %v1177, %v1175
    %v1406 = vpack.c.b16 %v1180, %v1178
    %v1407 = vpack.c.b16 %v1181, %v1179
    %v1408 = vpack.c.b16 %v1184, %v1182
    %v1409 = vpack.c.b16 %v1185, %v1183
    %v1410 = vpack.c.b16 %v1188, %v1186
    %v1411 = vpack.c.b16 %v1189, %v1187
    %v1412 = vpack.c.b16 %v1192, %v1190
    %v1413 = vpack.c.b16 %v1193, %v1191
    %v1414 = vpack.c.b16 %v1196, %v1194
    %v1415 = vpack.c.b16 %v1197, %v1195
    %v1416 = vpack.c.b16 %v1200, %v1198
    %v1417 = vpack.c.b16 %v1201, %v1199
    %v1418 = vpack.c.b16 %v1204, %v1202
    %v1419 = vpack.c.b16 %v1205, %v1203
    %v1420 = vpack.c.b16 %v1208, %v1206
    %v1421 = vpack.c.b16 %v1209, %v1207
    %v1422 = vpack.c.b16 %v1212, %v1210
    %v1423 = vpack.c.b16 %v1213, %v1211
    %v1424 = vpack.c.b16 %v1216, %v1214
    %v1425 = vpack.c.b16 %v1217, %v1215
    %v1426 = vpack.c.b16 %v1220, %v1218
    %v1427 = vpack.c.b16 %v1221, %v1219
    %v1428 = vpack.c.b16 %v1224, %v1222
    %v1429 = vpack.c.b16 %v1225, %v1223
    %v1430 = vpack.c.b16 %v1228, %v1226
    %v1431 = vpack.c.b16 %v1229, %v1227
    %v1432 = vpack.c.b16 %v1232, %v1230
    %v1433 = vpack.c.b16 %v1233, %v1231
    %v1434 = vpack.c.b16 %v1236, %v1234
    %v1435 = vpack.c.b16 %v1237, %v1235
    %v1436 = vpack.c.b16 %v1240, %v1238
    %v1437 = vpack.c.b16 %v1241, %v1239
    %v1438 = vpack.c.b16 %v1244, %v1242
    %v1439 = vpack.c.b16 %v1245, %v1243
    %v1440 = vpack.c.b16 %v1248, %v1246
    %v1441 = vpack.c.b16 %v1249, %v1247
    %1634 = vmatprep.subr.bf16.mxu0 %v1251
    %1635 = vmatpush1.bf16.msra.mxu0 %v1250
    %1636 = vmatprep.subr.bf16.mxu0 %v1253
    %1637 = vmatpush1.bf16.msra.mxu0 %v1252
    %1638 = vmatprep.subr.bf16.mxu0 %v1255
    %1639 = vmatpush1.bf16.msra.mxu0 %v1254
    %1640 = vmatprep.subr.bf16.mxu0 %v1257
    %1641 = vmatpush1.bf16.msra.mxu0 %v1256
    %1642 = vmatprep.subr.bf16.mxu0 %v1259
    %1643 = vmatpush1.bf16.msra.mxu0 %v1258
    %1644 = vmatprep.subr.bf16.mxu0 %v1261
    %1645 = vmatpush1.bf16.msra.mxu0 %v1260
    %1646 = vmatprep.subr.bf16.mxu0 %v1263
    %1647 = vmatpush1.bf16.msra.mxu0 %v1262
    %1648 = vmatprep.subr.bf16.mxu0 %v1265
    %1649 = vmatpush1.bf16.msra.mxu0 %v1264
    %1650 = vmatprep.subr.bf16.mxu0 %v1267
    %1651 = vmatpush1.bf16.msra.mxu0 %v1266
    %1652 = vmatprep.subr.bf16.mxu0 %v1269
    %1653 = vmatpush1.bf16.msra.mxu0 %v1268
    %1654 = vmatprep.subr.bf16.mxu0 %v1271
    %1655 = vmatpush1.bf16.msra.mxu0 %v1270
    %1656 = vmatprep.subr.bf16.mxu0 %v1273
    %1657 = vmatpush1.bf16.msra.mxu0 %v1272
    %1658 = vmatprep.subr.bf16.mxu0 %v1275
    %1659 = vmatpush1.bf16.msra.mxu0 %v1274
    %1660 = vmatprep.subr.bf16.mxu0 %v1277
    %1661 = vmatpush1.bf16.msra.mxu0 %v1276
    %1662 = vmatprep.subr.bf16.mxu0 %v1279
    %1663 = vmatpush1.bf16.msra.mxu0 %v1278
    %1664 = vmatprep.subr.bf16.mxu0 %v1281
    %1665 = vmatpush1.bf16.msra.mxu0 %v1280
    %1666 = vmatprep.mubr.bf16.mxu0 %v651
    %1667 = vmatmul.mubr.bf16.gmra.mrb[0].mxu0 %v650
    %v1668 = vpop.f32.mrb[0].mxu0
    %v1669 = vadd.f32 %v626, %v1668
    %v1670 = vpop.f32.mrb[0].mxu0
    %v1671 = vadd.f32 %v628, %v1670
    %v1672 = vpop.f32.mrb[0].mxu0
    %v1673 = vpop.f32.mrb[0].mxu0
    %1674 = vdwg.mxu0
    %1675 = vmatprep.subr.bf16.mxu0 %v1283
    %1676 = vmatpush1.bf16.msra.mxu0 %v1282
    %1677 = vmatprep.subr.bf16.mxu0 %v1285
    %1678 = vmatpush1.bf16.msra.mxu0 %v1284
    %1679 = vmatprep.subr.bf16.mxu0 %v1287
    %1680 = vmatpush1.bf16.msra.mxu0 %v1286
    %1681 = vmatprep.subr.bf16.mxu0 %v1289
    %1682 = vmatpush1.bf16.msra.mxu0 %v1288
    %1683 = vmatprep.subr.bf16.mxu0 %v1291
    %1684 = vmatpush1.bf16.msra.mxu0 %v1290
    %1685 = vmatprep.subr.bf16.mxu0 %v1293
    %1686 = vmatpush1.bf16.msra.mxu0 %v1292
    %1687 = vmatprep.subr.bf16.mxu0 %v1295
    %1688 = vmatpush1.bf16.msra.mxu0 %v1294
    %1689 = vmatprep.subr.bf16.mxu0 %v1297
    %1690 = vmatpush1.bf16.msra.mxu0 %v1296
    %1691 = vmatprep.subr.bf16.mxu0 %v1299
    %1692 = vmatpush1.bf16.msra.mxu0 %v1298
    %1693 = vmatprep.subr.bf16.mxu0 %v1301
    %1694 = vmatpush1.bf16.msra.mxu0 %v1300
    %1695 = vmatprep.subr.bf16.mxu0 %v1303
    %1696 = vmatpush1.bf16.msra.mxu0 %v1302
    %1697 = vmatprep.subr.bf16.mxu0 %v1305
    %1698 = vmatpush1.bf16.msra.mxu0 %v1304
    %1699 = vmatprep.subr.bf16.mxu0 %v1307
    %1700 = vmatpush1.bf16.msra.mxu0 %v1306
    %1701 = vmatprep.subr.bf16.mxu0 %v1309
    %1702 = vmatpush1.bf16.msra.mxu0 %v1308
    %1703 = vmatprep.subr.bf16.mxu0 %v1311
    %1704 = vmatpush1.bf16.msra.mxu0 %v1310
    %1705 = vmatprep.subr.bf16.mxu0 %v1313
    %1706 = vmatpush1.bf16.msra.mxu0 %v1312
    %1707 = vmatprep.mubr.bf16.mxu0 %v653
    %1708 = vmatmul.mubr.bf16.gmra.mrb[0].mxu0 %v652
    %v1709 = vpop.f32.mrb[0].mxu0
    %v1710 = vadd.f32 %v1669, %v1709
    %v1711 = vpop.f32.mrb[0].mxu0
    %v1712 = vadd.f32 %v1671, %v1711
    %v1713 = vpop.f32.mrb[0].mxu0
    %v1714 = vpop.f32.mrb[0].mxu0
    %1715 = vdwg.mxu0
    %1716 = vmatprep.subr.bf16.mxu0 %v1315
    %1717 = vmatpush1.bf16.msra.mxu0 %v1314
    %1718 = vmatprep.subr.bf16.mxu0 %v1317
    %1719 = vmatpush1.bf16.msra.mxu0 %v1316
    %1720 = vmatprep.subr.bf16.mxu0 %v1319
    %1721 = vmatpush1.bf16.msra.mxu0 %v1318
    %1722 = vmatprep.subr.bf16.mxu0 %v1321
    %1723 = vmatpush1.bf16.msra.mxu0 %v1320
    %1724 = vmatprep.subr.bf16.mxu0 %v1323
    %1725 = vmatpush1.bf16.msra.mxu0 %v1322
    %1726 = vmatprep.subr.bf16.mxu0 %v1325
    %1727 = vmatpush1.bf16.msra.mxu0 %v1324
    %1728 = vmatprep.subr.bf16.mxu0 %v1327
    %1729 = vmatpush1.bf16.msra.mxu0 %v1326
    %1730 = vmatprep.subr.bf16.mxu0 %v1329
    %1731 = vmatpush1.bf16.msra.mxu0 %v1328
    %1732 = vmatprep.subr.bf16.mxu0 %v1331
    %1733 = vmatpush1.bf16.msra.mxu0 %v1330
    %1734 = vmatprep.subr.bf16.mxu0 %v1333
    %1735 = vmatpush1.bf16.msra.mxu0 %v1332
    %1736 = vmatprep.subr.bf16.mxu0 %v1335
    %1737 = vmatpush1.bf16.msra.mxu0 %v1334
    %1738 = vmatprep.subr.bf16.mxu0 %v1337
    %1739 = vmatpush1.bf16.msra.mxu0 %v1336
    %1740 = vmatprep.subr.bf16.mxu0 %v1339
    %1741 = vmatpush1.bf16.msra.mxu0 %v1338
    %1742 = vmatprep.subr.bf16.mxu0 %v1341
    %1743 = vmatpush1.bf16.msra.mxu0 %v1340
    %1744 = vmatprep.subr.bf16.mxu0 %v1343
    %1745 = vmatpush1.bf16.msra.mxu0 %v1342
    %1746 = vmatprep.subr.bf16.mxu0 %v1345
    %1747 = vmatpush1.bf16.msra.mxu0 %v1344
    %1748 = vmatprep.mubr.bf16.mxu0 %v655
    %1749 = vmatmul.mubr.bf16.gmra.mrb[0].mxu0 %v654
    %v1750 = vpop.f32.mrb[0].mxu0
    %v1751 = vadd.f32 %v1710, %v1750
    %v1752 = vpop.f32.mrb[0].mxu0
    %v1753 = vadd.f32 %v1712, %v1752
    %v1754 = vpop.f32.mrb[0].mxu0
    %v1755 = vpop.f32.mrb[0].mxu0
    %1756 = vdwg.mxu0
    %1757 = vmatprep.subr.bf16.mxu0 %v1347
    %1758 = vmatpush1.bf16.msra.mxu0 %v1346
    %1759 = vmatprep.subr.bf16.mxu0 %v1349
    %1760 = vmatpush1.bf16.msra.mxu0 %v1348
    %1761 = vmatprep.subr.bf16.mxu0 %v1351
    %1762 = vmatpush1.bf16.msra.mxu0 %v1350
    %1763 = vmatprep.subr.bf16.mxu0 %v1353
    %1764 = vmatpush1.bf16.msra.mxu0 %v1352
    %1765 = vmatprep.subr.bf16.mxu0 %v1355
    %1766 = vmatpush1.bf16.msra.mxu0 %v1354
    %1767 = vmatprep.subr.bf16.mxu0 %v1357
    %1768 = vmatpush1.bf16.msra.mxu0 %v1356
    %1769 = vmatprep.subr.bf16.mxu0 %v1359
    %1770 = vmatpush1.bf16.msra.mxu0 %v1358
    %1771 = vmatprep.subr.bf16.mxu0 %v1361
    %1772 = vmatpush1.bf16.msra.mxu0 %v1360
    %1773 = vmatprep.subr.bf16.mxu0 %v1363
    %1774 = vmatpush1.bf16.msra.mxu0 %v1362
    %1775 = vmatprep.subr.bf16.mxu0 %v1365
    %1776 = vmatpush1.bf16.msra.mxu0 %v1364
    %1777 = vmatprep.subr.bf16.mxu0 %v1367
    %1778 = vmatpush1.bf16.msra.mxu0 %v1366
    %1779 = vmatprep.subr.bf16.mxu0 %v1369
    %1780 = vmatpush1.bf16.msra.mxu0 %v1368
    %1781 = vmatprep.subr.bf16.mxu0 %v1371
    %1782 = vmatpush1.bf16.msra.mxu0 %v1370
    %1783 = vmatprep.subr.bf16.mxu0 %v1373
    %1784 = vmatpush1.bf16.msra.mxu0 %v1372
    %1785 = vmatprep.subr.bf16.mxu0 %v1375
    %1786 = vmatpush1.bf16.msra.mxu0 %v1374
    %1787 = vmatprep.subr.bf16.mxu0 %v1377
    %1788 = vmatpush1.bf16.msra.mxu0 %v1376
    %1789 = vmatprep.mubr.bf16.mxu0 %v657
    %1790 = vmatmul.mubr.bf16.gmra.mrb[0].mxu0 %v656
    %v1791 = vpop.f32.mrb[0].mxu0
    %v1792 = vadd.f32 %v1751, %v1791
    %v1793 = vpop.f32.mrb[0].mxu0
    %v1794 = vadd.f32 %v1753, %v1793
    %v1795 = vpop.f32.mrb[0].mxu0
    %v1796 = vpop.f32.mrb[0].mxu0
    %1797 = vdwg.mxu0
    %1798 = vmatprep.subr.bf16.mxu0 %v1379
    %1799 = vmatpush1.bf16.msra.mxu0 %v1378
    %1800 = vmatprep.subr.bf16.mxu0 %v1381
    %1801 = vmatpush1.bf16.msra.mxu0 %v1380
    %1802 = vmatprep.subr.bf16.mxu0 %v1383
    %1803 = vmatpush1.bf16.msra.mxu0 %v1382
    %1804 = vmatprep.subr.bf16.mxu0 %v1385
    %1805 = vmatpush1.bf16.msra.mxu0 %v1384
    %1806 = vmatprep.subr.bf16.mxu0 %v1387
    %1807 = vmatpush1.bf16.msra.mxu0 %v1386
    %1808 = vmatprep.subr.bf16.mxu0 %v1389
    %1809 = vmatpush1.bf16.msra.mxu0 %v1388
    %1810 = vmatprep.subr.bf16.mxu0 %v1391
    %1811 = vmatpush1.bf16.msra.mxu0 %v1390
    %1812 = vmatprep.subr.bf16.mxu0 %v1393
    %1813 = vmatpush1.bf16.msra.mxu0 %v1392
    %1814 = vmatprep.subr.bf16.mxu0 %v1395
    %1815 = vmatpush1.bf16.msra.mxu0 %v1394
    %1816 = vmatprep.subr.bf16.mxu0 %v1397
    %1817 = vmatpush1.bf16.msra.mxu0 %v1396
    %1818 = vmatprep.subr.bf16.mxu0 %v1399
    %1819 = vmatpush1.bf16.msra.mxu0 %v1398
    %1820 = vmatprep.subr.bf16.mxu0 %v1401
    %1821 = vmatpush1.bf16.msra.mxu0 %v1400
    %1822 = vmatprep.subr.bf16.mxu0 %v1403
    %1823 = vmatpush1.bf16.msra.mxu0 %v1402
    %1824 = vmatprep.subr.bf16.mxu0 %v1405
    %1825 = vmatpush1.bf16.msra.mxu0 %v1404
    %1826 = vmatprep.subr.bf16.mxu0 %v1407
    %1827 = vmatpush1.bf16.msra.mxu0 %v1406
    %1828 = vmatprep.subr.bf16.mxu0 %v1409
    %1829 = vmatpush1.bf16.msra.mxu0 %v1408
    %1830 = vmatprep.mubr.bf16.mxu0 %v659
    %1831 = vmatmul.mubr.bf16.gmra.mrb[0].mxu0 %v658
    %v1832 = vpop.f32.mrb[0].mxu0
    %v1833 = vadd.f32 %v1792, %v1832
    %v1834 = vpop.f32.mrb[0].mxu0
    %v1835 = vadd.f32 %v1794, %v1834
    %v1836 = vpop.f32.mrb[0].mxu0
    %v1837 = vpop.f32.mrb[0].mxu0
    %1838 = vdwg.mxu0
    %1839 = vmatprep.subr.bf16.mxu0 %v1411
    %1840 = vmatpush1.bf16.msra.mxu0 %v1410
    %1841 = vmatprep.subr.bf16.mxu0 %v1413
    %1842 = vmatpush1.bf16.msra.mxu0 %v1412
    %1843 = vmatprep.subr.bf16.mxu0 %v1415
    %1844 = vmatpush1.bf16.msra.mxu0 %v1414
    %1845 = vmatprep.subr.bf16.mxu0 %v1417
    %1846 = vmatpush1.bf16.msra.mxu0 %v1416
    %1847 = vmatprep.subr.bf16.mxu0 %v1419
    %1848 = vmatpush1.bf16.msra.mxu0 %v1418
    %1849 = vmatprep.subr.bf16.mxu0 %v1421
    %1850 = vmatpush1.bf16.msra.mxu0 %v1420
    %1851 = vmatprep.subr.bf16.mxu0 %v1423
    %1852 = vmatpush1.bf16.msra.mxu0 %v1422
    %1853 = vmatprep.subr.bf16.mxu0 %v1425
    %1854 = vmatpush1.bf16.msra.mxu0 %v1424
    %1855 = vmatprep.subr.bf16.mxu0 %v1427
    %1856 = vmatpush1.bf16.msra.mxu0 %v1426
    %1857 = vmatprep.subr.bf16.mxu0 %v1429
    %1858 = vmatpush1.bf16.msra.mxu0 %v1428
    %1859 = vmatprep.subr.bf16.mxu0 %v1431
    %1860 = vmatpush1.bf16.msra.mxu0 %v1430
    %1861 = vmatprep.subr.bf16.mxu0 %v1433
    %1862 = vmatpush1.bf16.msra.mxu0 %v1432
    %1863 = vmatprep.subr.bf16.mxu0 %v1435
    %1864 = vmatpush1.bf16.msra.mxu0 %v1434
    %1865 = vmatprep.subr.bf16.mxu0 %v1437
    %1866 = vmatpush1.bf16.msra.mxu0 %v1436
    %1867 = vmatprep.subr.bf16.mxu0 %v1439
    %1868 = vmatpush1.bf16.msra.mxu0 %v1438
    %1869 = vmatprep.subr.bf16.mxu0 %v1441
    %1870 = vmatpush1.bf16.msra.mxu0 %v1440
    %1871 = vmatprep.mubr.bf16.mxu0 %v661
    %1872 = vmatmul.mubr.bf16.gmra.mrb[0].mxu0 %v660
    %v1873 = vpop.f32.mrb[0].mxu0
    %v1874 = vadd.f32 %v1833, %v1873
    %v1875 = vpop.f32.mrb[0].mxu0
    %v1876 = vadd.f32 %v1835, %v1875
    %v1877 = vpop.f32.mrb[0].mxu0
    %v1878 = vpop.f32.mrb[0].mxu0
    %1879 = vdwg.mxu0
    %v1880 = vld [vmem:[%s6] sm:$0x3]
    %v1882 = vlaneseq
    %v1883 = vshrl.u32 %v1882, 7
    %v1884 = vsub.s32 0, %v1883
    %v1885 = vrot.slane %v1880, %v1884
    %v1886 = vlaneseq
    %v1887 = vshrl.u32 %v1886, 7
    %v1888 = vsub.s32 1, %v1887
    %v1889 = vrot.slane %v1880, %v1888
    %v1892 = vadd.f32 %v1874, %v1885
    %v1893 = vadd.f32 %v1876, %v1889
    %v1894 = vmax.f32 %v1892, 0.0
    %v1895 = vmax.f32 %v1893, 0.0
    %v1896 = vpack.c.bf16 %v1894, %v1894
    %v1897 = vpack.c.bf16 %v1895, %v1895
    %v1898 = vld [vmem:[%s7] sm:$0xf]
    %v1899 = vld [vmem:[%s7 + $0x4] sm:$0xf]
    %v1900 = vld [vmem:[%s7 + $0x8] sm:$0xf]
    %v1901 = vld [vmem:[%s7 + $0xc] sm:$0xf]
    %v1902 = vld [vmem:[%s7 + $0x10] sm:$0xf]
    %v1903 = vld [vmem:[%s7 + $0x14] sm:$0xf]
    %v1904 = vld [vmem:[%s7 + $0x18] sm:$0xf]
    %v1905 = vld [vmem:[%s7 + $0x1c] sm:$0xf]
    %v1906 = vld [vmem:[%s7 + $0x20] sm:$0xf]
    %v1907 = vld [vmem:[%s7 + $0x24] sm:$0xf]
    %v1908 = vld [vmem:[%s7 + $0x28] sm:$0xf]
    %v1909 = vld [vmem:[%s7 + $0x2c] sm:$0xf]
    %v1910 = vld [vmem:[%s7 + $0x30] sm:$0xf]
    %v1911 = vld [vmem:[%s7 + $0x34] sm:$0xf]
    %v1912 = vld [vmem:[%s7 + $0x38] sm:$0xf]
    %v1913 = vld [vmem:[%s7 + $0x3c] sm:$0xf]
    %v1914 = vld [vmem:[%s7 + $0x40] sm:$0xf]
    %v1915 = vld [vmem:[%s7 + $0x44] sm:$0xf]
    %v1916 = vld [vmem:[%s7 + $0x48] sm:$0xf]
    %v1917 = vld [vmem:[%s7 + $0x4c] sm:$0xf]
    %v1918 = vld [vmem:[%s7 + $0x50] sm:$0xf]
    %v1919 = vld [vmem:[%s7 + $0x54] sm:$0xf]
    %v1920 = vld [vmem:[%s7 + $0x58] sm:$0xf]
    %v1921 = vld [vmem:[%s7 + $0x5c] sm:$0xf]
    %v1922 = vld [vmem:[%s7 + $0x60] sm:$0xf]
    %v1923 = vld [vmem:[%s7 + $0x64] sm:$0xf]
    %v1924 = vld [vmem:[%s7 + $0x68] sm:$0xf]
    %v1925 = vld [vmem:[%s7 + $0x6c] sm:$0xf]
    %v1926 = vld [vmem:[%s7 + $0x70] sm:$0xf]
    %v1927 = vld [vmem:[%s7 + $0x74] sm:$0xf]
    %v1928 = vld [vmem:[%s7 + $0x78] sm:$0xf]
    %v1929 = vld [vmem:[%s7 + $0x7c] sm:$0xf]
    %v1930 = vld [vmem:[%s8] sm:$0x1]
    %v1932 = vlaneseq
    %v1933 = vshrl.u32 %v1932, 7
    %v1934 = vsub.s32 0, %v1933
    %v1935 = vrot.slane %v1930, %v1934
    %v1969 = vunpack.c.l.b16 %v1898
    %v1970 = vunpack.c.l.b16 %v1899
    %v1971 = vunpack.c.l.b16 %v1900
    %v1972 = vunpack.c.l.b16 %v1901
    %v1973 = vunpack.c.l.b16 %v1902
    %v1974 = vunpack.c.l.b16 %v1903
    %v1975 = vunpack.c.l.b16 %v1904
    %v1976 = vunpack.c.l.b16 %v1905
    %v1977 = vunpack.c.l.b16 %v1906
    %v1978 = vunpack.c.l.b16 %v1907
    %v1979 = vunpack.c.l.b16 %v1908
    %v1980 = vunpack.c.l.b16 %v1909
    %v1981 = vunpack.c.l.b16 %v1910
    %v1982 = vunpack.c.l.b16 %v1911
    %v1983 = vunpack.c.l.b16 %v1912
    %v1984 = vunpack.c.l.b16 %v1913
    %v1985 = vunpack.c.l.b16 %v1914
    %v1986 = vunpack.c.l.b16 %v1915
    %v1987 = vunpack.c.l.b16 %v1916
    %v1988 = vunpack.c.l.b16 %v1917
    %v1989 = vunpack.c.l.b16 %v1918
    %v1990 = vunpack.c.l.b16 %v1919
    %v1991 = vunpack.c.l.b16 %v1920
    %v1992 = vunpack.c.l.b16 %v1921
    %v1993 = vunpack.c.l.b16 %v1922
    %v1994 = vunpack.c.l.b16 %v1923
    %v1995 = vunpack.c.l.b16 %v1924
    %v1996 = vunpack.c.l.b16 %v1925
    %v1997 = vunpack.c.l.b16 %v1926
    %v1998 = vunpack.c.l.b16 %v1927
    %v1999 = vunpack.c.l.b16 %v1928
    %v2000 = vunpack.c.l.b16 %v1929
    %v2001 = vpack.c.b16 %v1970, %v1969
    %v2002 = vpack.c.b16 %v1972, %v1971
    %v2003 = vpack.c.b16 %v1974, %v1973
    %v2004 = vpack.c.b16 %v1976, %v1975
    %v2005 = vpack.c.b16 %v1978, %v1977
    %v2006 = vpack.c.b16 %v1980, %v1979
    %v2007 = vpack.c.b16 %v1982, %v1981
    %v2008 = vpack.c.b16 %v1984, %v1983
    %v2009 = vpack.c.b16 %v1986, %v1985
    %v2010 = vpack.c.b16 %v1988, %v1987
    %v2011 = vpack.c.b16 %v1990, %v1989
    %v2012 = vpack.c.b16 %v1992, %v1991
    %v2013 = vpack.c.b16 %v1994, %v1993
    %v2014 = vpack.c.b16 %v1996, %v1995
    %v2015 = vpack.c.b16 %v1998, %v1997
    %v2016 = vpack.c.b16 %v2000, %v1999
    %2033 = vmatprep.subr.bf16.mxu0 0
    %2034 = vmatpush1.bf16.msra.mxu0 %v2001
    %2035 = vmatprep.subr.bf16.mxu0 0
    %2036 = vmatpush1.bf16.msra.mxu0 %v2002
    %2037 = vmatprep.subr.bf16.mxu0 0
    %2038 = vmatpush1.bf16.msra.mxu0 %v2003
    %2039 = vmatprep.subr.bf16.mxu0 0
    %2040 = vmatpush1.bf16.msra.mxu0 %v2004
    %2041 = vmatprep.subr.bf16.mxu0 0
    %2042 = vmatpush1.bf16.msra.mxu0 %v2005
    %2043 = vmatprep.subr.bf16.mxu0 0
    %2044 = vmatpush1.bf16.msra.mxu0 %v2006
    %2045 = vmatprep.subr.bf16.mxu0 0
    %2046 = vmatpush1.bf16.msra.mxu0 %v2007
    %2047 = vmatprep.subr.bf16.mxu0 0
    %2048 = vmatpush1.bf16.msra.mxu0 %v2008
    %2049 = vmatprep.subr.bf16.mxu0 0
    %2050 = vmatpush1.bf16.msra.mxu0 %v2009
    %2051 = vmatprep.subr.bf16.mxu0 0
    %2052 = vmatpush1.bf16.msra.mxu0 %v2010
    %2053 = vmatprep.subr.bf16.mxu0 0
    %2054 = vmatpush1.bf16.msra.mxu0 %v2011
    %2055 = vmatprep.subr.bf16.mxu0 0
    %2056 = vmatpush1.bf16.msra.mxu0 %v2012
    %2057 = vmatprep.subr.bf16.mxu0 0
    %2058 = vmatpush1.bf16.msra.mxu0 %v2013
    %2059 = vmatprep.subr.bf16.mxu0 0
    %2060 = vmatpush1.bf16.msra.mxu0 %v2014
    %2061 = vmatprep.subr.bf16.mxu0 0
    %2062 = vmatpush1.bf16.msra.mxu0 %v2015
    %2063 = vmatprep.subr.bf16.mxu0 0
    %2064 = vmatpush1.bf16.msra.mxu0 %v2016
    %2065 = vmatprep.mubr.bf16.mxu0 %v1897
    %2066 = vmatmul.mubr.bf16.gmra.mrb[0].mxu0 %v1896
    %v2067 = vpop.f32.mrb[0].mxu0
    %v2068 = vadd.f32 %v1935, %v2067
    %v2069 = vpop.f32.mrb[0].mxu0
    %v2070 = vpop.f32.mrb[0].mxu0
    %v2071 = vpop.f32.mrb[0].mxu0
    %2072 = vdwg.mxu0
    %2073 = vst [vmem:[%s9] sm:$0xff] %v2068
    // Predicated region
    $region42: #{simple_view_forward.3} parent=1 // pred_check
      _
    $region43: #{simple_view_forward.3} parent=1 // pred_check_branch
      %2075 = sbr.rel (0) target = $region45
    $region44: #{simple_view_forward.3} parent=1 // pred_region
      _
    $region45: #{simple_view_forward.3} parent=1 // pred_fallthru
      _
    // Predicated region
    $region46: #{simple_view_forward.3} parent=1 // pred_check
      _
    $region47: #{simple_view_forward.3} parent=1 // pred_check_branch
      %2077 = sbr.rel (0) target = $region49
    $region48: #{simple_view_forward.3} parent=1 // pred_region
      _
    $region49: #{simple_view_forward.3} parent=1 // pred_fallthru
      _
    %2078 = vsyncpa [#allocation3], 1

</llo_original>
